<compile_context>
chip_gen: v6e
topology: v6e:2x2x1
jax: 0.10.0
libtpu: 0.0.40
codegen_flags: <defaults>
</compile_context>

<pallas_src>
import math

import jax
import jax.numpy as jnp
from jax import lax
from jax.experimental import pallas as pl
from jax.experimental.pallas import tpu as pltpu

# ----------------------------------------------------------------------------
# Small, deterministic ViT configuration (scaled-down ViT-base analogue)
# ----------------------------------------------------------------------------
B = 2              # batch
C = 3              # input channels
IMG = 16           # image height/width
PATCH = 8          # patch size -> (16/8)^2 = 4 patches
HIDDEN = 64        # hidden size
N_HEADS = 2
HEAD_DIM = HIDDEN // N_HEADS
N_LAYERS = 2
INTERMEDIATE = 128
NUM_LABELS = 10
LN_EPS = 1e-12     # HF ViT layer_norm_eps
N_PATCHES = (IMG // PATCH) ** 2
SEQ = N_PATCHES + 1          # +1 for [CLS]
CPP = C * PATCH * PATCH      # flattened patch length
LANES = 128
NV = 8 * (N_LAYERS + 2)      # rows in the packed f32 vector slab


# ----------------------------------------------------------------------------
# In-kernel helpers (operate on values, not refs)
# ----------------------------------------------------------------------------
def _gelu(x):
    # Exact (erf-based) GELU, matching HF ViT's "gelu" activation.
    return 0.5 * x * (1.0 + lax.erf(x * (1.0 / math.sqrt(2.0))))


def _layernorm(x, g, b):
    # Two-pass LN (kept for parity with torch LayerNorm numerics).
    mean = jnp.mean(x, axis=-1, keepdims=True)
    xc = x - mean
    var = jnp.mean(xc * xc, axis=-1, keepdims=True)
    return xc * lax.rsqrt(var + LN_EPS) * g + b


# ----------------------------------------------------------------------------
# One fused Pallas kernel; grid = (batch,), one batch element per grid point
# ----------------------------------------------------------------------------
def _vit_fused_kernel(
    # scalar prefetch
    labels_ref,    # (B,) int32 in SMEM
    # inputs (per-batch block / resident weight slabs)
    emb_ref,       # (SEQ, CPP)  f32   this batch element's patch pixels (CLS row = 0)
    vecs_ref,      # (NV, 128)   f32   seq_add + LN params + biases (packed rows)
    w_attn_ref,    # (L, NH, 4, H, Dh) bf16  [Wq*scale, Wk, Wv, Wo^T] per head
    b_qkv_ref,     # (L, NH, 3, 1, Dh) f32   [bq*scale, bk, bv] per head
    w_mlp_ref,     # (L, H+I, 128) bf16      rows 0..H-1: W_fc1, rows H..: W_fc2 (lane pad)
    w_gl_ref,      # (CPP+H, 128) bf16       rows 0..CPP-1: patch_w, rows CPP..: cls_w
    # outputs (per-batch blocks)
    logits_ref,    # (1, NUM_LABELS) f32
    loss_ref,      # (1, 1) f32  per-example NLL
):
    f32 = jnp.float32
    bf16 = jnp.bfloat16

    def vrow(r, w):
        return vecs_ref[r:r + 1, 0:w]                      # (1, w) f32, static slice

    # --- patch embedding + [CLS]/pos (cls token, pos emb, conv bias pre-folded) ---
    patch_w = w_gl_ref[0:CPP, 0:HIDDEN]                    # (CPP, H) bf16
    x = jnp.dot(emb_ref[...].astype(bf16), patch_w, preferred_element_type=f32)
    x = x + vecs_ref[0:SEQ, 0:HIDDEN]                      # (SEQ, H) f32

    # --- transformer layers; x and all intermediates stay in VMEM/vregs ---
    for l in range(N_LAYERS):
        vb = 8 * (1 + l)

        # MHA block (pre-LayerNorm), per-head weights indexed on leading axes
        h = _layernorm(x, vrow(vb + 0, HIDDEN), vrow(vb + 1, HIDDEN))
        h16 = h.astype(bf16)
        attn = None
        for hd in range(N_HEADS):
            q = jnp.dot(h16, w_attn_ref[l, hd, 0],
                        preferred_element_type=f32) + b_qkv_ref[l, hd, 0]
            k = jnp.dot(h16, w_attn_ref[l, hd, 1],
                        preferred_element_type=f32) + b_qkv_ref[l, hd, 1]
            v = jnp.dot(h16, w_attn_ref[l, hd, 2],
                        preferred_element_type=f32) + b_qkv_ref[l, hd, 2]
            # QK^T contracting last dims (no transpose copy); per-batch, so no mask
            s = lax.dot_general(q, k, (((1,), (1,)), ((), ())),
                                preferred_element_type=f32)          # (SEQ, SEQ)
            s = s - jnp.max(s, axis=-1, keepdims=True)
            e = jnp.exp(s)
            p = e / jnp.sum(e, axis=-1, keepdims=True)               # exact softmax
            ctx = jnp.dot(p, v, preferred_element_type=f32)          # (SEQ, Dh)
            # ctx @ Wo_slice  ==  dot_general(ctx, Wo_slice^T) contracting last dims
            contrib = lax.dot_general(ctx.astype(bf16), w_attn_ref[l, hd, 3],
                                      (((1,), (1,)), ((), ())),
                                      preferred_element_type=f32)    # (SEQ, H)
            attn = contrib if attn is None else attn + contrib
        x = x + attn + vrow(vb + 2, HIDDEN)                # out-proj bias + residual

        # MLP block (pre-LayerNorm), GELU fused
        h = _layernorm(x, vrow(vb + 3, HIDDEN), vrow(vb + 4, HIDDEN))
        h1 = jnp.dot(h.astype(bf16), w_mlp_ref[l, 0:HIDDEN, :],
                     preferred_element_type=f32) + vrow(vb + 5, INTERMEDIATE)
        h1 = _gelu(h1)                                               # (SEQ, I)
        h2 = jnp.dot(h1.astype(bf16),
                     w_mlp_ref[l, HIDDEN:HIDDEN + INTERMEDIATE, 0:HIDDEN],
                     preferred_element_type=f32)
        x = x + h2 + vrow(vb + 6, HIDDEN)

    # --- final LayerNorm on the [CLS] row (row-wise LN, CLS-only equivalent) ---
    fb = 8 * (1 + N_LAYERS)
    cls_tok = _layernorm(x[0:1, :], vrow(fb + 0, HIDDEN), vrow(fb + 1, HIDDEN))
    cls_w = w_gl_ref[CPP:CPP + HIDDEN, 0:NUM_LABELS]                 # (H, NUM_LABELS) bf16
    logits = jnp.dot(cls_tok.astype(bf16), cls_w,
                     preferred_element_type=f32) + vrow(fb + 2, NUM_LABELS)
    logits_ref[...] = logits.astype(logits_ref.dtype)

    # --- per-example cross-entropy; one-hot via iota vs SMEM label scalar ---
    m = jnp.max(logits, axis=-1, keepdims=True)
    z = logits - m
    lse = jnp.log(jnp.sum(jnp.exp(z), axis=-1, keepdims=True))
    lab = labels_ref[pl.program_id(0)]
    col = lax.broadcasted_iota(jnp.int32, (1, NUM_LABELS), 1)
    onehot = (col == lab).astype(f32)
    tgt = jnp.sum(onehot * z, axis=-1, keepdims=True)
    loss_ref[...] = lse - tgt


# ----------------------------------------------------------------------------
# Parameter init (deterministic, synthetic, PyTorch-shaped)
# ----------------------------------------------------------------------------
def _dense_init(key, shape, scale=0.02):
    return scale * jax.random.normal(key, shape, dtype=jnp.float32)


def init_params(key):
    keys = iter(jax.random.split(key, 8 + N_LAYERS * 8))
    params = {
        # Conv2d(C, HIDDEN, kernel=PATCH, stride=PATCH) expressed as a matmul:
        # weight (HIDDEN, C, P, P) flattened (C,P,P-major) and transposed.
        "patch_w": _dense_init(next(keys), (CPP, HIDDEN)),
        "patch_b": jnp.zeros((HIDDEN,), jnp.float32),
        "cls_token": _dense_init(next(keys), (1, 1, HIDDEN)),
        "pos_emb": _dense_init(next(keys), (1, SEQ, HIDDEN)),
        "ln_f_g": jnp.ones((HIDDEN,), jnp.float32),
        "ln_f_b": jnp.zeros((HIDDEN,), jnp.float32),
        "cls_w": _dense_init(next(keys), (HIDDEN, NUM_LABELS)),
        "cls_b": jnp.zeros((NUM_LABELS,), jnp.float32),
        "layers": [],
    }
    for _ in range(N_LAYERS):
        params["layers"].append({
            "ln1_g": jnp.ones((HIDDEN,), jnp.float32),
            "ln1_b": jnp.zeros((HIDDEN,), jnp.float32),
            "wq": _dense_init(next(keys), (HIDDEN, HIDDEN)),
            "bq": jnp.zeros((HIDDEN,), jnp.float32),
            "wk": _dense_init(next(keys), (HIDDEN, HIDDEN)),
            "bk": jnp.zeros((HIDDEN,), jnp.float32),
            "wv": _dense_init(next(keys), (HIDDEN, HIDDEN)),
            "bv": jnp.zeros((HIDDEN,), jnp.float32),
            "wo": _dense_init(next(keys), (HIDDEN, HIDDEN)),
            "bo": jnp.zeros((HIDDEN,), jnp.float32),
            "ln2_g": jnp.ones((HIDDEN,), jnp.float32),
            "ln2_b": jnp.zeros((HIDDEN,), jnp.float32),
            "w_fc1": _dense_init(next(keys), (HIDDEN, INTERMEDIATE)),
            "b_fc1": jnp.zeros((INTERMEDIATE,), jnp.float32),
            "w_fc2": _dense_init(next(keys), (INTERMEDIATE, HIDDEN)),
            "b_fc2": jnp.zeros((HIDDEN,), jnp.float32),
        })
    return params


# ----------------------------------------------------------------------------
# One-time parameter packing (outside jit): 6 lane-friendly slabs
# ----------------------------------------------------------------------------
def pack_params(params):
    f32 = jnp.float32
    bf16 = jnp.bfloat16
    scale = 1.0 / math.sqrt(HEAD_DIM)
    layers = params["layers"]

    def row(v):
        v = v.reshape(1, -1).astype(f32)
        return jnp.pad(v, ((0, 0), (0, LANES - v.shape[1])))

    # cls+pos for row 0, pos+conv-bias for patch rows (conv bias excluded from CLS)
    seq_add = jnp.concatenate(
        [params["cls_token"].reshape(1, HIDDEN) + params["pos_emb"][0, :1, :],
         params["pos_emb"][0, 1:, :] + params["patch_b"].reshape(1, HIDDEN)],
        axis=0)                                                      # (SEQ, H)

    groups = [jnp.pad(seq_add, ((0, 8 - SEQ), (0, LANES - HIDDEN)))]
    for l in layers:
        groups.append(jnp.concatenate(
            [row(l["ln1_g"]), row(l["ln1_b"]), row(l["bo"]),
             row(l["ln2_g"]), row(l["ln2_b"]),
             row(l["b_fc1"]), row(l["b_fc2"]),
             jnp.zeros((1, LANES), f32)], axis=0))
    groups.append(jnp.concatenate(
        [row(params["ln_f_g"]), row(params["ln_f_b"]), row(params["cls_b"]),
         jnp.zeros((5, LANES), f32)], axis=0))
    vecs = jnp.concatenate(groups, axis=0)                           # (NV, 128)

    # per-head attention weights/biases; 1/sqrt(Dh) folded into Q weight & bias
    def attn_w(l):
        heads = []
        for hd in range(N_HEADS):
            sl = slice(hd * HEAD_DIM, (hd + 1) * HEAD_DIM)
            heads.append(jnp.stack(
                [l["wq"][:, sl] * scale, l["wk"][:, sl], l["wv"][:, sl],
                 l["wo"][sl, :].T], axis=0))                         # (4, H, Dh)
        return jnp.stack(heads, axis=0)                              # (NH, 4, H, Dh)

    def attn_b(l):
        heads = []
        for hd in range(N_HEADS):
            sl = slice(hd * HEAD_DIM, (hd + 1) * HEAD_DIM)
            heads.append(jnp.stack(
                [(l["bq"][sl] * scale).reshape(1, HEAD_DIM),
                 l["bk"][sl].reshape(1, HEAD_DIM),
                 l["bv"][sl].reshape(1, HEAD_DIM)], axis=0))         # (3, 1, Dh)
        return jnp.stack(heads, axis=0)                              # (NH, 3, 1, Dh)

    w_attn = jnp.stack([attn_w(l) for l in layers], axis=0).astype(bf16)
    b_qkv = jnp.stack([attn_b(l) for l in layers], axis=0).astype(f32)

    # MLP slab: W_fc1 on top (full 128 lanes), W_fc2 below (lane-padded to 128)
    def mlp_w(l):
        return jnp.concatenate(
            [l["w_fc1"],
             jnp.pad(l["w_fc2"], ((0, 0), (0, LANES - HIDDEN)))], axis=0)
    w_mlp = jnp.stack([mlp_w(l) for l in layers], axis=0).astype(bf16)  # (L, H+I, 128)

    # global weights: patch embedding + classifier, stacked along rows
    w_global = jnp.concatenate(
        [jnp.pad(params["patch_w"], ((0, 0), (0, LANES - HIDDEN))),
         jnp.pad(params["cls_w"], ((0, 0), (0, LANES - NUM_LABELS)))],
        axis=0).astype(bf16)                                         # (CPP+H, 128)

    return {"vecs": vecs, "w_attn": w_attn, "b_qkv": b_qkv,
            "w_mlp": w_mlp, "w_global": w_global}


# ----------------------------------------------------------------------------
# Forward pass: XLA does only patchify layout glue; all math in ONE kernel
# ----------------------------------------------------------------------------
def vit_forward(packed, pixel_values, labels):
    Bx = pixel_values.shape[0]
    nh = IMG // PATCH

    # patchify (pure layout); zero [CLS] row keeps a uniform (SEQ, CPP) slab per
    # batch element (its content comes from the pre-folded vecs slab in-kernel;
    # the extra zero row is free since sublanes pad to 8 anyway).
    patches = pixel_values.reshape(Bx, C, nh, PATCH, nh, PATCH)
    patches = patches.transpose(0, 2, 4, 1, 3, 5).reshape(Bx, N_PATCHES, CPP)
    emb_in = jnp.pad(patches, ((0, 0), (1, 0), (0, 0)))              # (B, SEQ, CPP)
    labels_i32 = labels.astype(jnp.int32).reshape(Bx)
    # TODO(synk): embedding/attention/MLP dropout layers are identity (eval semantics).

    grid_spec = pltpu.PrefetchScalarGridSpec(
        num_scalar_prefetch=1,            # labels -> SMEM
        grid=(Bx,),
        in_specs=[
            pl.BlockSpec((None, SEQ, CPP), lambda b, lbl: (b, 0, 0)),
            pl.BlockSpec((NV, LANES), lambda b, lbl: (0, 0)),
            pl.BlockSpec((N_LAYERS, N_HEADS, 4, HIDDEN, HEAD_DIM),
                         lambda b, lbl: (0, 0, 0, 0, 0)),
            pl.BlockSpec((N_LAYERS, N_HEADS, 3, 1, HEAD_DIM),
                         lambda b, lbl: (0, 0, 0, 0, 0)),
            pl.BlockSpec((N_LAYERS, HIDDEN + INTERMEDIATE, LANES),
                         lambda b, lbl: (0, 0, 0)),
            pl.BlockSpec((CPP + HIDDEN, LANES), lambda b, lbl: (0, 0)),
        ],
        out_specs=(
            pl.BlockSpec((None, 1, NUM_LABELS), lambda b, lbl: (b, 0, 0)),
            pl.BlockSpec((None, 1, 1), lambda b, lbl: (b, 0, 0)),
        ),
    )

    logits3, loss3 = pl.pallas_call(
        _vit_fused_kernel,
        grid_spec=grid_spec,
        out_shape=(jax.ShapeDtypeStruct((Bx, 1, NUM_LABELS), jnp.float32),
                   jax.ShapeDtypeStruct((Bx, 1, 1), jnp.float32)),
        compiler_params=pltpu.CompilerParams(
            dimension_semantics=("parallel",),        # batch across TCs on v7x
            vmem_limit_bytes=32 * 1024 * 1024),
    )(labels_i32, emb_in, packed["vecs"], packed["w_attn"], packed["b_qkv"],
      packed["w_mlp"], packed["w_global"])

    logits = logits3.reshape(Bx, NUM_LABELS)
    loss = jnp.mean(loss3)                           # CrossEntropyLoss 'mean'
    return loss, logits


# ----------------------------------------------------------------------------
if __name__ == "__main__":
    key = jax.random.PRNGKey(0)
    pkey, xkey, lkey = jax.random.split(key, 3)

    params = init_params(pkey)
    packed = pack_params(params)        # one-time packing, outside the jitted forward
    pixel_values = jax.random.normal(xkey, (B, C, IMG, IMG), dtype=jnp.float32)  # NCHW
    labels = jax.random.randint(lkey, (B,), 0, NUM_LABELS)

    loss, logits = jax.jit(vit_forward)(packed, pixel_values, labels)
    jax.block_until_ready((loss, logits))
    assert logits.shape == (B, NUM_LABELS)
    assert loss.shape == ()
    print("KERNEL_OK")
</pallas_src>

<mosaic_0001>
module attributes {stable_mosaic.version = 11 : i64} {
  func.func @_vit_fused_kernel(%arg0: i32, %arg1: memref<2xi32, #tpu.memory_space<smem>>, %arg2: memref<1x5x192xf32, #tpu.memory_space<vmem>>, %arg3: memref<32x128xf32, #tpu.memory_space<vmem>>, %arg4: memref<2x2x4x64x32xbf16, #tpu.memory_space<vmem>>, %arg5: memref<2x2x3x1x32xf32, #tpu.memory_space<vmem>>, %arg6: memref<2x192x128xbf16, #tpu.memory_space<vmem>>, %arg7: memref<256x128xbf16, #tpu.memory_space<vmem>>, %arg8: memref<1x1x10xf32, #tpu.memory_space<vmem>>, %arg9: memref<1x1x1xf32, #tpu.memory_space<vmem>>) attributes {dimension_semantics = [#tpu.dimension_semantics<parallel>], iteration_bounds = array<i64: 2>, scalar_prefetch = 1 : i64, scratch_operands = 0 : i64, tpu.core_type = #tpu.core_type<tc>, window_params = [{transform_indices = @transform_0, window_bounds = array<i64: 1, 5, 192>}, {pipeline_mode = #tpu.pipeline_mode<synchronous>, transform_indices = @transform_1, window_bounds = array<i64: 32, 128>}, {pipeline_mode = #tpu.pipeline_mode<synchronous>, transform_indices = @transform_2, window_bounds = array<i64: 2, 2, 4, 64, 32>}, {pipeline_mode = #tpu.pipeline_mode<synchronous>, transform_indices = @transform_3, window_bounds = array<i64: 2, 2, 3, 1, 32>}, {pipeline_mode = #tpu.pipeline_mode<synchronous>, transform_indices = @transform_4, window_bounds = array<i64: 2, 192, 128>}, {pipeline_mode = #tpu.pipeline_mode<synchronous>, transform_indices = @transform_5, window_bounds = array<i64: 256, 128>}, {transform_indices = @transform_6, window_bounds = array<i64: 1, 1, 10>}, {transform_indices = @transform_7, window_bounds = array<i64: 1, 1, 1>}]} {
    %c0 = arith.constant 0 : index
    %c0_0 = arith.constant 0 : index
    %0 = vector.load %arg7[%c0, %c0_0] : memref<256x128xbf16, #tpu.memory_space<vmem>>, vector<192x64xbf16>
    %c0_1 = arith.constant 0 : index
    %c0_2 = arith.constant 0 : index
    %c0_3 = arith.constant 0 : index
    %1 = vector.load %arg2[%c0_1, %c0_2, %c0_3] : memref<1x5x192xf32, #tpu.memory_space<vmem>>, vector<1x5x192xf32>
    %2 = vector.shape_cast %1 : vector<1x5x192xf32> to vector<5x192xf32>
    %3 = arith.truncf %2 : vector<5x192xf32> to vector<5x192xbf16>
    %cst = arith.constant dense<0.000000e+00> : vector<5x64xf32>
    %4 = tpu.matmul %3, %0, %cst {dimension_numbers = #tpu.dot_dimension_numbers<[1], [0], [0], [1], [0, 0, 1, 1], [], []>} : vector<5x192xbf16>, vector<192x64xbf16>, vector<5x64xf32> -> vector<5x64xf32>
    %c0_4 = arith.constant 0 : index
    %c0_5 = arith.constant 0 : index
    %5 = vector.load %arg3[%c0_4, %c0_5] : memref<32x128xf32, #tpu.memory_space<vmem>>, vector<5x64xf32>
    %6 = arith.addf %4, %5 : vector<5x64xf32>
    %c8 = arith.constant 8 : index
    %c0_6 = arith.constant 0 : index
    %7 = vector.load %arg3[%c8, %c0_6] : memref<32x128xf32, #tpu.memory_space<vmem>>, vector<1x64xf32>
    %c9 = arith.constant 9 : index
    %c0_7 = arith.constant 0 : index
    %8 = vector.load %arg3[%c9, %c0_7] : memref<32x128xf32, #tpu.memory_space<vmem>>, vector<1x64xf32>
    %cst_8 = arith.constant dense<0.000000e+00> : vector<5xf32>
    %9 = vector.multi_reduction <add>, %6, %cst_8 [1] : vector<5x64xf32> to vector<5xf32>
    %10 = vector.shape_cast %9 : vector<5xf32> to vector<5x1xf32>
    %cst_9 = arith.constant 6.400000e+01 : f32
    %11 = vector.broadcast %cst_9 : f32 to vector<5x1xf32>
    %12 = arith.divf %10, %11 : vector<5x1xf32>
    %13 = vector.broadcast %12 : vector<5x1xf32> to vector<5x64xf32>
    %14 = arith.subf %6, %13 : vector<5x64xf32>
    %15 = arith.mulf %14, %14 : vector<5x64xf32>
    %cst_10 = arith.constant dense<0.000000e+00> : vector<5xf32>
    %16 = vector.multi_reduction <add>, %15, %cst_10 [1] : vector<5x64xf32> to vector<5xf32>
    %17 = vector.shape_cast %16 : vector<5xf32> to vector<5x1xf32>
    %cst_11 = arith.constant 6.400000e+01 : f32
    %18 = vector.broadcast %cst_11 : f32 to vector<5x1xf32>
    %19 = arith.divf %17, %18 : vector<5x1xf32>
    %cst_12 = arith.constant 9.99999996E-13 : f32
    %20 = vector.broadcast %cst_12 : f32 to vector<5x1xf32>
    %21 = arith.addf %19, %20 : vector<5x1xf32>
    %22 = math.rsqrt %21 : vector<5x1xf32>
    %23 = vector.broadcast %22 : vector<5x1xf32> to vector<5x64xf32>
    %24 = arith.mulf %14, %23 : vector<5x64xf32>
    %25 = vector.broadcast %7 : vector<1x64xf32> to vector<5x64xf32>
    %26 = arith.mulf %24, %25 : vector<5x64xf32>
    %27 = vector.broadcast %8 : vector<1x64xf32> to vector<5x64xf32>
    %28 = arith.addf %26, %27 : vector<5x64xf32>
    %29 = arith.truncf %28 : vector<5x64xf32> to vector<5x64xbf16>
    %c0_13 = arith.constant 0 : index
    %c0_14 = arith.constant 0 : index
    %c0_15 = arith.constant 0 : index
    %c0_16 = arith.constant 0 : index
    %c0_17 = arith.constant 0 : index
    %30 = vector.load %arg4[%c0_13, %c0_14, %c0_15, %c0_16, %c0_17] : memref<2x2x4x64x32xbf16, #tpu.memory_space<vmem>>, vector<1x1x1x64x32xbf16>
    %31 = vector.shape_cast %30 : vector<1x1x1x64x32xbf16> to vector<64x32xbf16>
    %cst_18 = arith.constant dense<0.000000e+00> : vector<5x32xf32>
    %32 = tpu.matmul %29, %31, %cst_18 {dimension_numbers = #tpu.dot_dimension_numbers<[1], [0], [0], [1], [0, 0, 1, 1], [], []>} : vector<5x64xbf16>, vector<64x32xbf16>, vector<5x32xf32> -> vector<5x32xf32>
    %c0_19 = arith.constant 0 : index
    %c0_20 = arith.constant 0 : index
    %c0_21 = arith.constant 0 : index
    %c0_22 = arith.constant 0 : index
    %c0_23 = arith.constant 0 : index
    %33 = vector.load %arg5[%c0_19, %c0_20, %c0_21, %c0_22, %c0_23] : memref<2x2x3x1x32xf32, #tpu.memory_space<vmem>>, vector<1x1x1x1x32xf32>
    %34 = vector.shape_cast %33 : vector<1x1x1x1x32xf32> to vector<1x32xf32>
    %35 = vector.broadcast %34 : vector<1x32xf32> to vector<5x32xf32>
    %36 = arith.addf %32, %35 : vector<5x32xf32>
    %c0_24 = arith.constant 0 : index
    %c0_25 = arith.constant 0 : index
    %c1 = arith.constant 1 : index
    %c0_26 = arith.constant 0 : index
    %c0_27 = arith.constant 0 : index
    %37 = vector.load %arg4[%c0_24, %c0_25, %c1, %c0_26, %c0_27] : memref<2x2x4x64x32xbf16, #tpu.memory_space<vmem>>, vector<1x1x1x64x32xbf16>
    %38 = vector.shape_cast %37 : vector<1x1x1x64x32xbf16> to vector<64x32xbf16>
    %cst_28 = arith.constant dense<0.000000e+00> : vector<5x32xf32>
    %39 = tpu.matmul %29, %38, %cst_28 {dimension_numbers = #tpu.dot_dimension_numbers<[1], [0], [0], [1], [0, 0, 1, 1], [], []>} : vector<5x64xbf16>, vector<64x32xbf16>, vector<5x32xf32> -> vector<5x32xf32>
    %c0_29 = arith.constant 0 : index
    %c0_30 = arith.constant 0 : index
    %c1_31 = arith.constant 1 : index
    %c0_32 = arith.constant 0 : index
    %c0_33 = arith.constant 0 : index
    %40 = vector.load %arg5[%c0_29, %c0_30, %c1_31, %c0_32, %c0_33] : memref<2x2x3x1x32xf32, #tpu.memory_space<vmem>>, vector<1x1x1x1x32xf32>
    %41 = vector.shape_cast %40 : vector<1x1x1x1x32xf32> to vector<1x32xf32>
    %42 = vector.broadcast %41 : vector<1x32xf32> to vector<5x32xf32>
    %43 = arith.addf %39, %42 : vector<5x32xf32>
    %c0_34 = arith.constant 0 : index
    %c0_35 = arith.constant 0 : index
    %c2 = arith.constant 2 : index
    %c0_36 = arith.constant 0 : index
    %c0_37 = arith.constant 0 : index
    %44 = vector.load %arg4[%c0_34, %c0_35, %c2, %c0_36, %c0_37] : memref<2x2x4x64x32xbf16, #tpu.memory_space<vmem>>, vector<1x1x1x64x32xbf16>
    %45 = vector.shape_cast %44 : vector<1x1x1x64x32xbf16> to vector<64x32xbf16>
    %cst_38 = arith.constant dense<0.000000e+00> : vector<5x32xf32>
    %46 = tpu.matmul %29, %45, %cst_38 {dimension_numbers = #tpu.dot_dimension_numbers<[1], [0], [0], [1], [0, 0, 1, 1], [], []>} : vector<5x64xbf16>, vector<64x32xbf16>, vector<5x32xf32> -> vector<5x32xf32>
    %c0_39 = arith.constant 0 : index
    %c0_40 = arith.constant 0 : index
    %c2_41 = arith.constant 2 : index
    %c0_42 = arith.constant 0 : index
    %c0_43 = arith.constant 0 : index
    %47 = vector.load %arg5[%c0_39, %c0_40, %c2_41, %c0_42, %c0_43] : memref<2x2x3x1x32xf32, #tpu.memory_space<vmem>>, vector<1x1x1x1x32xf32>
    %48 = vector.shape_cast %47 : vector<1x1x1x1x32xf32> to vector<1x32xf32>
    %49 = vector.broadcast %48 : vector<1x32xf32> to vector<5x32xf32>
    %50 = arith.addf %46, %49 : vector<5x32xf32>
    %cst_44 = arith.constant dense<0.000000e+00> : vector<5x5xf32>
    %51 = tpu.matmul %36, %43, %cst_44 {dimension_numbers = #tpu.dot_dimension_numbers<[1], [1], [0], [0], [0, 0, 1, 0], [], []>} : vector<5x32xf32>, vector<5x32xf32>, vector<5x5xf32> -> vector<5x5xf32>
    %cst_45 = arith.constant dense<0xFF800000> : vector<5xf32>
    %52 = vector.multi_reduction <maximumf>, %51, %cst_45 [1] : vector<5x5xf32> to vector<5xf32>
    %53 = vector.shape_cast %52 : vector<5xf32> to vector<5x1xf32>
    %54 = vector.broadcast %53 : vector<5x1xf32> to vector<5x5xf32>
    %55 = arith.subf %51, %54 : vector<5x5xf32>
    %56 = math.exp %55 : vector<5x5xf32>
    %cst_46 = arith.constant dense<0.000000e+00> : vector<5xf32>
    %57 = vector.multi_reduction <add>, %56, %cst_46 [1] : vector<5x5xf32> to vector<5xf32>
    %58 = vector.shape_cast %57 : vector<5xf32> to vector<5x1xf32>
    %59 = vector.broadcast %58 : vector<5x1xf32> to vector<5x5xf32>
    %60 = arith.divf %56, %59 : vector<5x5xf32>
    %cst_47 = arith.constant dense<0.000000e+00> : vector<5x32xf32>
    %61 = tpu.matmul %60, %50, %cst_47 {dimension_numbers = #tpu.dot_dimension_numbers<[1], [0], [0], [1], [0, 0, 1, 1], [], []>} : vector<5x5xf32>, vector<5x32xf32>, vector<5x32xf32> -> vector<5x32xf32>
    %62 = arith.truncf %61 : vector<5x32xf32> to vector<5x32xbf16>
    %c0_48 = arith.constant 0 : index
    %c0_49 = arith.constant 0 : index
    %c3 = arith.constant 3 : index
    %c0_50 = arith.constant 0 : index
    %c0_51 = arith.constant 0 : index
    %63 = vector.load %arg4[%c0_48, %c0_49, %c3, %c0_50, %c0_51] : memref<2x2x4x64x32xbf16, #tpu.memory_space<vmem>>, vector<1x1x1x64x32xbf16>
    %64 = vector.shape_cast %63 : vector<1x1x1x64x32xbf16> to vector<64x32xbf16>
    %cst_52 = arith.constant dense<0.000000e+00> : vector<5x64xf32>
    %65 = tpu.matmul %62, %64, %cst_52 {dimension_numbers = #tpu.dot_dimension_numbers<[1], [1], [0], [0], [0, 0, 1, 0], [], []>} : vector<5x32xbf16>, vector<64x32xbf16>, vector<5x64xf32> -> vector<5x64xf32>
    %c0_53 = arith.constant 0 : index
    %c1_54 = arith.constant 1 : index
    %c0_55 = arith.constant 0 : index
    %c0_56 = arith.constant 0 : index
    %c0_57 = arith.constant 0 : index
    %66 = vector.load %arg4[%c0_53, %c1_54, %c0_55, %c0_56, %c0_57] : memref<2x2x4x64x32xbf16, #tpu.memory_space<vmem>>, vector<1x1x1x64x32xbf16>
    %67 = vector.shape_cast %66 : vector<1x1x1x64x32xbf16> to vector<64x32xbf16>
    %cst_58 = arith.constant dense<0.000000e+00> : vector<5x32xf32>
    %68 = tpu.matmul %29, %67, %cst_58 {dimension_numbers = #tpu.dot_dimension_numbers<[1], [0], [0], [1], [0, 0, 1, 1], [], []>} : vector<5x64xbf16>, vector<64x32xbf16>, vector<5x32xf32> -> vector<5x32xf32>
    %c0_59 = arith.constant 0 : index
    %c1_60 = arith.constant 1 : index
    %c0_61 = arith.constant 0 : index
    %c0_62 = arith.constant 0 : index
    %c0_63 = arith.constant 0 : index
    %69 = vector.load %arg5[%c0_59, %c1_60, %c0_61, %c0_62, %c0_63] : memref<2x2x3x1x32xf32, #tpu.memory_space<vmem>>, vector<1x1x1x1x32xf32>
    %70 = vector.shape_cast %69 : vector<1x1x1x1x32xf32> to vector<1x32xf32>
    %71 = vector.broadcast %70 : vector<1x32xf32> to vector<5x32xf32>
    %72 = arith.addf %68, %71 : vector<5x32xf32>
    %c0_64 = arith.constant 0 : index
    %c1_65 = arith.constant 1 : index
    %c1_66 = arith.constant 1 : index
    %c0_67 = arith.constant 0 : index
    %c0_68 = arith.constant 0 : index
    %73 = vector.load %arg4[%c0_64, %c1_65, %c1_66, %c0_67, %c0_68] : memref<2x2x4x64x32xbf16, #tpu.memory_space<vmem>>, vector<1x1x1x64x32xbf16>
    %74 = vector.shape_cast %73 : vector<1x1x1x64x32xbf16> to vector<64x32xbf16>
    %cst_69 = arith.constant dense<0.000000e+00> : vector<5x32xf32>
    %75 = tpu.matmul %29, %74, %cst_69 {dimension_numbers = #tpu.dot_dimension_numbers<[1], [0], [0], [1], [0, 0, 1, 1], [], []>} : vector<5x64xbf16>, vector<64x32xbf16>, vector<5x32xf32> -> vector<5x32xf32>
    %c0_70 = arith.constant 0 : index
    %c1_71 = arith.constant 1 : index
    %c1_72 = arith.constant 1 : index
    %c0_73 = arith.constant 0 : index
    %c0_74 = arith.constant 0 : index
    %76 = vector.load %arg5[%c0_70, %c1_71, %c1_72, %c0_73, %c0_74] : memref<2x2x3x1x32xf32, #tpu.memory_space<vmem>>, vector<1x1x1x1x32xf32>
    %77 = vector.shape_cast %76 : vector<1x1x1x1x32xf32> to vector<1x32xf32>
    %78 = vector.broadcast %77 : vector<1x32xf32> to vector<5x32xf32>
    %79 = arith.addf %75, %78 : vector<5x32xf32>
    %c0_75 = arith.constant 0 : index
    %c1_76 = arith.constant 1 : index
    %c2_77 = arith.constant 2 : index
    %c0_78 = arith.constant 0 : index
    %c0_79 = arith.constant 0 : index
    %80 = vector.load %arg4[%c0_75, %c1_76, %c2_77, %c0_78, %c0_79] : memref<2x2x4x64x32xbf16, #tpu.memory_space<vmem>>, vector<1x1x1x64x32xbf16>
    %81 = vector.shape_cast %80 : vector<1x1x1x64x32xbf16> to vector<64x32xbf16>
    %cst_80 = arith.constant dense<0.000000e+00> : vector<5x32xf32>
    %82 = tpu.matmul %29, %81, %cst_80 {dimension_numbers = #tpu.dot_dimension_numbers<[1], [0], [0], [1], [0, 0, 1, 1], [], []>} : vector<5x64xbf16>, vector<64x32xbf16>, vector<5x32xf32> -> vector<5x32xf32>
    %c0_81 = arith.constant 0 : index
    %c1_82 = arith.constant 1 : index
    %c2_83 = arith.constant 2 : index
    %c0_84 = arith.constant 0 : index
    %c0_85 = arith.constant 0 : index
    %83 = vector.load %arg5[%c0_81, %c1_82, %c2_83, %c0_84, %c0_85] : memref<2x2x3x1x32xf32, #tpu.memory_space<vmem>>, vector<1x1x1x1x32xf32>
    %84 = vector.shape_cast %83 : vector<1x1x1x1x32xf32> to vector<1x32xf32>
    %85 = vector.broadcast %84 : vector<1x32xf32> to vector<5x32xf32>
    %86 = arith.addf %82, %85 : vector<5x32xf32>
    %cst_86 = arith.constant dense<0.000000e+00> : vector<5x5xf32>
    %87 = tpu.matmul %72, %79, %cst_86 {dimension_numbers = #tpu.dot_dimension_numbers<[1], [1], [0], [0], [0, 0, 1, 0], [], []>} : vector<5x32xf32>, vector<5x32xf32>, vector<5x5xf32> -> vector<5x5xf32>
    %cst_87 = arith.constant dense<0xFF800000> : vector<5xf32>
    %88 = vector.multi_reduction <maximumf>, %87, %cst_87 [1] : vector<5x5xf32> to vector<5xf32>
    %89 = vector.shape_cast %88 : vector<5xf32> to vector<5x1xf32>
    %90 = vector.broadcast %89 : vector<5x1xf32> to vector<5x5xf32>
    %91 = arith.subf %87, %90 : vector<5x5xf32>
    %92 = math.exp %91 : vector<5x5xf32>
    %cst_88 = arith.constant dense<0.000000e+00> : vector<5xf32>
    %93 = vector.multi_reduction <add>, %92, %cst_88 [1] : vector<5x5xf32> to vector<5xf32>
    %94 = vector.shape_cast %93 : vector<5xf32> to vector<5x1xf32>
    %95 = vector.broadcast %94 : vector<5x1xf32> to vector<5x5xf32>
    %96 = arith.divf %92, %95 : vector<5x5xf32>
    %cst_89 = arith.constant dense<0.000000e+00> : vector<5x32xf32>
    %97 = tpu.matmul %96, %86, %cst_89 {dimension_numbers = #tpu.dot_dimension_numbers<[1], [0], [0], [1], [0, 0, 1, 1], [], []>} : vector<5x5xf32>, vector<5x32xf32>, vector<5x32xf32> -> vector<5x32xf32>
    %98 = arith.truncf %97 : vector<5x32xf32> to vector<5x32xbf16>
    %c0_90 = arith.constant 0 : index
    %c1_91 = arith.constant 1 : index
    %c3_92 = arith.constant 3 : index
    %c0_93 = arith.constant 0 : index
    %c0_94 = arith.constant 0 : index
    %99 = vector.load %arg4[%c0_90, %c1_91, %c3_92, %c0_93, %c0_94] : memref<2x2x4x64x32xbf16, #tpu.memory_space<vmem>>, vector<1x1x1x64x32xbf16>
    %100 = vector.shape_cast %99 : vector<1x1x1x64x32xbf16> to vector<64x32xbf16>
    %cst_95 = arith.constant dense<0.000000e+00> : vector<5x64xf32>
    %101 = tpu.matmul %98, %100, %cst_95 {dimension_numbers = #tpu.dot_dimension_numbers<[1], [1], [0], [0], [0, 0, 1, 0], [], []>} : vector<5x32xbf16>, vector<64x32xbf16>, vector<5x64xf32> -> vector<5x64xf32>
    %102 = arith.addf %65, %101 : vector<5x64xf32>
    %103 = arith.addf %6, %102 : vector<5x64xf32>
    %c10 = arith.constant 10 : index
    %c0_96 = arith.constant 0 : index
    %104 = vector.load %arg3[%c10, %c0_96] : memref<32x128xf32, #tpu.memory_space<vmem>>, vector<1x64xf32>
    %105 = vector.broadcast %104 : vector<1x64xf32> to vector<5x64xf32>
    %106 = arith.addf %103, %105 : vector<5x64xf32>
    %c11 = arith.constant 11 : index
    %c0_97 = arith.constant 0 : index
    %107 = vector.load %arg3[%c11, %c0_97] : memref<32x128xf32, #tpu.memory_space<vmem>>, vector<1x64xf32>
    %c12 = arith.constant 12 : index
    %c0_98 = arith.constant 0 : index
    %108 = vector.load %arg3[%c12, %c0_98] : memref<32x128xf32, #tpu.memory_space<vmem>>, vector<1x64xf32>
    %cst_99 = arith.constant dense<0.000000e+00> : vector<5xf32>
    %109 = vector.multi_reduction <add>, %106, %cst_99 [1] : vector<5x64xf32> to vector<5xf32>
    %110 = vector.shape_cast %109 : vector<5xf32> to vector<5x1xf32>
    %cst_100 = arith.constant 6.400000e+01 : f32
    %111 = vector.broadcast %cst_100 : f32 to vector<5x1xf32>
    %112 = arith.divf %110, %111 : vector<5x1xf32>
    %113 = vector.broadcast %112 : vector<5x1xf32> to vector<5x64xf32>
    %114 = arith.subf %106, %113 : vector<5x64xf32>
    %115 = arith.mulf %114, %114 : vector<5x64xf32>
    %cst_101 = arith.constant dense<0.000000e+00> : vector<5xf32>
    %116 = vector.multi_reduction <add>, %115, %cst_101 [1] : vector<5x64xf32> to vector<5xf32>
    %117 = vector.shape_cast %116 : vector<5xf32> to vector<5x1xf32>
    %cst_102 = arith.constant 6.400000e+01 : f32
    %118 = vector.broadcast %cst_102 : f32 to vector<5x1xf32>
    %119 = arith.divf %117, %118 : vector<5x1xf32>
    %cst_103 = arith.constant 9.99999996E-13 : f32
    %120 = vector.broadcast %cst_103 : f32 to vector<5x1xf32>
    %121 = arith.addf %119, %120 : vector<5x1xf32>
    %122 = math.rsqrt %121 : vector<5x1xf32>
    %123 = vector.broadcast %122 : vector<5x1xf32> to vector<5x64xf32>
    %124 = arith.mulf %114, %123 : vector<5x64xf32>
    %125 = vector.broadcast %107 : vector<1x64xf32> to vector<5x64xf32>
    %126 = arith.mulf %124, %125 : vector<5x64xf32>
    %127 = vector.broadcast %108 : vector<1x64xf32> to vector<5x64xf32>
    %128 = arith.addf %126, %127 : vector<5x64xf32>
    %129 = arith.truncf %128 : vector<5x64xf32> to vector<5x64xbf16>
    %c0_104 = arith.constant 0 : index
    %c0_105 = arith.constant 0 : index
    %c0_106 = arith.constant 0 : index
    %130 = vector.load %arg6[%c0_104, %c0_105, %c0_106] : memref<2x192x128xbf16, #tpu.memory_space<vmem>>, vector<1x64x128xbf16>
    %131 = vector.shape_cast %130 : vector<1x64x128xbf16> to vector<64x128xbf16>
    %cst_107 = arith.constant dense<0.000000e+00> : vector<5x128xf32>
    %132 = tpu.matmul %129, %131, %cst_107 {dimension_numbers = #tpu.dot_dimension_numbers<[1], [0], [0], [1], [0, 0, 1, 1], [], []>} : vector<5x64xbf16>, vector<64x128xbf16>, vector<5x128xf32> -> vector<5x128xf32>
    %c13 = arith.constant 13 : index
    %c0_108 = arith.constant 0 : index
    %133 = vector.load %arg3[%c13, %c0_108] : memref<32x128xf32, #tpu.memory_space<vmem>>, vector<1x128xf32>
    %134 = vector.broadcast %133 : vector<1x128xf32> to vector<5x128xf32>
    %135 = arith.addf %132, %134 : vector<5x128xf32>
    %cst_109 = arith.constant 5.000000e-01 : f32
    %136 = vector.broadcast %cst_109 : f32 to vector<5x128xf32>
    %137 = arith.mulf %136, %135 : vector<5x128xf32>
    %cst_110 = arith.constant 0.707106769 : f32
    %138 = vector.broadcast %cst_110 : f32 to vector<5x128xf32>
    %139 = arith.mulf %135, %138 : vector<5x128xf32>
    %140 = math.erf %139 : vector<5x128xf32>
    %cst_111 = arith.constant 1.000000e+00 : f32
    %141 = vector.broadcast %cst_111 : f32 to vector<5x128xf32>
    %142 = arith.addf %141, %140 : vector<5x128xf32>
    %143 = arith.mulf %137, %142 : vector<5x128xf32>
    %144 = arith.truncf %143 : vector<5x128xf32> to vector<5x128xbf16>
    %c0_112 = arith.constant 0 : index
    %c64 = arith.constant 64 : index
    %c0_113 = arith.constant 0 : index
    %145 = vector.load %arg6[%c0_112, %c64, %c0_113] : memref<2x192x128xbf16, #tpu.memory_space<vmem>>, vector<1x128x64xbf16>
    %146 = vector.shape_cast %145 : vector<1x128x64xbf16> to vector<128x64xbf16>
    %cst_114 = arith.constant dense<0.000000e+00> : vector<5x64xf32>
    %147 = tpu.matmul %144, %146, %cst_114 {dimension_numbers = #tpu.dot_dimension_numbers<[1], [0], [0], [1], [0, 0, 1, 1], [], []>} : vector<5x128xbf16>, vector<128x64xbf16>, vector<5x64xf32> -> vector<5x64xf32>
    %148 = arith.addf %106, %147 : vector<5x64xf32>
    %c14 = arith.constant 14 : index
    %c0_115 = arith.constant 0 : index
    %149 = vector.load %arg3[%c14, %c0_115] : memref<32x128xf32, #tpu.memory_space<vmem>>, vector<1x64xf32>
    %150 = vector.broadcast %149 : vector<1x64xf32> to vector<5x64xf32>
    %151 = arith.addf %148, %150 : vector<5x64xf32>
    %c16 = arith.constant 16 : index
    %c0_116 = arith.constant 0 : index
    %152 = vector.load %arg3[%c16, %c0_116] : memref<32x128xf32, #tpu.memory_space<vmem>>, vector<1x64xf32>
    %c17 = arith.constant 17 : index
    %c0_117 = arith.constant 0 : index
    %153 = vector.load %arg3[%c17, %c0_117] : memref<32x128xf32, #tpu.memory_space<vmem>>, vector<1x64xf32>
    %cst_118 = arith.constant dense<0.000000e+00> : vector<5xf32>
    %154 = vector.multi_reduction <add>, %151, %cst_118 [1] : vector<5x64xf32> to vector<5xf32>
    %155 = vector.shape_cast %154 : vector<5xf32> to vector<5x1xf32>
    %cst_119 = arith.constant 6.400000e+01 : f32
    %156 = vector.broadcast %cst_119 : f32 to vector<5x1xf32>
    %157 = arith.divf %155, %156 : vector<5x1xf32>
    %158 = vector.broadcast %157 : vector<5x1xf32> to vector<5x64xf32>
    %159 = arith.subf %151, %158 : vector<5x64xf32>
    %160 = arith.mulf %159, %159 : vector<5x64xf32>
    %cst_120 = arith.constant dense<0.000000e+00> : vector<5xf32>
    %161 = vector.multi_reduction <add>, %160, %cst_120 [1] : vector<5x64xf32> to vector<5xf32>
    %162 = vector.shape_cast %161 : vector<5xf32> to vector<5x1xf32>
    %cst_121 = arith.constant 6.400000e+01 : f32
    %163 = vector.broadcast %cst_121 : f32 to vector<5x1xf32>
    %164 = arith.divf %162, %163 : vector<5x1xf32>
    %cst_122 = arith.constant 9.99999996E-13 : f32
    %165 = vector.broadcast %cst_122 : f32 to vector<5x1xf32>
    %166 = arith.addf %164, %165 : vector<5x1xf32>
    %167 = math.rsqrt %166 : vector<5x1xf32>
    %168 = vector.broadcast %167 : vector<5x1xf32> to vector<5x64xf32>
    %169 = arith.mulf %159, %168 : vector<5x64xf32>
    %170 = vector.broadcast %152 : vector<1x64xf32> to vector<5x64xf32>
    %171 = arith.mulf %169, %170 : vector<5x64xf32>
    %172 = vector.broadcast %153 : vector<1x64xf32> to vector<5x64xf32>
    %173 = arith.addf %171, %172 : vector<5x64xf32>
    %174 = arith.truncf %173 : vector<5x64xf32> to vector<5x64xbf16>
    %c1_123 = arith.constant 1 : index
    %c0_124 = arith.constant 0 : index
    %c0_125 = arith.constant 0 : index
    %c0_126 = arith.constant 0 : index
    %c0_127 = arith.constant 0 : index
    %175 = vector.load %arg4[%c1_123, %c0_124, %c0_125, %c0_126, %c0_127] : memref<2x2x4x64x32xbf16, #tpu.memory_space<vmem>>, vector<1x1x1x64x32xbf16>
    %176 = vector.shape_cast %175 : vector<1x1x1x64x32xbf16> to vector<64x32xbf16>
    %cst_128 = arith.constant dense<0.000000e+00> : vector<5x32xf32>
    %177 = tpu.matmul %174, %176, %cst_128 {dimension_numbers = #tpu.dot_dimension_numbers<[1], [0], [0], [1], [0, 0, 1, 1], [], []>} : vector<5x64xbf16>, vector<64x32xbf16>, vector<5x32xf32> -> vector<5x32xf32>
    %c1_129 = arith.constant 1 : index
    %c0_130 = arith.constant 0 : index
    %c0_131 = arith.constant 0 : index
    %c0_132 = arith.constant 0 : index
    %c0_133 = arith.constant 0 : index
    %178 = vector.load %arg5[%c1_129, %c0_130, %c0_131, %c0_132, %c0_133] : memref<2x2x3x1x32xf32, #tpu.memory_space<vmem>>, vector<1x1x1x1x32xf32>
    %179 = vector.shape_cast %178 : vector<1x1x1x1x32xf32> to vector<1x32xf32>
    %180 = vector.broadcast %179 : vector<1x32xf32> to vector<5x32xf32>
    %181 = arith.addf %177, %180 : vector<5x32xf32>
    %c1_134 = arith.constant 1 : index
    %c0_135 = arith.constant 0 : index
    %c1_136 = arith.constant 1 : index
    %c0_137 = arith.constant 0 : index
    %c0_138 = arith.constant 0 : index
    %182 = vector.load %arg4[%c1_134, %c0_135, %c1_136, %c0_137, %c0_138] : memref<2x2x4x64x32xbf16, #tpu.memory_space<vmem>>, vector<1x1x1x64x32xbf16>
    %183 = vector.shape_cast %182 : vector<1x1x1x64x32xbf16> to vector<64x32xbf16>
    %cst_139 = arith.constant dense<0.000000e+00> : vector<5x32xf32>
    %184 = tpu.matmul %174, %183, %cst_139 {dimension_numbers = #tpu.dot_dimension_numbers<[1], [0], [0], [1], [0, 0, 1, 1], [], []>} : vector<5x64xbf16>, vector<64x32xbf16>, vector<5x32xf32> -> vector<5x32xf32>
    %c1_140 = arith.constant 1 : index
    %c0_141 = arith.constant 0 : index
    %c1_142 = arith.constant 1 : index
    %c0_143 = arith.constant 0 : index
    %c0_144 = arith.constant 0 : index
    %185 = vector.load %arg5[%c1_140, %c0_141, %c1_142, %c0_143, %c0_144] : memref<2x2x3x1x32xf32, #tpu.memory_space<vmem>>, vector<1x1x1x1x32xf32>
    %186 = vector.shape_cast %185 : vector<1x1x1x1x32xf32> to vector<1x32xf32>
    %187 = vector.broadcast %186 : vector<1x32xf32> to vector<5x32xf32>
    %188 = arith.addf %184, %187 : vector<5x32xf32>
    %c1_145 = arith.constant 1 : index
    %c0_146 = arith.constant 0 : index
    %c2_147 = arith.constant 2 : index
    %c0_148 = arith.constant 0 : index
    %c0_149 = arith.constant 0 : index
    %189 = vector.load %arg4[%c1_145, %c0_146, %c2_147, %c0_148, %c0_149] : memref<2x2x4x64x32xbf16, #tpu.memory_space<vmem>>, vector<1x1x1x64x32xbf16>
    %190 = vector.shape_cast %189 : vector<1x1x1x64x32xbf16> to vector<64x32xbf16>
    %cst_150 = arith.constant dense<0.000000e+00> : vector<5x32xf32>
    %191 = tpu.matmul %174, %190, %cst_150 {dimension_numbers = #tpu.dot_dimension_numbers<[1], [0], [0], [1], [0, 0, 1, 1], [], []>} : vector<5x64xbf16>, vector<64x32xbf16>, vector<5x32xf32> -> vector<5x32xf32>
    %c1_151 = arith.constant 1 : index
    %c0_152 = arith.constant 0 : index
    %c2_153 = arith.constant 2 : index
    %c0_154 = arith.constant 0 : index
    %c0_155 = arith.constant 0 : index
    %192 = vector.load %arg5[%c1_151, %c0_152, %c2_153, %c0_154, %c0_155] : memref<2x2x3x1x32xf32, #tpu.memory_space<vmem>>, vector<1x1x1x1x32xf32>
    %193 = vector.shape_cast %192 : vector<1x1x1x1x32xf32> to vector<1x32xf32>
    %194 = vector.broadcast %193 : vector<1x32xf32> to vector<5x32xf32>
    %195 = arith.addf %191, %194 : vector<5x32xf32>
    %cst_156 = arith.constant dense<0.000000e+00> : vector<5x5xf32>
    %196 = tpu.matmul %181, %188, %cst_156 {dimension_numbers = #tpu.dot_dimension_numbers<[1], [1], [0], [0], [0, 0, 1, 0], [], []>} : vector<5x32xf32>, vector<5x32xf32>, vector<5x5xf32> -> vector<5x5xf32>
    %cst_157 = arith.constant dense<0xFF800000> : vector<5xf32>
    %197 = vector.multi_reduction <maximumf>, %196, %cst_157 [1] : vector<5x5xf32> to vector<5xf32>
    %198 = vector.shape_cast %197 : vector<5xf32> to vector<5x1xf32>
    %199 = vector.broadcast %198 : vector<5x1xf32> to vector<5x5xf32>
    %200 = arith.subf %196, %199 : vector<5x5xf32>
    %201 = math.exp %200 : vector<5x5xf32>
    %cst_158 = arith.constant dense<0.000000e+00> : vector<5xf32>
    %202 = vector.multi_reduction <add>, %201, %cst_158 [1] : vector<5x5xf32> to vector<5xf32>
    %203 = vector.shape_cast %202 : vector<5xf32> to vector<5x1xf32>
    %204 = vector.broadcast %203 : vector<5x1xf32> to vector<5x5xf32>
    %205 = arith.divf %201, %204 : vector<5x5xf32>
    %cst_159 = arith.constant dense<0.000000e+00> : vector<5x32xf32>
    %206 = tpu.matmul %205, %195, %cst_159 {dimension_numbers = #tpu.dot_dimension_numbers<[1], [0], [0], [1], [0, 0, 1, 1], [], []>} : vector<5x5xf32>, vector<5x32xf32>, vector<5x32xf32> -> vector<5x32xf32>
    %207 = arith.truncf %206 : vector<5x32xf32> to vector<5x32xbf16>
    %c1_160 = arith.constant 1 : index
    %c0_161 = arith.constant 0 : index
    %c3_162 = arith.constant 3 : index
    %c0_163 = arith.constant 0 : index
    %c0_164 = arith.constant 0 : index
    %208 = vector.load %arg4[%c1_160, %c0_161, %c3_162, %c0_163, %c0_164] : memref<2x2x4x64x32xbf16, #tpu.memory_space<vmem>>, vector<1x1x1x64x32xbf16>
    %209 = vector.shape_cast %208 : vector<1x1x1x64x32xbf16> to vector<64x32xbf16>
    %cst_165 = arith.constant dense<0.000000e+00> : vector<5x64xf32>
    %210 = tpu.matmul %207, %209, %cst_165 {dimension_numbers = #tpu.dot_dimension_numbers<[1], [1], [0], [0], [0, 0, 1, 0], [], []>} : vector<5x32xbf16>, vector<64x32xbf16>, vector<5x64xf32> -> vector<5x64xf32>
    %c1_166 = arith.constant 1 : index
    %c1_167 = arith.constant 1 : index
    %c0_168 = arith.constant 0 : index
    %c0_169 = arith.constant 0 : index
    %c0_170 = arith.constant 0 : index
    %211 = vector.load %arg4[%c1_166, %c1_167, %c0_168, %c0_169, %c0_170] : memref<2x2x4x64x32xbf16, #tpu.memory_space<vmem>>, vector<1x1x1x64x32xbf16>
    %212 = vector.shape_cast %211 : vector<1x1x1x64x32xbf16> to vector<64x32xbf16>
    %cst_171 = arith.constant dense<0.000000e+00> : vector<5x32xf32>
    %213 = tpu.matmul %174, %212, %cst_171 {dimension_numbers = #tpu.dot_dimension_numbers<[1], [0], [0], [1], [0, 0, 1, 1], [], []>} : vector<5x64xbf16>, vector<64x32xbf16>, vector<5x32xf32> -> vector<5x32xf32>
    %c1_172 = arith.constant 1 : index
    %c1_173 = arith.constant 1 : index
    %c0_174 = arith.constant 0 : index
    %c0_175 = arith.constant 0 : index
    %c0_176 = arith.constant 0 : index
    %214 = vector.load %arg5[%c1_172, %c1_173, %c0_174, %c0_175, %c0_176] : memref<2x2x3x1x32xf32, #tpu.memory_space<vmem>>, vector<1x1x1x1x32xf32>
    %215 = vector.shape_cast %214 : vector<1x1x1x1x32xf32> to vector<1x32xf32>
    %216 = vector.broadcast %215 : vector<1x32xf32> to vector<5x32xf32>
    %217 = arith.addf %213, %216 : vector<5x32xf32>
    %c1_177 = arith.constant 1 : index
    %c1_178 = arith.constant 1 : index
    %c1_179 = arith.constant 1 : index
    %c0_180 = arith.constant 0 : index
    %c0_181 = arith.constant 0 : index
    %218 = vector.load %arg4[%c1_177, %c1_178, %c1_179, %c0_180, %c0_181] : memref<2x2x4x64x32xbf16, #tpu.memory_space<vmem>>, vector<1x1x1x64x32xbf16>
    %219 = vector.shape_cast %218 : vector<1x1x1x64x32xbf16> to vector<64x32xbf16>
    %cst_182 = arith.constant dense<0.000000e+00> : vector<5x32xf32>
    %220 = tpu.matmul %174, %219, %cst_182 {dimension_numbers = #tpu.dot_dimension_numbers<[1], [0], [0], [1], [0, 0, 1, 1], [], []>} : vector<5x64xbf16>, vector<64x32xbf16>, vector<5x32xf32> -> vector<5x32xf32>
    %c1_183 = arith.constant 1 : index
    %c1_184 = arith.constant 1 : index
    %c1_185 = arith.constant 1 : index
    %c0_186 = arith.constant 0 : index
    %c0_187 = arith.constant 0 : index
    %221 = vector.load %arg5[%c1_183, %c1_184, %c1_185, %c0_186, %c0_187] : memref<2x2x3x1x32xf32, #tpu.memory_space<vmem>>, vector<1x1x1x1x32xf32>
    %222 = vector.shape_cast %221 : vector<1x1x1x1x32xf32> to vector<1x32xf32>
    %223 = vector.broadcast %222 : vector<1x32xf32> to vector<5x32xf32>
    %224 = arith.addf %220, %223 : vector<5x32xf32>
    %c1_188 = arith.constant 1 : index
    %c1_189 = arith.constant 1 : index
    %c2_190 = arith.constant 2 : index
    %c0_191 = arith.constant 0 : index
    %c0_192 = arith.constant 0 : index
    %225 = vector.load %arg4[%c1_188, %c1_189, %c2_190, %c0_191, %c0_192] : memref<2x2x4x64x32xbf16, #tpu.memory_space<vmem>>, vector<1x1x1x64x32xbf16>
    %226 = vector.shape_cast %225 : vector<1x1x1x64x32xbf16> to vector<64x32xbf16>
    %cst_193 = arith.constant dense<0.000000e+00> : vector<5x32xf32>
    %227 = tpu.matmul %174, %226, %cst_193 {dimension_numbers = #tpu.dot_dimension_numbers<[1], [0], [0], [1], [0, 0, 1, 1], [], []>} : vector<5x64xbf16>, vector<64x32xbf16>, vector<5x32xf32> -> vector<5x32xf32>
    %c1_194 = arith.constant 1 : index
    %c1_195 = arith.constant 1 : index
    %c2_196 = arith.constant 2 : index
    %c0_197 = arith.constant 0 : index
    %c0_198 = arith.constant 0 : index
    %228 = vector.load %arg5[%c1_194, %c1_195, %c2_196, %c0_197, %c0_198] : memref<2x2x3x1x32xf32, #tpu.memory_space<vmem>>, vector<1x1x1x1x32xf32>
    %229 = vector.shape_cast %228 : vector<1x1x1x1x32xf32> to vector<1x32xf32>
    %230 = vector.broadcast %229 : vector<1x32xf32> to vector<5x32xf32>
    %231 = arith.addf %227, %230 : vector<5x32xf32>
    %cst_199 = arith.constant dense<0.000000e+00> : vector<5x5xf32>
    %232 = tpu.matmul %217, %224, %cst_199 {dimension_numbers = #tpu.dot_dimension_numbers<[1], [1], [0], [0], [0, 0, 1, 0], [], []>} : vector<5x32xf32>, vector<5x32xf32>, vector<5x5xf32> -> vector<5x5xf32>
    %cst_200 = arith.constant dense<0xFF800000> : vector<5xf32>
    %233 = vector.multi_reduction <maximumf>, %232, %cst_200 [1] : vector<5x5xf32> to vector<5xf32>
    %234 = vector.shape_cast %233 : vector<5xf32> to vector<5x1xf32>
    %235 = vector.broadcast %234 : vector<5x1xf32> to vector<5x5xf32>
    %236 = arith.subf %232, %235 : vector<5x5xf32>
    %237 = math.exp %236 : vector<5x5xf32>
    %cst_201 = arith.constant dense<0.000000e+00> : vector<5xf32>
    %238 = vector.multi_reduction <add>, %237, %cst_201 [1] : vector<5x5xf32> to vector<5xf32>
    %239 = vector.shape_cast %238 : vector<5xf32> to vector<5x1xf32>
    %240 = vector.broadcast %239 : vector<5x1xf32> to vector<5x5xf32>
    %241 = arith.divf %237, %240 : vector<5x5xf32>
    %cst_202 = arith.constant dense<0.000000e+00> : vector<5x32xf32>
    %242 = tpu.matmul %241, %231, %cst_202 {dimension_numbers = #tpu.dot_dimension_numbers<[1], [0], [0], [1], [0, 0, 1, 1], [], []>} : vector<5x5xf32>, vector<5x32xf32>, vector<5x32xf32> -> vector<5x32xf32>
    %243 = arith.truncf %242 : vector<5x32xf32> to vector<5x32xbf16>
    %c1_203 = arith.constant 1 : index
    %c1_204 = arith.constant 1 : index
    %c3_205 = arith.constant 3 : index
    %c0_206 = arith.constant 0 : index
    %c0_207 = arith.constant 0 : index
    %244 = vector.load %arg4[%c1_203, %c1_204, %c3_205, %c0_206, %c0_207] : memref<2x2x4x64x32xbf16, #tpu.memory_space<vmem>>, vector<1x1x1x64x32xbf16>
    %245 = vector.shape_cast %244 : vector<1x1x1x64x32xbf16> to vector<64x32xbf16>
    %cst_208 = arith.constant dense<0.000000e+00> : vector<5x64xf32>
    %246 = tpu.matmul %243, %245, %cst_208 {dimension_numbers = #tpu.dot_dimension_numbers<[1], [1], [0], [0], [0, 0, 1, 0], [], []>} : vector<5x32xbf16>, vector<64x32xbf16>, vector<5x64xf32> -> vector<5x64xf32>
    %247 = arith.addf %210, %246 : vector<5x64xf32>
    %248 = arith.addf %151, %247 : vector<5x64xf32>
    %c18 = arith.constant 18 : index
    %c0_209 = arith.constant 0 : index
    %249 = vector.load %arg3[%c18, %c0_209] : memref<32x128xf32, #tpu.memory_space<vmem>>, vector<1x64xf32>
    %250 = vector.broadcast %249 : vector<1x64xf32> to vector<5x64xf32>
    %251 = arith.addf %248, %250 : vector<5x64xf32>
    %c19 = arith.constant 19 : index
    %c0_210 = arith.constant 0 : index
    %252 = vector.load %arg3[%c19, %c0_210] : memref<32x128xf32, #tpu.memory_space<vmem>>, vector<1x64xf32>
    %c20 = arith.constant 20 : index
    %c0_211 = arith.constant 0 : index
    %253 = vector.load %arg3[%c20, %c0_211] : memref<32x128xf32, #tpu.memory_space<vmem>>, vector<1x64xf32>
    %cst_212 = arith.constant dense<0.000000e+00> : vector<5xf32>
    %254 = vector.multi_reduction <add>, %251, %cst_212 [1] : vector<5x64xf32> to vector<5xf32>
    %255 = vector.shape_cast %254 : vector<5xf32> to vector<5x1xf32>
    %cst_213 = arith.constant 6.400000e+01 : f32
    %256 = vector.broadcast %cst_213 : f32 to vector<5x1xf32>
    %257 = arith.divf %255, %256 : vector<5x1xf32>
    %258 = vector.broadcast %257 : vector<5x1xf32> to vector<5x64xf32>
    %259 = arith.subf %251, %258 : vector<5x64xf32>
    %260 = arith.mulf %259, %259 : vector<5x64xf32>
    %cst_214 = arith.constant dense<0.000000e+00> : vector<5xf32>
    %261 = vector.multi_reduction <add>, %260, %cst_214 [1] : vector<5x64xf32> to vector<5xf32>
    %262 = vector.shape_cast %261 : vector<5xf32> to vector<5x1xf32>
    %cst_215 = arith.constant 6.400000e+01 : f32
    %263 = vector.broadcast %cst_215 : f32 to vector<5x1xf32>
    %264 = arith.divf %262, %263 : vector<5x1xf32>
    %cst_216 = arith.constant 9.99999996E-13 : f32
    %265 = vector.broadcast %cst_216 : f32 to vector<5x1xf32>
    %266 = arith.addf %264, %265 : vector<5x1xf32>
    %267 = math.rsqrt %266 : vector<5x1xf32>
    %268 = vector.broadcast %267 : vector<5x1xf32> to vector<5x64xf32>
    %269 = arith.mulf %259, %268 : vector<5x64xf32>
    %270 = vector.broadcast %252 : vector<1x64xf32> to vector<5x64xf32>
    %271 = arith.mulf %269, %270 : vector<5x64xf32>
    %272 = vector.broadcast %253 : vector<1x64xf32> to vector<5x64xf32>
    %273 = arith.addf %271, %272 : vector<5x64xf32>
    %274 = arith.truncf %273 : vector<5x64xf32> to vector<5x64xbf16>
    %c1_217 = arith.constant 1 : index
    %c0_218 = arith.constant 0 : index
    %c0_219 = arith.constant 0 : index
    %275 = vector.load %arg6[%c1_217, %c0_218, %c0_219] : memref<2x192x128xbf16, #tpu.memory_space<vmem>>, vector<1x64x128xbf16>
    %276 = vector.shape_cast %275 : vector<1x64x128xbf16> to vector<64x128xbf16>
    %cst_220 = arith.constant dense<0.000000e+00> : vector<5x128xf32>
    %277 = tpu.matmul %274, %276, %cst_220 {dimension_numbers = #tpu.dot_dimension_numbers<[1], [0], [0], [1], [0, 0, 1, 1], [], []>} : vector<5x64xbf16>, vector<64x128xbf16>, vector<5x128xf32> -> vector<5x128xf32>
    %c21 = arith.constant 21 : index
    %c0_221 = arith.constant 0 : index
    %278 = vector.load %arg3[%c21, %c0_221] : memref<32x128xf32, #tpu.memory_space<vmem>>, vector<1x128xf32>
    %279 = vector.broadcast %278 : vector<1x128xf32> to vector<5x128xf32>
    %280 = arith.addf %277, %279 : vector<5x128xf32>
    %cst_222 = arith.constant 5.000000e-01 : f32
    %281 = vector.broadcast %cst_222 : f32 to vector<5x128xf32>
    %282 = arith.mulf %281, %280 : vector<5x128xf32>
    %cst_223 = arith.constant 0.707106769 : f32
    %283 = vector.broadcast %cst_223 : f32 to vector<5x128xf32>
    %284 = arith.mulf %280, %283 : vector<5x128xf32>
    %285 = math.erf %284 : vector<5x128xf32>
    %cst_224 = arith.constant 1.000000e+00 : f32
    %286 = vector.broadcast %cst_224 : f32 to vector<5x128xf32>
    %287 = arith.addf %286, %285 : vector<5x128xf32>
    %288 = arith.mulf %282, %287 : vector<5x128xf32>
    %289 = arith.truncf %288 : vector<5x128xf32> to vector<5x128xbf16>
    %c1_225 = arith.constant 1 : index
    %c64_226 = arith.constant 64 : index
    %c0_227 = arith.constant 0 : index
    %290 = vector.load %arg6[%c1_225, %c64_226, %c0_227] : memref<2x192x128xbf16, #tpu.memory_space<vmem>>, vector<1x128x64xbf16>
    %291 = vector.shape_cast %290 : vector<1x128x64xbf16> to vector<128x64xbf16>
    %cst_228 = arith.constant dense<0.000000e+00> : vector<5x64xf32>
    %292 = tpu.matmul %289, %291, %cst_228 {dimension_numbers = #tpu.dot_dimension_numbers<[1], [0], [0], [1], [0, 0, 1, 1], [], []>} : vector<5x128xbf16>, vector<128x64xbf16>, vector<5x64xf32> -> vector<5x64xf32>
    %293 = arith.addf %251, %292 : vector<5x64xf32>
    %c22 = arith.constant 22 : index
    %c0_229 = arith.constant 0 : index
    %294 = vector.load %arg3[%c22, %c0_229] : memref<32x128xf32, #tpu.memory_space<vmem>>, vector<1x64xf32>
    %295 = vector.broadcast %294 : vector<1x64xf32> to vector<5x64xf32>
    %296 = arith.addf %293, %295 : vector<5x64xf32>
    %297 = vector.extract_strided_slice %296 {offsets = [0, 0], sizes = [1, 64], strides = [1, 1]} : vector<5x64xf32> to vector<1x64xf32>
    %c24 = arith.constant 24 : index
    %c0_230 = arith.constant 0 : index
    %298 = vector.load %arg3[%c24, %c0_230] : memref<32x128xf32, #tpu.memory_space<vmem>>, vector<1x64xf32>
    %c25 = arith.constant 25 : index
    %c0_231 = arith.constant 0 : index
    %299 = vector.load %arg3[%c25, %c0_231] : memref<32x128xf32, #tpu.memory_space<vmem>>, vector<1x64xf32>
    %cst_232 = arith.constant dense<0.000000e+00> : vector<1xf32>
    %300 = vector.multi_reduction <add>, %297, %cst_232 [1] : vector<1x64xf32> to vector<1xf32>
    %301 = vector.shape_cast %300 : vector<1xf32> to vector<1x1xf32>
    %cst_233 = arith.constant 6.400000e+01 : f32
    %302 = vector.broadcast %cst_233 : f32 to vector<1x1xf32>
    %303 = arith.divf %301, %302 : vector<1x1xf32>
    %304 = vector.broadcast %303 : vector<1x1xf32> to vector<1x64xf32>
    %305 = arith.subf %297, %304 : vector<1x64xf32>
    %306 = arith.mulf %305, %305 : vector<1x64xf32>
    %cst_234 = arith.constant dense<0.000000e+00> : vector<1xf32>
    %307 = vector.multi_reduction <add>, %306, %cst_234 [1] : vector<1x64xf32> to vector<1xf32>
    %308 = vector.shape_cast %307 : vector<1xf32> to vector<1x1xf32>
    %cst_235 = arith.constant 6.400000e+01 : f32
    %309 = vector.broadcast %cst_235 : f32 to vector<1x1xf32>
    %310 = arith.divf %308, %309 : vector<1x1xf32>
    %cst_236 = arith.constant 9.99999996E-13 : f32
    %311 = vector.broadcast %cst_236 : f32 to vector<1x1xf32>
    %312 = arith.addf %310, %311 : vector<1x1xf32>
    %313 = math.rsqrt %312 : vector<1x1xf32>
    %314 = vector.broadcast %313 : vector<1x1xf32> to vector<1x64xf32>
    %315 = arith.mulf %305, %314 : vector<1x64xf32>
    %316 = arith.mulf %315, %298 : vector<1x64xf32>
    %317 = arith.addf %316, %299 : vector<1x64xf32>
    %c192 = arith.constant 192 : index
    %c0_237 = arith.constant 0 : index
    %318 = vector.load %arg7[%c192, %c0_237] : memref<256x128xbf16, #tpu.memory_space<vmem>>, vector<64x10xbf16>
    %319 = arith.truncf %317 : vector<1x64xf32> to vector<1x64xbf16>
    %cst_238 = arith.constant dense<0.000000e+00> : vector<1x10xf32>
    %320 = tpu.matmul %319, %318, %cst_238 {dimension_numbers = #tpu.dot_dimension_numbers<[1], [0], [0], [1], [0, 0, 1, 1], [], []>} : vector<1x64xbf16>, vector<64x10xbf16>, vector<1x10xf32> -> vector<1x10xf32>
    %c26 = arith.constant 26 : index
    %c0_239 = arith.constant 0 : index
    %321 = vector.load %arg3[%c26, %c0_239] : memref<32x128xf32, #tpu.memory_space<vmem>>, vector<1x10xf32>
    %322 = arith.addf %320, %321 : vector<1x10xf32>
    %c0_240 = arith.constant 0 : index
    %c0_241 = arith.constant 0 : index
    %c0_242 = arith.constant 0 : index
    %323 = vector.load %arg8[%c0_240, %c0_241, %c0_242] : memref<1x1x10xf32, #tpu.memory_space<vmem>>, vector<1x1x10xf32>
    %324 = vector.shape_cast %323 : vector<1x1x10xf32> to vector<1x10xf32>
    %325 = vector.shape_cast %322 : vector<1x10xf32> to vector<1x1x10xf32>
    tpu.vector_store %arg8[%c0_240, %c0_241, %c0_242], %325 {strides = array<i32>} : memref<1x1x10xf32, #tpu.memory_space<vmem>>, vector<1x1x10xf32>,
    %cst_243 = arith.constant dense<0xFF800000> : vector<1xf32>
    %326 = vector.multi_reduction <maximumf>, %322, %cst_243 [1] : vector<1x10xf32> to vector<1xf32>
    %327 = vector.shape_cast %326 : vector<1xf32> to vector<1x1xf32>
    %328 = vector.broadcast %327 : vector<1x1xf32> to vector<1x10xf32>
    %329 = arith.subf %322, %328 : vector<1x10xf32>
    %330 = math.exp %329 : vector<1x10xf32>
    %cst_244 = arith.constant dense<0.000000e+00> : vector<1xf32>
    %331 = vector.multi_reduction <add>, %330, %cst_244 [1] : vector<1x10xf32> to vector<1xf32>
    %332 = vector.shape_cast %331 : vector<1xf32> to vector<1x1xf32>
    %333 = math.log %332 : vector<1x1xf32>
    %334 = arith.index_cast %arg0 : i32 to index
    %335 = memref.load %arg1[%334] : memref<2xi32, #tpu.memory_space<smem>>
    %336 = tpu.iota {dimensions = array<i32: 1>} : vector<1x10xi32>
    %337 = vector.broadcast %335 : i32 to vector<1x10xi32>
    %338 = arith.cmpi eq, %336, %337 : vector<1x10xi32>
    %339 = arith.extui %338 : vector<1x10xi1> to vector<1x10xi32>
    %340 = arith.sitofp %339 : vector<1x10xi32> to vector<1x10xf32>
    %341 = arith.mulf %340, %329 : vector<1x10xf32>
    %cst_245 = arith.constant dense<0.000000e+00> : vector<1xf32>
    %342 = vector.multi_reduction <add>, %341, %cst_245 [1] : vector<1x10xf32> to vector<1xf32>
    %343 = vector.shape_cast %342 : vector<1xf32> to vector<1x1xf32>
    %344 = arith.subf %333, %343 : vector<1x1xf32>
    %c0_246 = arith.constant 0 : index
    %c0_247 = arith.constant 0 : index
    %c0_248 = arith.constant 0 : index
    %345 = vector.load %arg9[%c0_246, %c0_247, %c0_248] : memref<1x1x1xf32, #tpu.memory_space<vmem>>, vector<1x1x1xf32>
    %346 = vector.shape_cast %345 : vector<1x1x1xf32> to vector<1x1xf32>
    %347 = vector.shape_cast %344 : vector<1x1xf32> to vector<1x1x1xf32>
    tpu.vector_store %arg9[%c0_246, %c0_247, %c0_248], %347 {strides = array<i32>} : memref<1x1x1xf32, #tpu.memory_space<vmem>>, vector<1x1x1xf32>,
    return
  }
  func.func @transform_0(%arg0: i32, %arg1: memref<2xi32, #tpu.memory_space<smem>>) -> (i32, i32, i32) {
    %c0_i32 = arith.constant 0 : i32
    %c0_i32_0 = arith.constant 0 : i32
    %c0_i32_1 = arith.constant 0 : i32
    return %arg0, %c0_i32, %c0_i32_0 : i32, i32, i32
  }
  func.func @transform_1(%arg0: i32, %arg1: memref<2xi32, #tpu.memory_space<smem>>) -> (i32, i32) {
    %c0_i32 = arith.constant 0 : i32
    %c0_i32_0 = arith.constant 0 : i32
    %c0_i32_1 = arith.constant 0 : i32
    return %c0_i32, %c0_i32_0 : i32, i32
  }
  func.func @transform_2(%arg0: i32, %arg1: memref<2xi32, #tpu.memory_space<smem>>) -> (i32, i32, i32, i32, i32) {
    %c0_i32 = arith.constant 0 : i32
    %c0_i32_0 = arith.constant 0 : i32
    %c0_i32_1 = arith.constant 0 : i32
    %c0_i32_2 = arith.constant 0 : i32
    %c0_i32_3 = arith.constant 0 : i32
    %c0_i32_4 = arith.constant 0 : i32
    return %c0_i32, %c0_i32_0, %c0_i32_1, %c0_i32_2, %c0_i32_3 : i32, i32, i32, i32, i32
  }
  func.func @transform_3(%arg0: i32, %arg1: memref<2xi32, #tpu.memory_space<smem>>) -> (i32, i32, i32, i32, i32) {
    %c0_i32 = arith.constant 0 : i32
    %c0_i32_0 = arith.constant 0 : i32
    %c0_i32_1 = arith.constant 0 : i32
    %c0_i32_2 = arith.constant 0 : i32
    %c0_i32_3 = arith.constant 0 : i32
    %c0_i32_4 = arith.constant 0 : i32
    return %c0_i32, %c0_i32_0, %c0_i32_1, %c0_i32_2, %c0_i32_3 : i32, i32, i32, i32, i32
  }
  func.func @transform_4(%arg0: i32, %arg1: memref<2xi32, #tpu.memory_space<smem>>) -> (i32, i32, i32) {
    %c0_i32 = arith.constant 0 : i32
    %c0_i32_0 = arith.constant 0 : i32
    %c0_i32_1 = arith.constant 0 : i32
    %c0_i32_2 = arith.constant 0 : i32
    return %c0_i32, %c0_i32_0, %c0_i32_1 : i32, i32, i32
  }
  func.func @transform_5(%arg0: i32, %arg1: memref<2xi32, #tpu.memory_space<smem>>) -> (i32, i32) {
    %c0_i32 = arith.constant 0 : i32
    %c0_i32_0 = arith.constant 0 : i32
    %c0_i32_1 = arith.constant 0 : i32
    return %c0_i32, %c0_i32_0 : i32, i32
  }
  func.func @transform_6(%arg0: i32, %arg1: memref<2xi32, #tpu.memory_space<smem>>) -> (i32, i32, i32) {
    %c0_i32 = arith.constant 0 : i32
    %c0_i32_0 = arith.constant 0 : i32
    %c0_i32_1 = arith.constant 0 : i32
    return %arg0, %c0_i32, %c0_i32_0 : i32, i32, i32
  }
  func.func @transform_7(%arg0: i32, %arg1: memref<2xi32, #tpu.memory_space<smem>>) -> (i32, i32, i32) {
    %c0_i32 = arith.constant 0 : i32
    %c0_i32_0 = arith.constant 0 : i32
    %c0_i32_1 = arith.constant 0 : i32
    return %arg0, %c0_i32, %c0_i32_0 : i32, i32, i32
  }
}

</mosaic_0001>

<llo_original>
// kernel: vit_forward.1
$region0: #{vit_forward.1}
  #allocation0 [shape = 'u32[]', space=smem, size = 0x4, offset = 0x4, fixed_abs, tag = 'smem constant byte address 0x4 - core index']
  #allocation1 [shape = 'u32[144,128]{1,0:T(1,128)}', space=vmem, size = 0x12000, scoped, tag = 'internal scratch']
  #allocation2 [shape = 's32[1]{0}', space=sflag, size = 0x4, scoped, tag = 'scoped memory for vit_forward.1']
  #allocation3 [shape = 'u8[512]{0}', space=smem, size = 0x200, scoped, tag = 'prefetched SMEM operand 0']
  %s0 = inlined_call_operand.vmem [shape: s32[2], index: 0, kind: input, shape index: {}]
  %s1 = inlined_call_operand.vmem [shape: f32[2,5,192], index: 1, kind: input, shape index: {}]
  %s2 = inlined_call_operand.vmem [shape: f32[32,128], index: 2, kind: input, shape index: {}]
  %s3 = inlined_call_operand.vmem [shape: bf16[2,2,4,64,32], index: 3, kind: input, shape index: {}]
  %s4 = inlined_call_operand.vmem [shape: f32[2,2,3,1,32], index: 4, kind: input, shape index: {}]
  %s5 = inlined_call_operand.vmem [shape: bf16[2,192,128], index: 5, kind: input, shape index: {}]
  %s6 = inlined_call_operand.vmem [shape: bf16[256,128], index: 6, kind: input, shape index: {}]
  %s7 = inlined_call_operand.hbm [shape: f32[2,1,10], index: 7, kind: output, shape index: {0}]
  %s8 = inlined_call_operand.vmem [shape: f32[2,1,1], index: 8, kind: output, shape index: {1}]
  %9 = xla_tuple %s7, %s8
  %s10 = sld [smem:[#allocation0]]
  $region65: #{vit_forward.1} parent=0
    _
  %s12 = ssub.s32 1, %s10
  %s13 = scalar_select 0, %s12, %s10
  %s14 = sshll.u32 %s0, 4
  %s15 = int_to_ptr.vmem [resolvable:$true] %s14
  %17 = dma.vmem_to_smem %s15, 16, [#allocation3], [#allocation2]
  %18 = dma.done [#allocation2], 16
  %19 = sfence
  $region1: #{vit_forward.1} parent=0
    #allocation4 [shape = 'u8[1024]{0}', space=vmem, size = 0x400, scoped, tag = 'output window, operand 0']
    #allocation5 [shape = 's32[2]{0}', space=sflag, size = 0x8, scoped, tag = 'scoped memory for vit_forward.1']
    %20 = vsyncpa [#allocation5], 0
    %s21 = scalar_lea.sflag [#allocation5], 1
    %22 = vsyncpa %s21, 0
    loop: start=0, step=1, limit=4
    $region2: #{vit_forward.1} parent=1 // loop_pre_header
      _
    $region3: #{vit_forward.1} parent=1 // loop_header
      %s24 = sphi 0, %s28
      %p25 = scmp.ge.s32.totalorder %s24, 4
      %s34 = sphi 0, %s36
      %s37 = sphi 0, %s34
      %s38 = sphi 0, %s37
      %s54 = sphi 0, %s38
      %s58 = sphi 0, %s58
      %s60 = sphi 0, %s58
      %s61 = sphi 0, %s60
      %s75 = sphi 0, %s61
      %s79 = sphi 0, %s79
      %s81 = sphi 0, %s79
      %s82 = sphi 0, %s81
      %s96 = sphi 0, %s82
      %s100 = sphi 0, %s100
      %s102 = sphi 0, %s100
      %s103 = sphi 0, %s102
      %s117 = sphi 0, %s103
      %s121 = sphi 0, %s121
      %s123 = sphi 0, %s121
      %s124 = sphi 0, %s123
      %s138 = sphi 0, %s124
      %s142 = sphi 0, %s142
      %s144 = sphi 0, %s142
      %s145 = sphi 0, %s144
      %s159 = sphi 0, %s145
      %s165 = sphi 0, %s167
      %s168 = sphi 0, %s165
      %s169 = sphi 0, %s168
      %s185 = sphi 0, %s169
      %s191 = sphi 0, %s193
      %s194 = sphi 0, %s191
      %s195 = sphi 0, %s194
      %s211 = sphi 0, %s195
    $region4: #{vit_forward.1} parent=1 // loop_header_branch
      %27 = sbr.rel (%p25) target = $region8
    $region5: #{vit_forward.1} parent=1 // loop_body
      %s29 = ssub.s32 %s24, 1
      %s30 = ssub.s32 %s24, 2
      %s31 = sadd.s32 %s24, 1
      %s32 = ssub.s32 %s24, %s31
      %p33 = scmp.eq.s32.totalorder %s32, 0
      %s35 = sadd.s32 %s34, 1
      %s36 = scalar_select %p33, %s34, %s35
      %p39 = pneg %p33
      %p40 = scmp.eq.s32.totalorder %s24, 1
      %p41 = por %p39, %p40
      %p42 = scmp.ne.s32.totalorder %s34, %s37
      %p43 = scmp.eq.s32.totalorder %s24, 0
      %p44 = por %p42, %p43
      %p45 = scmp.ne.s32.totalorder %s34, %s37
      %p46 = scmp.eq.s32.totalorder %s29, 1
      %p47 = por %p45, %p46
      %p48 = scmp.ne.s32.totalorder %s37, %s38
      %p49 = scmp.eq.s32.totalorder %s29, 0
      %p50 = por %p48, %p49
      %p51 = scmp.ne.s32.totalorder %s37, %s38
      %p52 = scmp.eq.s32.totalorder %s30, 1
      %p53 = por %p51, %p52
      %p55 = scmp.ne.s32.totalorder %s38, %s54
      %p56 = scmp.eq.s32.totalorder %s30, 0
      %p57 = por %p55, %p56
      %s59 = sadd.s32 %s58, 1
      %p62 = scmp.eq.s32.totalorder %s24, 1
      %p63 = scmp.ne.s32.totalorder %s58, %s60
      %p64 = scmp.eq.s32.totalorder %s24, 0
      %p65 = por %p63, %p64
      %p66 = scmp.ne.s32.totalorder %s58, %s60
      %p67 = scmp.eq.s32.totalorder %s29, 1
      %p68 = por %p66, %p67
      %p69 = scmp.ne.s32.totalorder %s60, %s61
      %p70 = scmp.eq.s32.totalorder %s29, 0
      %p71 = por %p69, %p70
      %p72 = scmp.ne.s32.totalorder %s60, %s61
      %p73 = scmp.eq.s32.totalorder %s30, 1
      %p74 = por %p72, %p73
      %p76 = scmp.ne.s32.totalorder %s61, %s75
      %p77 = scmp.eq.s32.totalorder %s30, 0
      %p78 = por %p76, %p77
      %s80 = sadd.s32 %s79, 1
      %p83 = scmp.eq.s32.totalorder %s24, 1
      %p84 = scmp.ne.s32.totalorder %s79, %s81
      %p85 = scmp.eq.s32.totalorder %s24, 0
      %p86 = por %p84, %p85
      %p87 = scmp.ne.s32.totalorder %s79, %s81
      %p88 = scmp.eq.s32.totalorder %s29, 1
      %p89 = por %p87, %p88
      %p90 = scmp.ne.s32.totalorder %s81, %s82
      %p91 = scmp.eq.s32.totalorder %s29, 0
      %p92 = por %p90, %p91
      %p93 = scmp.ne.s32.totalorder %s81, %s82
      %p94 = scmp.eq.s32.totalorder %s30, 1
      %p95 = por %p93, %p94
      %p97 = scmp.ne.s32.totalorder %s82, %s96
      %p98 = scmp.eq.s32.totalorder %s30, 0
      %p99 = por %p97, %p98
      %s101 = sadd.s32 %s100, 1
      %p104 = scmp.eq.s32.totalorder %s24, 1
      %p105 = scmp.ne.s32.totalorder %s100, %s102
      %p106 = scmp.eq.s32.totalorder %s24, 0
      %p107 = por %p105, %p106
      %p108 = scmp.ne.s32.totalorder %s100, %s102
      %p109 = scmp.eq.s32.totalorder %s29, 1
      %p110 = por %p108, %p109
      %p111 = scmp.ne.s32.totalorder %s102, %s103
      %p112 = scmp.eq.s32.totalorder %s29, 0
      %p113 = por %p111, %p112
      %p114 = scmp.ne.s32.totalorder %s102, %s103
      %p115 = scmp.eq.s32.totalorder %s30, 1
      %p116 = por %p114, %p115
      %p118 = scmp.ne.s32.totalorder %s103, %s117
      %p119 = scmp.eq.s32.totalorder %s30, 0
      %p120 = por %p118, %p119
      %s122 = sadd.s32 %s121, 1
      %p125 = scmp.eq.s32.totalorder %s24, 1
      %p126 = scmp.ne.s32.totalorder %s121, %s123
      %p127 = scmp.eq.s32.totalorder %s24, 0
      %p128 = por %p126, %p127
      %p129 = scmp.ne.s32.totalorder %s121, %s123
      %p130 = scmp.eq.s32.totalorder %s29, 1
      %p131 = por %p129, %p130
      %p132 = scmp.ne.s32.totalorder %s123, %s124
      %p133 = scmp.eq.s32.totalorder %s29, 0
      %p134 = por %p132, %p133
      %p135 = scmp.ne.s32.totalorder %s123, %s124
      %p136 = scmp.eq.s32.totalorder %s30, 1
      %p137 = por %p135, %p136
      %p139 = scmp.ne.s32.totalorder %s124, %s138
      %p140 = scmp.eq.s32.totalorder %s30, 0
      %p141 = por %p139, %p140
      %s143 = sadd.s32 %s142, 1
      %p146 = scmp.eq.s32.totalorder %s24, 1
      %p147 = scmp.ne.s32.totalorder %s142, %s144
      %p148 = scmp.eq.s32.totalorder %s24, 0
      %p149 = por %p147, %p148
      %p150 = scmp.ne.s32.totalorder %s142, %s144
      %p151 = scmp.eq.s32.totalorder %s29, 1
      %p152 = por %p150, %p151
      %p153 = scmp.ne.s32.totalorder %s144, %s145
      %p154 = scmp.eq.s32.totalorder %s29, 0
      %p155 = por %p153, %p154
      %p156 = scmp.ne.s32.totalorder %s144, %s145
      %p157 = scmp.eq.s32.totalorder %s30, 1
      %p158 = por %p156, %p157
      %p160 = scmp.ne.s32.totalorder %s145, %s159
      %p161 = scmp.eq.s32.totalorder %s30, 0
      %p162 = por %p160, %p161
      %s163 = ssub.s32 %s24, %s31
      %p164 = scmp.eq.s32.totalorder %s163, 0
      %s166 = sadd.s32 %s165, 1
      %s167 = scalar_select %p164, %s165, %s166
      %p170 = pneg %p164
      %p171 = scmp.eq.s32.totalorder %s24, 1
      %p172 = por %p170, %p171
      %p173 = scmp.ne.s32.totalorder %s165, %s168
      %p174 = scmp.eq.s32.totalorder %s24, 0
      %p175 = por %p173, %p174
      %p176 = scmp.ne.s32.totalorder %s165, %s168
      %p177 = scmp.eq.s32.totalorder %s29, 1
      %p178 = por %p176, %p177
      %p179 = scmp.ne.s32.totalorder %s168, %s169
      %p180 = scmp.eq.s32.totalorder %s29, 0
      %p181 = por %p179, %p180
      %p182 = scmp.ne.s32.totalorder %s168, %s169
      %p183 = scmp.eq.s32.totalorder %s30, 1
      %p184 = por %p182, %p183
      %p186 = scmp.ne.s32.totalorder %s169, %s185
      %p187 = scmp.eq.s32.totalorder %s30, 0
      %p188 = por %p186, %p187
      %s189 = ssub.s32 %s24, %s31
      %p190 = scmp.eq.s32.totalorder %s189, 0
      %s192 = sadd.s32 %s191, 1
      %s193 = scalar_select %p190, %s191, %s192
      %p196 = pneg %p190
      %p197 = scmp.eq.s32.totalorder %s24, 1
      %p198 = por %p196, %p197
      %p199 = scmp.ne.s32.totalorder %s191, %s194
      %p200 = scmp.eq.s32.totalorder %s24, 0
      %p201 = por %p199, %p200
      %p202 = scmp.ne.s32.totalorder %s191, %s194
      %p203 = scmp.eq.s32.totalorder %s29, 1
      %p204 = por %p202, %p203
      %p205 = scmp.ne.s32.totalorder %s194, %s195
      %p206 = scmp.eq.s32.totalorder %s29, 0
      %p207 = por %p205, %p206
      %p208 = scmp.ne.s32.totalorder %s194, %s195
      %p209 = scmp.eq.s32.totalorder %s30, 1
      %p210 = por %p208, %p209
      %p212 = scmp.ne.s32.totalorder %s195, %s211
      %p213 = scmp.eq.s32.totalorder %s30, 0
      %p214 = por %p212, %p213
      %p215 = scmp.le.s32.totalorder 1, %s24
      %p216 = scmp.lt.s32.totalorder %s24, 3
      %p217 = pnand %p215, %p216
      %p218 = pneg %p217
      // Predicated region
      $region9: #{vit_forward.1} parent=5 // pred_check
        _
      $region10: #{vit_forward.1} parent=5 // pred_check_branch
        %220 = sbr.rel (%p217) target = $region12
      $region11: #{vit_forward.1} parent=5 // pred_region
        %s221 = ssub.s32 %s24, 1
        // Predicated region
        $region13: #{vit_forward.1} parent=11 // pred_check
          %p222 = pneg %p71
        $region14: #{vit_forward.1} parent=11 // pred_check_branch
          %224 = sbr.rel (%p222) target = $region16
        $region15: #{vit_forward.1} parent=11 // pred_region
          _
        $region16: #{vit_forward.1} parent=11 // pred_fallthru
          _
        // Predicated region
        $region17: #{vit_forward.1} parent=11 // pred_check
          %p225 = pneg %p92
        $region18: #{vit_forward.1} parent=11 // pred_check_branch
          %227 = sbr.rel (%p225) target = $region20
        $region19: #{vit_forward.1} parent=11 // pred_region
          _
        $region20: #{vit_forward.1} parent=11 // pred_fallthru
          _
        // Predicated region
        $region21: #{vit_forward.1} parent=11 // pred_check
          %p228 = pneg %p113
        $region22: #{vit_forward.1} parent=11 // pred_check_branch
          %230 = sbr.rel (%p228) target = $region24
        $region23: #{vit_forward.1} parent=11 // pred_region
          _
        $region24: #{vit_forward.1} parent=11 // pred_fallthru
          _
        // Predicated region
        $region25: #{vit_forward.1} parent=11 // pred_check
          %p231 = pneg %p134
        $region26: #{vit_forward.1} parent=11 // pred_check_branch
          %233 = sbr.rel (%p231) target = $region28
        $region27: #{vit_forward.1} parent=11 // pred_region
          _
        $region28: #{vit_forward.1} parent=11 // pred_fallthru
          _
        // Predicated region
        $region29: #{vit_forward.1} parent=11 // pred_check
          %p234 = pneg %p155
        $region30: #{vit_forward.1} parent=11 // pred_check_branch
          %236 = sbr.rel (%p234) target = $region32
        $region31: #{vit_forward.1} parent=11 // pred_region
          _
        $region32: #{vit_forward.1} parent=11 // pred_fallthru
          _
      $region12: #{vit_forward.1} parent=5 // pred_fallthru
        _
      %p237 = scmp.lt.s32.totalorder %s24, 2
      // Predicated region
      $region33: #{vit_forward.1} parent=5 // pred_check
        %p238 = pneg %p237
      $region34: #{vit_forward.1} parent=5 // pred_check_branch
        %240 = sbr.rel (%p238) target = $region36
      $region35: #{vit_forward.1} parent=5 // pred_region
        // Predicated region
        $region37: #{vit_forward.1} parent=35 // pred_check
          %p241 = pneg %p44
        $region38: #{vit_forward.1} parent=35 // pred_check_branch
          %243 = sbr.rel (%p241) target = $region40
        $region39: #{vit_forward.1} parent=35 // pred_region
          %p244 = scmp.lt.s32.totalorder %s24, 1
          %s245 = scalar_select %p244, %s24, 1
          %s246 = smul.addr %s245, 2
          %s247 = smul.addr %s246, 8
          %s248 = scalar_lea.vmem %s1, %s247
        $region40: #{vit_forward.1} parent=35 // pred_fallthru
          _
      $region36: #{vit_forward.1} parent=5 // pred_fallthru
        _
      %p249 = scmp.le.s32.totalorder 1, %s24
      %p250 = scmp.lt.s32.totalorder %s24, 3
      %p251 = pnand %p249, %p250
      %p252 = pneg %p251
      // Predicated region
      $region41: #{vit_forward.1} parent=5 // pred_check
        _
      $region42: #{vit_forward.1} parent=5 // pred_check_branch
        %254 = sbr.rel (%p251) target = $region44
      $region43: #{vit_forward.1} parent=5 // pred_region
        %s255 = ssub.s32 %s24, 1
        %p256 = scmp.lt.s32.totalorder %s29, 1
        %s257 = scalar_select %p256, %s29, 1
        %s258 = smul.addr %s257, 2
        %s259 = smul.addr %s258, 8
        %s260 = scalar_lea.vmem %s1, %s259
        %p261 = pneg %p50
        %p262 = pneg %p47
        %p263 = pneg %p71
        %p264 = pneg %p68
        %p265 = pneg %p92
        %p266 = pneg %p89
        %p267 = pneg %p113
        %p268 = pneg %p110
        %p269 = pneg %p134
        %p270 = pneg %p131
        %p271 = pneg %p155
        %p272 = pneg %p152
        %p273 = pneg %p181
        %p274 = pneg %p178
        %s275 = sand.u32 %s168, 1
        %s276 = scalar_lea.sflag [#allocation5], %s275
        %s277 = sand.u32 %s168, 1
        %s278 = scalar_lea.vmem [#allocation4], %s277
        %p279 = pneg %p207
        %p280 = pneg %p204
        %p281 = scmp.lt.s32.totalorder %s29, 1
        %s282 = scalar_select %p281, %s29, 1
        %s283 = scalar_lea.vmem %s8, %s282
        %p284 = scmp.lt.s32.totalorder %s29, 1
        %s285 = scalar_select %p284, %s29, 1
        %s286 = smul.addr %s285, 2
        %s287 = smul.addr %s286, 8
        %s288 = scalar_lea.vmem %s1, %s287
        %p289 = scmp.lt.s32.totalorder %s29, 1
        %s290 = scalar_select %p289, %s29, 1
        %s291 = scalar_lea.vmem %s8, %s290
        %v293 = vld [vmem:[%s6] sm:$0xf]
        %v294 = vld [vmem:[%s6 + $0x4] sm:$0xf]
        %v295 = vld [vmem:[%s6 + $0x8] sm:$0xf]
        %v296 = vld [vmem:[%s6 + $0xc] sm:$0xf]
        %v297 = vld [vmem:[%s6 + $0x10] sm:$0xf]
        %v298 = vld [vmem:[%s6 + $0x14] sm:$0xf]
        %v299 = vld [vmem:[%s6 + $0x18] sm:$0xf]
        %v300 = vld [vmem:[%s6 + $0x1c] sm:$0xf]
        %v301 = vld [vmem:[%s6 + $0x20] sm:$0xf]
        %v302 = vld [vmem:[%s6 + $0x24] sm:$0xf]
        %v303 = vld [vmem:[%s6 + $0x28] sm:$0xf]
        %v304 = vld [vmem:[%s6 + $0x2c] sm:$0xf]
        %v305 = vld [vmem:[%s6 + $0x30] sm:$0xf]
        %v306 = vld [vmem:[%s6 + $0x34] sm:$0xf]
        %v307 = vld [vmem:[%s6 + $0x38] sm:$0xf]
        %v308 = vld [vmem:[%s6 + $0x3c] sm:$0xf]
        %v309 = vld [vmem:[%s6 + $0x40] sm:$0xf]
        %v310 = vld [vmem:[%s6 + $0x44] sm:$0xf]
        %v311 = vld [vmem:[%s6 + $0x48] sm:$0xf]
        %v312 = vld [vmem:[%s6 + $0x4c] sm:$0xf]
        %v313 = vld [vmem:[%s6 + $0x50] sm:$0xf]
        %v314 = vld [vmem:[%s6 + $0x54] sm:$0xf]
        %v315 = vld [vmem:[%s6 + $0x58] sm:$0xf]
        %v316 = vld [vmem:[%s6 + $0x5c] sm:$0xf]
        %v317 = vld [vmem:[%s288] sm:$0x1f]
        %v318 = vld [vmem:[%s288 + $0x8] sm:$0x1f]
        %v319 = vpack.c.bf16 %v317, %v317
        %v320 = vpack.c.bf16 %v318, %v318
        %v321 = vld [vmem:[%s2] sm:$0x1f]
        %v346 = vunpack.c.l.b16 %v293
        %v347 = vunpack.c.l.b16 %v294
        %v348 = vunpack.c.l.b16 %v295
        %v349 = vunpack.c.l.b16 %v296
        %v350 = vunpack.c.l.b16 %v297
        %v351 = vunpack.c.l.b16 %v298
        %v352 = vunpack.c.l.b16 %v299
        %v353 = vunpack.c.l.b16 %v300
        %v354 = vunpack.c.l.b16 %v301
        %v355 = vunpack.c.l.b16 %v302
        %v356 = vunpack.c.l.b16 %v303
        %v357 = vunpack.c.l.b16 %v304
        %v358 = vunpack.c.l.b16 %v305
        %v359 = vunpack.c.l.b16 %v306
        %v360 = vunpack.c.l.b16 %v307
        %v361 = vunpack.c.l.b16 %v308
        %v362 = vunpack.c.l.b16 %v309
        %v363 = vunpack.c.l.b16 %v310
        %v364 = vunpack.c.l.b16 %v311
        %v365 = vunpack.c.l.b16 %v312
        %v366 = vunpack.c.l.b16 %v313
        %v367 = vunpack.c.l.b16 %v314
        %v368 = vunpack.c.l.b16 %v315
        %v369 = vunpack.c.l.b16 %v316
        %v370 = vpack.c.b16 %v347, %v346
        %v371 = vpack.c.b16 %v349, %v348
        %v372 = vpack.c.b16 %v351, %v350
        %v373 = vpack.c.b16 %v353, %v352
        %v374 = vpack.c.b16 %v355, %v354
        %v375 = vpack.c.b16 %v357, %v356
        %v376 = vpack.c.b16 %v359, %v358
        %v377 = vpack.c.b16 %v361, %v360
        %v378 = vpack.c.b16 %v363, %v362
        %v379 = vpack.c.b16 %v365, %v364
        %v380 = vpack.c.b16 %v367, %v366
        %v381 = vpack.c.b16 %v369, %v368
        %vm394 = vcmask 523264
        %v396 = vsel %vm394, %v320, 0
        %398 = vmatprep.subr.bf16.mxu0 0
        %399 = vmatpush1.bf16.msra.mxu0 %v377
        %400 = vmatprep.subr.bf16.mxu0 0
        %401 = vmatpush1.bf16.msra.mxu0 %v376
        %402 = vmatprep.subr.bf16.mxu0 0
        %403 = vmatpush1.bf16.msra.mxu0 %v375
        %404 = vmatprep.subr.bf16.mxu0 0
        %405 = vmatpush1.bf16.msra.mxu0 %v374
        %406 = vmatprep.subr.bf16.mxu0 0
        %407 = vmatpush1.bf16.msra.mxu0 %v373
        %408 = vmatprep.subr.bf16.mxu0 0
        %409 = vmatpush1.bf16.msra.mxu0 %v372
        %410 = vmatprep.subr.bf16.mxu0 0
        %411 = vmatpush1.bf16.msra.mxu0 %v371
        %412 = vmatprep.subr.bf16.mxu0 0
        %413 = vmatpush1.bf16.msra.mxu0 %v370
        %414 = vmatprep.subr.bf16.mxu0 0
        %415 = vmatpush2.bf16.msra.mxu0 0
        %416 = vmatprep.subr.bf16.mxu0 0
        %417 = vmatpush2.bf16.msra.mxu0 0
        %418 = vmatprep.subr.bf16.mxu0 0
        %419 = vmatpush2.bf16.msra.mxu0 0
        %420 = vmatprep.subr.bf16.mxu0 0
        %421 = vmatpush2.bf16.msra.mxu0 0
        %422 = vmatprep.subr.bf16.mxu0 0
        %423 = vmatpush2.bf16.msra.mxu0 %v381
        %424 = vmatprep.subr.bf16.mxu0 0
        %425 = vmatpush2.bf16.msra.mxu0 %v380
        %426 = vmatprep.subr.bf16.mxu0 0
        %427 = vmatpush2.bf16.msra.mxu0 %v379
        %428 = vmatprep.subr.bf16.mxu0 0
        %429 = vmatpush2.bf16.msra.mxu0 %v378
        %430 = vmatprep.mubr.bf16.mxu0 %v396
        %431 = vmatmul.mubr.bf16.gmra.mxu0 %v319
        %v432 = vpop.f32.mrf.mxu0
        %v433 = vadd.f32 %v321, %v432
        %v434 = vpop.f32.mrf.mxu0
        %v435 = vpop.f32.mrf.mxu0
        %v436 = vpop.f32.mrf.mxu0
        %437 = vdwg.mxu0
        %v438 = vld [vmem:[%s2 + $0x8] sm:$0x1]
        %v439 = vld [vmem:[%s2 + $0x9] sm:$0x1]
        %vm440 = vcmask 520192
        %v441 = vsel %vm440, %v433, 0.0
        %442 = vadd.xlane.f32.xlu0 %v441
        %v443 = vpop.xlane.xlu0 %442
        %v444 = vrcp.pop 64.0
        %v445 = vmul.f32 %v443, %v444
        %v446 = vsub.f32 %v433, %v445
        %v447 = vmul.f32 %v446, %v446
        %v448 = vsel %vm440, %v447, 0.0
        %449 = vadd.xlane.f32.xlu0 %v448
        %v450 = vpop.xlane.xlu0 %449
        %v451 = vmul.f32 %v450, %v444
        %v452 = vadd.f32 %v451, 1e-12
        %v453 = vrsqrt.pop %v452
        %v454 = vmul.f32 %v446, %v453
        %v455 = vlaneseq
        %v456 = vshrl.u32 %v455, 7
        %v457 = vsub.s32 0, %v456
        %v458 = vrot.slane %v438, %v457
        %v459 = vmul.f32 %v454, %v458
        %v460 = vlaneseq
        %v461 = vshrl.u32 %v460, 7
        %v462 = vsub.s32 0, %v461
        %v463 = vrot.slane %v439, %v462
        %v464 = vadd.f32 %v459, %v463
        %v465 = vpack.c.bf16 %v464, %v464
        %v466 = vld [vmem:[%s3] sm:$0xf]
        %v467 = vld [vmem:[%s3 + $0x4] sm:$0xf]
        %v468 = vld [vmem:[%s3 + $0x8] sm:$0xf]
        %v469 = vld [vmem:[%s3 + $0xc] sm:$0xf]
        %v470 = vld [vmem:[%s3 + $0x10] sm:$0xf]
        %v471 = vld [vmem:[%s3 + $0x14] sm:$0xf]
        %v472 = vld [vmem:[%s3 + $0x18] sm:$0xf]
        %v473 = vld [vmem:[%s3 + $0x1c] sm:$0xf]
        %v474 = vld [vmem:[%s4] sm:$0x1]
        %v476 = vlaneseq
        %v477 = vshrl.u32 %v476, 7
        %v478 = vsub.s32 0, %v477
        %v479 = vrot.slane %v474, %v478
        %v489 = vunpack.c.l.b16 %v466
        %v490 = vunpack.c.l.b16 %v467
        %v491 = vunpack.c.l.b16 %v468
        %v492 = vunpack.c.l.b16 %v469
        %v493 = vunpack.c.l.b16 %v470
        %v494 = vunpack.c.l.b16 %v471
        %v495 = vunpack.c.l.b16 %v472
        %v496 = vunpack.c.l.b16 %v473
        %v497 = vpack.c.b16 %v490, %v489
        %v498 = vpack.c.b16 %v492, %v491
        %v499 = vpack.c.b16 %v494, %v493
        %v500 = vpack.c.b16 %v496, %v495
        %v506 = vsel %vm394, %v465, 0
        %508 = vmatprep.subr.bf16.mxu0 0
        %509 = vmatpush1.bf16.msra.mxu0 0
        %510 = vmatprep.subr.bf16.mxu0 0
        %511 = vmatpush1.bf16.msra.mxu0 0
        %512 = vmatprep.subr.bf16.mxu0 0
        %513 = vmatpush1.bf16.msra.mxu0 0
        %514 = vmatprep.subr.bf16.mxu0 0
        %515 = vmatpush1.bf16.msra.mxu0 0
        %516 = vmatprep.subr.bf16.mxu0 0
        %517 = vmatpush1.bf16.msra.mxu0 %v500
        %518 = vmatprep.subr.bf16.mxu0 0
        %519 = vmatpush1.bf16.msra.mxu0 %v499
        %520 = vmatprep.subr.bf16.mxu0 0
        %521 = vmatpush1.bf16.msra.mxu0 %v498
        %522 = vmatprep.subr.bf16.mxu0 0
        %523 = vmatpush1.bf16.msra.mxu0 %v497
        %524 = vmatprep.subr.bf16.mxu0 0
        %525 = vmatpush2.bf16.msra.mxu0 0
        %526 = vmatprep.subr.bf16.mxu0 0
        %527 = vmatpush2.bf16.msra.mxu0 0
        %528 = vmatprep.subr.bf16.mxu0 0
        %529 = vmatpush2.bf16.msra.mxu0 0
        %530 = vmatprep.subr.bf16.mxu0 0
        %531 = vmatpush2.bf16.msra.mxu0 0
        %532 = vmatprep.subr.bf16.mxu0 0
        %533 = vmatpush2.bf16.msra.mxu0 0
        %534 = vmatprep.subr.bf16.mxu0 0
        %535 = vmatpush2.bf16.msra.mxu0 0
        %536 = vmatprep.subr.bf16.mxu0 0
        %537 = vmatpush2.bf16.msra.mxu0 0
        %538 = vmatprep.subr.bf16.mxu0 0
        %539 = vmatpush2.bf16.msra.mxu0 0
        %540 = vmatprep.mubr.bf16.mxu0 0
        %541 = vmatmul.mubr.bf16.gmra.mxu0 %v506
        %v542 = vpop.f32.mrf.mxu0
        %v543 = vadd.f32 %v479, %v542
        %v544 = vpop.f32.mrf.mxu0
        %v545 = vpop.f32.mrf.mxu0
        %v546 = vpop.f32.mrf.mxu0
        %547 = vdwg.mxu0
        %s548 = scalar_lea.vmem %s3, 32
        %v549 = vld [vmem:[%s548] sm:$0xf]
        %v550 = vld [vmem:[%s548 + $0x4] sm:$0xf]
        %v551 = vld [vmem:[%s548 + $0x8] sm:$0xf]
        %v552 = vld [vmem:[%s548 + $0xc] sm:$0xf]
        %v553 = vld [vmem:[%s548 + $0x10] sm:$0xf]
        %v554 = vld [vmem:[%s548 + $0x14] sm:$0xf]
        %v555 = vld [vmem:[%s548 + $0x18] sm:$0xf]
        %v556 = vld [vmem:[%s548 + $0x1c] sm:$0xf]
        %s557 = scalar_lea.vmem %s4, 1
        %v558 = vld [vmem:[%s557] sm:$0x1]
        %v560 = vlaneseq
        %v561 = vshrl.u32 %v560, 7
        %v562 = vsub.s32 0, %v561
        %v563 = vrot.slane %v558, %v562
        %v573 = vunpack.c.l.b16 %v549
        %v574 = vunpack.c.l.b16 %v550
        %v575 = vunpack.c.l.b16 %v551
        %v576 = vunpack.c.l.b16 %v552
        %v577 = vunpack.c.l.b16 %v553
        %v578 = vunpack.c.l.b16 %v554
        %v579 = vunpack.c.l.b16 %v555
        %v580 = vunpack.c.l.b16 %v556
        %v581 = vpack.c.b16 %v574, %v573
        %v582 = vpack.c.b16 %v576, %v575
        %v583 = vpack.c.b16 %v578, %v577
        %v584 = vpack.c.b16 %v580, %v579
        %589 = vmatprep.subr.bf16.mxu0 0
        %590 = vmatpush1.bf16.msra.mxu0 0
        %591 = vmatprep.subr.bf16.mxu0 0
        %592 = vmatpush1.bf16.msra.mxu0 0
        %593 = vmatprep.subr.bf16.mxu0 0
        %594 = vmatpush1.bf16.msra.mxu0 0
        %595 = vmatprep.subr.bf16.mxu0 0
        %596 = vmatpush1.bf16.msra.mxu0 0
        %597 = vmatprep.subr.bf16.mxu0 0
        %598 = vmatpush1.bf16.msra.mxu0 %v584
        %599 = vmatprep.subr.bf16.mxu0 0
        %600 = vmatpush1.bf16.msra.mxu0 %v583
        %601 = vmatprep.subr.bf16.mxu0 0
        %602 = vmatpush1.bf16.msra.mxu0 %v582
        %603 = vmatprep.subr.bf16.mxu0 0
        %604 = vmatpush1.bf16.msra.mxu0 %v581
        %605 = vmatprep.subr.bf16.mxu0 0
        %606 = vmatpush2.bf16.msra.mxu0 0
        %607 = vmatprep.subr.bf16.mxu0 0
        %608 = vmatpush2.bf16.msra.mxu0 0
        %609 = vmatprep.subr.bf16.mxu0 0
        %610 = vmatpush2.bf16.msra.mxu0 0
        %611 = vmatprep.subr.bf16.mxu0 0
        %612 = vmatpush2.bf16.msra.mxu0 0
        %613 = vmatprep.subr.bf16.mxu0 0
        %614 = vmatpush2.bf16.msra.mxu0 0
        %615 = vmatprep.subr.bf16.mxu0 0
        %616 = vmatpush2.bf16.msra.mxu0 0
        %617 = vmatprep.subr.bf16.mxu0 0
        %618 = vmatpush2.bf16.msra.mxu0 0
        %619 = vmatprep.subr.bf16.mxu0 0
        %620 = vmatpush2.bf16.msra.mxu0 0
        %621 = vmatprep.mubr.bf16.mxu0 0
        %622 = vmatmul.mubr.bf16.gmra.mxu0 %v506
        %v623 = vpop.f32.mrf.mxu0
        %v624 = vadd.f32 %v563, %v623
        %v625 = vpop.f32.mrf.mxu0
        %v626 = vpop.f32.mrf.mxu0
        %v627 = vpop.f32.mrf.mxu0
        %628 = vdwg.mxu0
        %s629 = scalar_lea.vmem %s3, 64
        %v630 = vld [vmem:[%s629] sm:$0xf]
        %v631 = vld [vmem:[%s629 + $0x4] sm:$0xf]
        %v632 = vld [vmem:[%s629 + $0x8] sm:$0xf]
        %v633 = vld [vmem:[%s629 + $0xc] sm:$0xf]
        %v634 = vld [vmem:[%s629 + $0x10] sm:$0xf]
        %v635 = vld [vmem:[%s629 + $0x14] sm:$0xf]
        %v636 = vld [vmem:[%s629 + $0x18] sm:$0xf]
        %v637 = vld [vmem:[%s629 + $0x1c] sm:$0xf]
        %s638 = scalar_lea.vmem %s4, 2
        %v639 = vld [vmem:[%s638] sm:$0x1]
        %v641 = vlaneseq
        %v642 = vshrl.u32 %v641, 7
        %v643 = vsub.s32 0, %v642
        %v644 = vrot.slane %v639, %v643
        %v654 = vunpack.c.l.b16 %v630
        %v655 = vunpack.c.l.b16 %v631
        %v656 = vunpack.c.l.b16 %v632
        %v657 = vunpack.c.l.b16 %v633
        %v658 = vunpack.c.l.b16 %v634
        %v659 = vunpack.c.l.b16 %v635
        %v660 = vunpack.c.l.b16 %v636
        %v661 = vunpack.c.l.b16 %v637
        %v662 = vpack.c.b16 %v655, %v654
        %v663 = vpack.c.b16 %v657, %v656
        %v664 = vpack.c.b16 %v659, %v658
        %v665 = vpack.c.b16 %v661, %v660
        %670 = vmatprep.subr.bf16.mxu0 0
        %671 = vmatpush1.bf16.msra.mxu0 0
        %672 = vmatprep.subr.bf16.mxu0 0
        %673 = vmatpush1.bf16.msra.mxu0 0
        %674 = vmatprep.subr.bf16.mxu0 0
        %675 = vmatpush1.bf16.msra.mxu0 0
        %676 = vmatprep.subr.bf16.mxu0 0
        %677 = vmatpush1.bf16.msra.mxu0 0
        %678 = vmatprep.subr.bf16.mxu0 0
        %679 = vmatpush1.bf16.msra.mxu0 %v665
        %680 = vmatprep.subr.bf16.mxu0 0
        %681 = vmatpush1.bf16.msra.mxu0 %v664
        %682 = vmatprep.subr.bf16.mxu0 0
        %683 = vmatpush1.bf16.msra.mxu0 %v663
        %684 = vmatprep.subr.bf16.mxu0 0
        %685 = vmatpush1.bf16.msra.mxu0 %v662
        %686 = vmatprep.subr.bf16.mxu0 0
        %687 = vmatpush2.bf16.msra.mxu0 0
        %688 = vmatprep.subr.bf16.mxu0 0
        %689 = vmatpush2.bf16.msra.mxu0 0
        %690 = vmatprep.subr.bf16.mxu0 0
        %691 = vmatpush2.bf16.msra.mxu0 0
        %692 = vmatprep.subr.bf16.mxu0 0
        %693 = vmatpush2.bf16.msra.mxu0 0
        %694 = vmatprep.subr.bf16.mxu0 0
        %695 = vmatpush2.bf16.msra.mxu0 0
        %696 = vmatprep.subr.bf16.mxu0 0
        %697 = vmatpush2.bf16.msra.mxu0 0
        %698 = vmatprep.subr.bf16.mxu0 0
        %699 = vmatpush2.bf16.msra.mxu0 0
        %700 = vmatprep.subr.bf16.mxu0 0
        %701 = vmatpush2.bf16.msra.mxu0 0
        %702 = vmatprep.mubr.bf16.mxu0 0
        %703 = vmatmul.mubr.bf16.gmra.mxu0 %v506
        %v704 = vpop.f32.mrf.mxu0
        %v705 = vadd.f32 %v644, %v704
        %v706 = vpop.f32.mrf.mxu0
        %v707 = vpop.f32.mrf.mxu0
        %v708 = vpop.f32.mrf.mxu0
        %709 = vdwg.mxu0
        %vm710 = vcmask 261120
        %v712 = vsel %vm710, %v543, 0
        %v715 = vsel %vm710, %v624, 0
        %717 = vmatprep.subr.mxu0 0.0
        %718 = vmatpush1.xpose.msra.mxu0 0.0
        %719 = vmatprep.subr.mxu0 0.0
        %720 = vmatpush1.xpose.msra.mxu0 0.0
        %721 = vmatprep.subr.mxu0 0.0
        %722 = vmatpush1.xpose.msra.mxu0 0.0
        %723 = vmatprep.subr.mxu0 0.0
        %724 = vmatpush1.xpose.msra.mxu0 0.0
        %725 = vmatprep.subr.mxu0 0.0
        %726 = vmatpush1.xpose.msra.mxu0 0.0
        %727 = vmatprep.subr.mxu0 0.0
        %728 = vmatpush1.xpose.msra.mxu0 0.0
        %729 = vmatprep.subr.mxu0 0.0
        %730 = vmatpush1.xpose.msra.mxu0 0.0
        %731 = vmatprep.subr.mxu0 0.0
        %732 = vmatpush1.xpose.msra.mxu0 0.0
        %733 = vmatprep.subr.mxu0 0.0
        %734 = vmatpush1.xpose.msra.mxu0 0.0
        %735 = vmatprep.subr.mxu0 0.0
        %736 = vmatpush1.xpose.msra.mxu0 0.0
        %737 = vmatprep.subr.mxu0 0.0
        %738 = vmatpush1.xpose.msra.mxu0 0.0
        %739 = vmatprep.subr.mxu0 0.0
        %740 = vmatpush1.xpose.msra.mxu0 0.0
        %741 = vmatprep.subr.mxu0 0.0
        %742 = vmatpush1.xpose.msra.mxu0 0.0
        %743 = vmatprep.subr.mxu0 0.0
        %744 = vmatpush1.xpose.msra.mxu0 0.0
        %745 = vmatprep.subr.mxu0 0.0
        %746 = vmatpush1.xpose.msra.mxu0 0.0
        %747 = vmatprep.subr.mxu0 0.0
        %748 = vmatpush1.xpose.msra.mxu0 %v715
        %749 = vmatprep.subr.mxu0 0.0
        %750 = vmatpush2.xpose.msra.mxu0 0.0
        %751 = vmatprep.subr.mxu0 0.0
        %752 = vmatpush2.xpose.msra.mxu0 0.0
        %753 = vmatprep.subr.mxu0 0.0
        %754 = vmatpush2.xpose.msra.mxu0 0.0
        %755 = vmatprep.subr.mxu0 0.0
        %756 = vmatpush2.xpose.msra.mxu0 0.0
        %757 = vmatprep.subr.mxu0 0.0
        %758 = vmatpush2.xpose.msra.mxu0 0.0
        %759 = vmatprep.subr.mxu0 0.0
        %760 = vmatpush2.xpose.msra.mxu0 0.0
        %761 = vmatprep.subr.mxu0 0.0
        %762 = vmatpush2.xpose.msra.mxu0 0.0
        %763 = vmatprep.subr.mxu0 0.0
        %764 = vmatpush2.xpose.msra.mxu0 0.0
        %765 = vmatprep.subr.mxu0 0.0
        %766 = vmatpush2.xpose.msra.mxu0 0.0
        %767 = vmatprep.subr.mxu0 0.0
        %768 = vmatpush2.xpose.msra.mxu0 0.0
        %769 = vmatprep.subr.mxu0 0.0
        %770 = vmatpush2.xpose.msra.mxu0 0.0
        %771 = vmatprep.subr.mxu0 0.0
        %772 = vmatpush2.xpose.msra.mxu0 0.0
        %773 = vmatprep.subr.mxu0 0.0
        %774 = vmatpush2.xpose.msra.mxu0 0.0
        %775 = vmatprep.subr.mxu0 0.0
        %776 = vmatpush2.xpose.msra.mxu0 0.0
        %777 = vmatprep.subr.mxu0 0.0
        %778 = vmatpush2.xpose.msra.mxu0 0.0
        %779 = vmatprep.subr.mxu0 0.0
        %780 = vmatpush2.xpose.msra.mxu0 0.0
        %781 = vmatprep.mubr.f32.mxu0 0.0
        %782 = vmatmul.mubr.f32.gmra.mxu0 %v712
        %v783 = vpop.f32.mrf.mxu0
        %v784 = vadd.f32 0.0, %v783
        %v785 = vpop.f32.mrf.mxu0
        %786 = vdwg.mxu0
        %vm787 = vcmask 36864
        %v788 = vsel %vm787, %v784, -inf
        %789 = vmax.xlane.f32.xlu0 %v788
        %v790 = vpop.xlane.xlu0 %789
        %v791 = vsub.f32 %v784, %v790
        %v792 = vmul.f32 %v791, 1.442695
        %v793 = vpow.pop %v792
        %v794 = vsel %vm787, %v793, 0.0
        %795 = vadd.xlane.f32.xlu0 %v794
        %v796 = vpop.xlane.xlu0 %795
        %v797 = vrcp.pop %v796
        %v798 = vmul.f32 %v793, %v797
        %vm799 = vcmask 39936
        %v801 = vsel %vm799, %v798, 0
        %vm803 = vcmask 1044480
        %v805 = vsel %vm803, %v705, 0
        %807 = vmatprep.subr.mxu0 0.0
        %808 = vmatpush1.msra.mxu0 0.0
        %809 = vmatprep.subr.mxu0 0.0
        %810 = vmatpush1.msra.mxu0 0.0
        %811 = vmatprep.subr.mxu0 0.0
        %812 = vmatpush1.msra.mxu0 0.0
        %813 = vmatprep.subr.mxu0 0.0
        %814 = vmatpush1.msra.mxu0 0.0
        %815 = vmatprep.subr.mxu0 0.0
        %816 = vmatpush1.msra.mxu0 0.0
        %817 = vmatprep.subr.mxu0 0.0
        %818 = vmatpush1.msra.mxu0 0.0
        %819 = vmatprep.subr.mxu0 0.0
        %820 = vmatpush1.msra.mxu0 0.0
        %821 = vmatprep.subr.mxu0 0.0
        %822 = vmatpush1.msra.mxu0 0.0
        %823 = vmatprep.subr.mxu0 0.0
        %824 = vmatpush1.msra.mxu0 0.0
        %825 = vmatprep.subr.mxu0 0.0
        %826 = vmatpush1.msra.mxu0 0.0
        %827 = vmatprep.subr.mxu0 0.0
        %828 = vmatpush1.msra.mxu0 0.0
        %829 = vmatprep.subr.mxu0 0.0
        %830 = vmatpush1.msra.mxu0 0.0
        %831 = vmatprep.subr.mxu0 0.0
        %832 = vmatpush1.msra.mxu0 0.0
        %833 = vmatprep.subr.mxu0 0.0
        %834 = vmatpush1.msra.mxu0 0.0
        %835 = vmatprep.subr.mxu0 0.0
        %836 = vmatpush1.msra.mxu0 0.0
        %837 = vmatprep.subr.mxu0 0.0
        %838 = vmatpush1.msra.mxu0 %v805
        %839 = vmatprep.subr.mxu0 0.0
        %840 = vmatpush2.msra.mxu0 0.0
        %841 = vmatprep.subr.mxu0 0.0
        %842 = vmatpush2.msra.mxu0 0.0
        %843 = vmatprep.subr.mxu0 0.0
        %844 = vmatpush2.msra.mxu0 0.0
        %845 = vmatprep.subr.mxu0 0.0
        %846 = vmatpush2.msra.mxu0 0.0
        %847 = vmatprep.subr.mxu0 0.0
        %848 = vmatpush2.msra.mxu0 0.0
        %849 = vmatprep.subr.mxu0 0.0
        %850 = vmatpush2.msra.mxu0 0.0
        %851 = vmatprep.subr.mxu0 0.0
        %852 = vmatpush2.msra.mxu0 0.0
        %853 = vmatprep.subr.mxu0 0.0
        %854 = vmatpush2.msra.mxu0 0.0
        %855 = vmatprep.subr.mxu0 0.0
        %856 = vmatpush2.msra.mxu0 0.0
        %857 = vmatprep.subr.mxu0 0.0
        %858 = vmatpush2.msra.mxu0 0.0
        %859 = vmatprep.subr.mxu0 0.0
        %860 = vmatpush2.msra.mxu0 0.0
        %861 = vmatprep.subr.mxu0 0.0
        %862 = vmatpush2.msra.mxu0 0.0
        %863 = vmatprep.subr.mxu0 0.0
        %864 = vmatpush2.msra.mxu0 0.0
        %865 = vmatprep.subr.mxu0 0.0
        %866 = vmatpush2.msra.mxu0 0.0
        %867 = vmatprep.subr.mxu0 0.0
        %868 = vmatpush2.msra.mxu0 0.0
        %869 = vmatprep.subr.mxu0 0.0
        %870 = vmatpush2.msra.mxu0 0.0
        %871 = vmatprep.mubr.f32.mxu0 0.0
        %872 = vmatmul.mubr.f32.gmra.mxu0 %v801
        %v873 = vpop.f32.mrf.mxu0
        %v874 = vadd.f32 0.0, %v873
        %v875 = vpop.f32.mrf.mxu0
        %876 = vdwg.mxu0
        %v877 = vpack.c.bf16 %v874, %v874
        %s878 = scalar_lea.vmem %s3, 96
        %v879 = vld [vmem:[%s878] sm:$0xf]
        %v880 = vld [vmem:[%s878 + $0x4] sm:$0xf]
        %v881 = vld [vmem:[%s878 + $0x8] sm:$0xf]
        %v882 = vld [vmem:[%s878 + $0xc] sm:$0xf]
        %v883 = vld [vmem:[%s878 + $0x10] sm:$0xf]
        %v884 = vld [vmem:[%s878 + $0x14] sm:$0xf]
        %v885 = vld [vmem:[%s878 + $0x18] sm:$0xf]
        %v886 = vld [vmem:[%s878 + $0x1c] sm:$0xf]
        %s887 = scalar_lea.vmem %s3, 128
        %v888 = vld [vmem:[%s887] sm:$0xf]
        %v889 = vld [vmem:[%s887 + $0x4] sm:$0xf]
        %v890 = vld [vmem:[%s887 + $0x8] sm:$0xf]
        %v891 = vld [vmem:[%s887 + $0xc] sm:$0xf]
        %v892 = vld [vmem:[%s887 + $0x10] sm:$0xf]
        %v893 = vld [vmem:[%s887 + $0x14] sm:$0xf]
        %v894 = vld [vmem:[%s887 + $0x18] sm:$0xf]
        %v895 = vld [vmem:[%s887 + $0x1c] sm:$0xf]
        %s896 = scalar_lea.vmem %s4, 3
        %v897 = vld [vmem:[%s896] sm:$0x1]
        %v899 = vlaneseq
        %v900 = vshrl.u32 %v899, 7
        %v901 = vsub.s32 0, %v900
        %v902 = vrot.slane %v897, %v901
        %v912 = vunpack.c.l.b16 %v888
        %v913 = vunpack.c.l.b16 %v889
        %v914 = vunpack.c.l.b16 %v890
        %v915 = vunpack.c.l.b16 %v891
        %v916 = vunpack.c.l.b16 %v892
        %v917 = vunpack.c.l.b16 %v893
        %v918 = vunpack.c.l.b16 %v894
        %v919 = vunpack.c.l.b16 %v895
        %v920 = vpack.c.b16 %v913, %v912
        %v921 = vpack.c.b16 %v915, %v914
        %v922 = vpack.c.b16 %v917, %v916
        %v923 = vpack.c.b16 %v919, %v918
        %928 = vmatprep.subr.bf16.mxu0 0
        %929 = vmatpush1.bf16.msra.mxu0 0
        %930 = vmatprep.subr.bf16.mxu0 0
        %931 = vmatpush1.bf16.msra.mxu0 0
        %932 = vmatprep.subr.bf16.mxu0 0
        %933 = vmatpush1.bf16.msra.mxu0 0
        %934 = vmatprep.subr.bf16.mxu0 0
        %935 = vmatpush1.bf16.msra.mxu0 0
        %936 = vmatprep.subr.bf16.mxu0 0
        %937 = vmatpush1.bf16.msra.mxu0 %v923
        %938 = vmatprep.subr.bf16.mxu0 0
        %939 = vmatpush1.bf16.msra.mxu0 %v922
        %940 = vmatprep.subr.bf16.mxu0 0
        %941 = vmatpush1.bf16.msra.mxu0 %v921
        %942 = vmatprep.subr.bf16.mxu0 0
        %943 = vmatpush1.bf16.msra.mxu0 %v920
        %944 = vmatprep.subr.bf16.mxu0 0
        %945 = vmatpush2.bf16.msra.mxu0 0
        %946 = vmatprep.subr.bf16.mxu0 0
        %947 = vmatpush2.bf16.msra.mxu0 0
        %948 = vmatprep.subr.bf16.mxu0 0
        %949 = vmatpush2.bf16.msra.mxu0 0
        %950 = vmatprep.subr.bf16.mxu0 0
        %951 = vmatpush2.bf16.msra.mxu0 0
        %952 = vmatprep.subr.bf16.mxu0 0
        %953 = vmatpush2.bf16.msra.mxu0 0
        %954 = vmatprep.subr.bf16.mxu0 0
        %955 = vmatpush2.bf16.msra.mxu0 0
        %956 = vmatprep.subr.bf16.mxu0 0
        %957 = vmatpush2.bf16.msra.mxu0 0
        %958 = vmatprep.subr.bf16.mxu0 0
        %959 = vmatpush2.bf16.msra.mxu0 0
        %960 = vmatprep.mubr.bf16.mxu0 0
        %961 = vmatmul.mubr.bf16.gmra.mxu0 %v506
        %v962 = vpop.f32.mrf.mxu0
        %v963 = vadd.f32 %v902, %v962
        %v964 = vpop.f32.mrf.mxu0
        %v965 = vpop.f32.mrf.mxu0
        %v966 = vpop.f32.mrf.mxu0
        %967 = vdwg.mxu0
        %s968 = scalar_lea.vmem %s3, 160
        %v969 = vld [vmem:[%s968] sm:$0xf]
        %v970 = vld [vmem:[%s968 + $0x4] sm:$0xf]
        %v971 = vld [vmem:[%s968 + $0x8] sm:$0xf]
        %v972 = vld [vmem:[%s968 + $0xc] sm:$0xf]
        %v973 = vld [vmem:[%s968 + $0x10] sm:$0xf]
        %v974 = vld [vmem:[%s968 + $0x14] sm:$0xf]
        %v975 = vld [vmem:[%s968 + $0x18] sm:$0xf]
        %v976 = vld [vmem:[%s968 + $0x1c] sm:$0xf]
        %s977 = scalar_lea.vmem %s4, 4
        %v978 = vld [vmem:[%s977] sm:$0x1]
        %v980 = vlaneseq
        %v981 = vshrl.u32 %v980, 7
        %v982 = vsub.s32 0, %v981
        %v983 = vrot.slane %v978, %v982
        %v993 = vunpack.c.l.b16 %v969
        %v994 = vunpack.c.l.b16 %v970
        %v995 = vunpack.c.l.b16 %v971
        %v996 = vunpack.c.l.b16 %v972
        %v997 = vunpack.c.l.b16 %v973
        %v998 = vunpack.c.l.b16 %v974
        %v999 = vunpack.c.l.b16 %v975
        %v1000 = vunpack.c.l.b16 %v976
        %v1001 = vpack.c.b16 %v994, %v993
        %v1002 = vpack.c.b16 %v996, %v995
        %v1003 = vpack.c.b16 %v998, %v997
        %v1004 = vpack.c.b16 %v1000, %v999
        %1009 = vmatprep.subr.bf16.mxu0 0
        %1010 = vmatpush1.bf16.msra.mxu0 0
        %1011 = vmatprep.subr.bf16.mxu0 0
        %1012 = vmatpush1.bf16.msra.mxu0 0
        %1013 = vmatprep.subr.bf16.mxu0 0
        %1014 = vmatpush1.bf16.msra.mxu0 0
        %1015 = vmatprep.subr.bf16.mxu0 0
        %1016 = vmatpush1.bf16.msra.mxu0 0
        %1017 = vmatprep.subr.bf16.mxu0 0
        %1018 = vmatpush1.bf16.msra.mxu0 %v1004
        %1019 = vmatprep.subr.bf16.mxu0 0
        %1020 = vmatpush1.bf16.msra.mxu0 %v1003
        %1021 = vmatprep.subr.bf16.mxu0 0
        %1022 = vmatpush1.bf16.msra.mxu0 %v1002
        %1023 = vmatprep.subr.bf16.mxu0 0
        %1024 = vmatpush1.bf16.msra.mxu0 %v1001
        %1025 = vmatprep.subr.bf16.mxu0 0
        %1026 = vmatpush2.bf16.msra.mxu0 0
        %1027 = vmatprep.subr.bf16.mxu0 0
        %1028 = vmatpush2.bf16.msra.mxu0 0
        %1029 = vmatprep.subr.bf16.mxu0 0
        %1030 = vmatpush2.bf16.msra.mxu0 0
        %1031 = vmatprep.subr.bf16.mxu0 0
        %1032 = vmatpush2.bf16.msra.mxu0 0
        %1033 = vmatprep.subr.bf16.mxu0 0
        %1034 = vmatpush2.bf16.msra.mxu0 0
        %1035 = vmatprep.subr.bf16.mxu0 0
        %1036 = vmatpush2.bf16.msra.mxu0 0
        %1037 = vmatprep.subr.bf16.mxu0 0
        %1038 = vmatpush2.bf16.msra.mxu0 0
        %1039 = vmatprep.subr.bf16.mxu0 0
        %1040 = vmatpush2.bf16.msra.mxu0 0
        %1041 = vmatprep.mubr.bf16.mxu0 0
        %1042 = vmatmul.mubr.bf16.gmra.mxu0 %v506
        %v1043 = vpop.f32.mrf.mxu0
        %v1044 = vadd.f32 %v983, %v1043
        %v1045 = vpop.f32.mrf.mxu0
        %v1046 = vpop.f32.mrf.mxu0
        %v1047 = vpop.f32.mrf.mxu0
        %1048 = vdwg.mxu0
        %s1049 = scalar_lea.vmem %s3, 192
        %v1050 = vld [vmem:[%s1049] sm:$0xf]
        %v1051 = vld [vmem:[%s1049 + $0x4] sm:$0xf]
        %v1052 = vld [vmem:[%s1049 + $0x8] sm:$0xf]
        %v1053 = vld [vmem:[%s1049 + $0xc] sm:$0xf]
        %v1054 = vld [vmem:[%s1049 + $0x10] sm:$0xf]
        %v1055 = vld [vmem:[%s1049 + $0x14] sm:$0xf]
        %v1056 = vld [vmem:[%s1049 + $0x18] sm:$0xf]
        %v1057 = vld [vmem:[%s1049 + $0x1c] sm:$0xf]
        %s1058 = scalar_lea.vmem %s4, 5
        %v1059 = vld [vmem:[%s1058] sm:$0x1]
        %v1061 = vlaneseq
        %v1062 = vshrl.u32 %v1061, 7
        %v1063 = vsub.s32 0, %v1062
        %v1064 = vrot.slane %v1059, %v1063
        %v1074 = vunpack.c.l.b16 %v1050
        %v1075 = vunpack.c.l.b16 %v1051
        %v1076 = vunpack.c.l.b16 %v1052
        %v1077 = vunpack.c.l.b16 %v1053
        %v1078 = vunpack.c.l.b16 %v1054
        %v1079 = vunpack.c.l.b16 %v1055
        %v1080 = vunpack.c.l.b16 %v1056
        %v1081 = vunpack.c.l.b16 %v1057
        %v1082 = vpack.c.b16 %v1075, %v1074
        %v1083 = vpack.c.b16 %v1077, %v1076
        %v1084 = vpack.c.b16 %v1079, %v1078
        %v1085 = vpack.c.b16 %v1081, %v1080
        %1090 = vmatprep.subr.bf16.mxu0 0
        %1091 = vmatpush1.bf16.msra.mxu0 0
        %1092 = vmatprep.subr.bf16.mxu0 0
        %1093 = vmatpush1.bf16.msra.mxu0 0
        %1094 = vmatprep.subr.bf16.mxu0 0
        %1095 = vmatpush1.bf16.msra.mxu0 0
        %1096 = vmatprep.subr.bf16.mxu0 0
        %1097 = vmatpush1.bf16.msra.mxu0 0
        %1098 = vmatprep.subr.bf16.mxu0 0
        %1099 = vmatpush1.bf16.msra.mxu0 %v1085
        %1100 = vmatprep.subr.bf16.mxu0 0
        %1101 = vmatpush1.bf16.msra.mxu0 %v1084
        %1102 = vmatprep.subr.bf16.mxu0 0
        %1103 = vmatpush1.bf16.msra.mxu0 %v1083
        %1104 = vmatprep.subr.bf16.mxu0 0
        %1105 = vmatpush1.bf16.msra.mxu0 %v1082
        %1106 = vmatprep.subr.bf16.mxu0 0
        %1107 = vmatpush2.bf16.msra.mxu0 0
        %1108 = vmatprep.subr.bf16.mxu0 0
        %1109 = vmatpush2.bf16.msra.mxu0 0
        %1110 = vmatprep.subr.bf16.mxu0 0
        %1111 = vmatpush2.bf16.msra.mxu0 0
        %1112 = vmatprep.subr.bf16.mxu0 0
        %1113 = vmatpush2.bf16.msra.mxu0 0
        %1114 = vmatprep.subr.bf16.mxu0 0
        %1115 = vmatpush2.bf16.msra.mxu0 0
        %1116 = vmatprep.subr.bf16.mxu0 0
        %1117 = vmatpush2.bf16.msra.mxu0 0
        %1118 = vmatprep.subr.bf16.mxu0 0
        %1119 = vmatpush2.bf16.msra.mxu0 0
        %1120 = vmatprep.subr.bf16.mxu0 0
        %1121 = vmatpush2.bf16.msra.mxu0 0
        %1122 = vmatprep.mubr.bf16.mxu0 0
        %1123 = vmatmul.mubr.bf16.gmra.mxu0 %v506
        %v1124 = vpop.f32.mrf.mxu0
        %v1125 = vadd.f32 %v1064, %v1124
        %v1126 = vpop.f32.mrf.mxu0
        %v1127 = vpop.f32.mrf.mxu0
        %v1128 = vpop.f32.mrf.mxu0
        %1129 = vdwg.mxu0
        %v1131 = vsel %vm710, %v963, 0
        %v1134 = vsel %vm710, %v1044, 0
        %1136 = vmatprep.subr.mxu0 0.0
        %1137 = vmatpush1.xpose.msra.mxu0 0.0
        %1138 = vmatprep.subr.mxu0 0.0
        %1139 = vmatpush1.xpose.msra.mxu0 0.0
        %1140 = vmatprep.subr.mxu0 0.0
        %1141 = vmatpush1.xpose.msra.mxu0 0.0
        %1142 = vmatprep.subr.mxu0 0.0
        %1143 = vmatpush1.xpose.msra.mxu0 0.0
        %1144 = vmatprep.subr.mxu0 0.0
        %1145 = vmatpush1.xpose.msra.mxu0 0.0
        %1146 = vmatprep.subr.mxu0 0.0
        %1147 = vmatpush1.xpose.msra.mxu0 0.0
        %1148 = vmatprep.subr.mxu0 0.0
        %1149 = vmatpush1.xpose.msra.mxu0 0.0
        %1150 = vmatprep.subr.mxu0 0.0
        %1151 = vmatpush1.xpose.msra.mxu0 0.0
        %1152 = vmatprep.subr.mxu0 0.0
        %1153 = vmatpush1.xpose.msra.mxu0 0.0
        %1154 = vmatprep.subr.mxu0 0.0
        %1155 = vmatpush1.xpose.msra.mxu0 0.0
        %1156 = vmatprep.subr.mxu0 0.0
        %1157 = vmatpush1.xpose.msra.mxu0 0.0
        %1158 = vmatprep.subr.mxu0 0.0
        %1159 = vmatpush1.xpose.msra.mxu0 0.0
        %1160 = vmatprep.subr.mxu0 0.0
        %1161 = vmatpush1.xpose.msra.mxu0 0.0
        %1162 = vmatprep.subr.mxu0 0.0
        %1163 = vmatpush1.xpose.msra.mxu0 0.0
        %1164 = vmatprep.subr.mxu0 0.0
        %1165 = vmatpush1.xpose.msra.mxu0 0.0
        %1166 = vmatprep.subr.mxu0 0.0
        %1167 = vmatpush1.xpose.msra.mxu0 %v1134
        %1168 = vmatprep.subr.mxu0 0.0
        %1169 = vmatpush2.xpose.msra.mxu0 0.0
        %1170 = vmatprep.subr.mxu0 0.0
        %1171 = vmatpush2.xpose.msra.mxu0 0.0
        %1172 = vmatprep.subr.mxu0 0.0
        %1173 = vmatpush2.xpose.msra.mxu0 0.0
        %1174 = vmatprep.subr.mxu0 0.0
        %1175 = vmatpush2.xpose.msra.mxu0 0.0
        %1176 = vmatprep.subr.mxu0 0.0
        %1177 = vmatpush2.xpose.msra.mxu0 0.0
        %1178 = vmatprep.subr.mxu0 0.0
        %1179 = vmatpush2.xpose.msra.mxu0 0.0
        %1180 = vmatprep.subr.mxu0 0.0
        %1181 = vmatpush2.xpose.msra.mxu0 0.0
        %1182 = vmatprep.subr.mxu0 0.0
        %1183 = vmatpush2.xpose.msra.mxu0 0.0
        %1184 = vmatprep.subr.mxu0 0.0
        %1185 = vmatpush2.xpose.msra.mxu0 0.0
        %1186 = vmatprep.subr.mxu0 0.0
        %1187 = vmatpush2.xpose.msra.mxu0 0.0
        %1188 = vmatprep.subr.mxu0 0.0
        %1189 = vmatpush2.xpose.msra.mxu0 0.0
        %1190 = vmatprep.subr.mxu0 0.0
        %1191 = vmatpush2.xpose.msra.mxu0 0.0
        %1192 = vmatprep.subr.mxu0 0.0
        %1193 = vmatpush2.xpose.msra.mxu0 0.0
        %1194 = vmatprep.subr.mxu0 0.0
        %1195 = vmatpush2.xpose.msra.mxu0 0.0
        %1196 = vmatprep.subr.mxu0 0.0
        %1197 = vmatpush2.xpose.msra.mxu0 0.0
        %1198 = vmatprep.subr.mxu0 0.0
        %1199 = vmatpush2.xpose.msra.mxu0 0.0
        %1200 = vmatprep.mubr.f32.mxu0 0.0
        %1201 = vmatmul.mubr.f32.gmra.mxu0 %v1131
        %v1202 = vpop.f32.mrf.mxu0
        %v1203 = vadd.f32 0.0, %v1202
        %v1204 = vpop.f32.mrf.mxu0
        %1205 = vdwg.mxu0
        %v1206 = vsel %vm787, %v1203, -inf
        %1207 = vmax.xlane.f32.xlu0 %v1206
        %v1208 = vpop.xlane.xlu0 %1207
        %v1209 = vsub.f32 %v1203, %v1208
        %v1210 = vmul.f32 %v1209, 1.442695
        %v1211 = vpow.pop %v1210
        %v1212 = vsel %vm787, %v1211, 0.0
        %1213 = vadd.xlane.f32.xlu0 %v1212
        %v1214 = vpop.xlane.xlu0 %1213
        %v1215 = vrcp.pop %v1214
        %v1216 = vmul.f32 %v1211, %v1215
        %v1218 = vsel %vm799, %v1216, 0
        %v1221 = vsel %vm803, %v1125, 0
        %1223 = vmatprep.subr.mxu0 0.0
        %1224 = vmatpush1.msra.mxu0 0.0
        %1225 = vmatprep.subr.mxu0 0.0
        %1226 = vmatpush1.msra.mxu0 0.0
        %1227 = vmatprep.subr.mxu0 0.0
        %1228 = vmatpush1.msra.mxu0 0.0
        %1229 = vmatprep.subr.mxu0 0.0
        %1230 = vmatpush1.msra.mxu0 0.0
        %1231 = vmatprep.subr.mxu0 0.0
        %1232 = vmatpush1.msra.mxu0 0.0
        %1233 = vmatprep.subr.mxu0 0.0
        %1234 = vmatpush1.msra.mxu0 0.0
        %1235 = vmatprep.subr.mxu0 0.0
        %1236 = vmatpush1.msra.mxu0 0.0
        %1237 = vmatprep.subr.mxu0 0.0
        %1238 = vmatpush1.msra.mxu0 0.0
        %1239 = vmatprep.subr.mxu0 0.0
        %1240 = vmatpush1.msra.mxu0 0.0
        %1241 = vmatprep.subr.mxu0 0.0
        %1242 = vmatpush1.msra.mxu0 0.0
        %1243 = vmatprep.subr.mxu0 0.0
        %1244 = vmatpush1.msra.mxu0 0.0
        %1245 = vmatprep.subr.mxu0 0.0
        %1246 = vmatpush1.msra.mxu0 0.0
        %1247 = vmatprep.subr.mxu0 0.0
        %1248 = vmatpush1.msra.mxu0 0.0
        %1249 = vmatprep.subr.mxu0 0.0
        %1250 = vmatpush1.msra.mxu0 0.0
        %1251 = vmatprep.subr.mxu0 0.0
        %1252 = vmatpush1.msra.mxu0 0.0
        %1253 = vmatprep.subr.mxu0 0.0
        %1254 = vmatpush1.msra.mxu0 %v1221
        %1255 = vmatprep.subr.mxu0 0.0
        %1256 = vmatpush2.msra.mxu0 0.0
        %1257 = vmatprep.subr.mxu0 0.0
        %1258 = vmatpush2.msra.mxu0 0.0
        %1259 = vmatprep.subr.mxu0 0.0
        %1260 = vmatpush2.msra.mxu0 0.0
        %1261 = vmatprep.subr.mxu0 0.0
        %1262 = vmatpush2.msra.mxu0 0.0
        %1263 = vmatprep.subr.mxu0 0.0
        %1264 = vmatpush2.msra.mxu0 0.0
        %1265 = vmatprep.subr.mxu0 0.0
        %1266 = vmatpush2.msra.mxu0 0.0
        %1267 = vmatprep.subr.mxu0 0.0
        %1268 = vmatpush2.msra.mxu0 0.0
        %1269 = vmatprep.subr.mxu0 0.0
        %1270 = vmatpush2.msra.mxu0 0.0
        %1271 = vmatprep.subr.mxu0 0.0
        %1272 = vmatpush2.msra.mxu0 0.0
        %1273 = vmatprep.subr.mxu0 0.0
        %1274 = vmatpush2.msra.mxu0 0.0
        %1275 = vmatprep.subr.mxu0 0.0
        %1276 = vmatpush2.msra.mxu0 0.0
        %1277 = vmatprep.subr.mxu0 0.0
        %1278 = vmatpush2.msra.mxu0 0.0
        %1279 = vmatprep.subr.mxu0 0.0
        %1280 = vmatpush2.msra.mxu0 0.0
        %1281 = vmatprep.subr.mxu0 0.0
        %1282 = vmatpush2.msra.mxu0 0.0
        %1283 = vmatprep.subr.mxu0 0.0
        %1284 = vmatpush2.msra.mxu0 0.0
        %1285 = vmatprep.subr.mxu0 0.0
        %1286 = vmatpush2.msra.mxu0 0.0
        %1287 = vmatprep.mubr.f32.mxu0 0.0
        %1288 = vmatmul.mubr.f32.gmra.mxu0 %v1218
        %v1289 = vpop.f32.mrf.mxu0
        %v1290 = vadd.f32 0.0, %v1289
        %v1291 = vpop.f32.mrf.mxu0
        %1292 = vdwg.mxu0
        %v1293 = vpack.c.bf16 %v1290, %v1290
        %s1294 = scalar_lea.vmem %s3, 224
        %v1295 = vld [vmem:[%s1294] sm:$0xf]
        %v1296 = vld [vmem:[%s1294 + $0x4] sm:$0xf]
        %v1297 = vld [vmem:[%s1294 + $0x8] sm:$0xf]
        %v1298 = vld [vmem:[%s1294 + $0xc] sm:$0xf]
        %v1299 = vld [vmem:[%s1294 + $0x10] sm:$0xf]
        %v1300 = vld [vmem:[%s1294 + $0x14] sm:$0xf]
        %v1301 = vld [vmem:[%s1294 + $0x18] sm:$0xf]
        %v1302 = vld [vmem:[%s1294 + $0x1c] sm:$0xf]
        %v1311 = vunpack.c.l.b16 %v1295
        %v1312 = vunpack.c.l.b16 %v1296
        %v1313 = vunpack.c.l.b16 %v1297
        %v1314 = vunpack.c.l.b16 %v1298
        %v1315 = vunpack.c.l.b16 %v1299
        %v1316 = vunpack.c.l.b16 %v1300
        %v1317 = vunpack.c.l.b16 %v1301
        %v1318 = vunpack.c.l.b16 %v1302
        %v1319 = vpack.c.b16 %v1312, %v1311
        %v1320 = vpack.c.b16 %v1314, %v1313
        %v1321 = vpack.c.b16 %v1316, %v1315
        %v1322 = vpack.c.b16 %v1318, %v1317
        %v1324 = vsel %vm710, %v1293, 0
        %v1327 = vsel %vm710, %v1319, 0
        %v1330 = vsel %vm710, %v1320, 0
        %v1333 = vsel %vm710, %v1321, 0
        %v1336 = vsel %vm710, %v1322, 0
        %1338 = vmatprep.subr.bf16.mxu0 0
        %1339 = vmatpush1.bf16.xpose.msra.mxu0 0
        %1340 = vmatprep.subr.bf16.mxu0 0
        %1341 = vmatpush1.bf16.xpose.msra.mxu0 0
        %1342 = vmatprep.subr.bf16.mxu0 0
        %1343 = vmatpush1.bf16.xpose.msra.mxu0 0
        %1344 = vmatprep.subr.bf16.mxu0 0
        %1345 = vmatpush1.bf16.xpose.msra.mxu0 0
        %1346 = vmatprep.subr.bf16.mxu0 0
        %1347 = vmatpush1.bf16.xpose.msra.mxu0 %v1336
        %1348 = vmatprep.subr.bf16.mxu0 0
        %1349 = vmatpush1.bf16.xpose.msra.mxu0 %v1333
        %1350 = vmatprep.subr.bf16.mxu0 0
        %1351 = vmatpush1.bf16.xpose.msra.mxu0 %v1330
        %1352 = vmatprep.subr.bf16.mxu0 0
        %1353 = vmatpush1.bf16.xpose.msra.mxu0 %v1327
        %1354 = vmatprep.subr.bf16.mxu0 0
        %1355 = vmatpush2.bf16.xpose.msra.mxu0 0
        %1356 = vmatprep.subr.bf16.mxu0 0
        %1357 = vmatpush2.bf16.xpose.msra.mxu0 0
        %1358 = vmatprep.subr.bf16.mxu0 0
        %1359 = vmatpush2.bf16.xpose.msra.mxu0 0
        %1360 = vmatprep.subr.bf16.mxu0 0
        %1361 = vmatpush2.bf16.xpose.msra.mxu0 0
        %1362 = vmatprep.subr.bf16.mxu0 0
        %1363 = vmatpush2.bf16.xpose.msra.mxu0 0
        %1364 = vmatprep.subr.bf16.mxu0 0
        %1365 = vmatpush2.bf16.xpose.msra.mxu0 0
        %1366 = vmatprep.subr.bf16.mxu0 0
        %1367 = vmatpush2.bf16.xpose.msra.mxu0 0
        %1368 = vmatprep.subr.bf16.mxu0 0
        %1369 = vmatpush2.bf16.xpose.msra.mxu0 0
        %1370 = vmatprep.mubr.bf16.mxu0 0
        %1371 = vmatmul.mubr.bf16.gmra.mxu0 %v1324
        %v1372 = vpop.f32.mrf.mxu0
        %v1373 = vadd.f32 0.0, %v1372
        %v1374 = vpop.f32.mrf.mxu0
        %v1375 = vpop.f32.mrf.mxu0
        %v1376 = vpop.f32.mrf.mxu0
        %1377 = vdwg.mxu0
        %v1386 = vunpack.c.l.b16 %v879
        %v1387 = vunpack.c.l.b16 %v880
        %v1388 = vunpack.c.l.b16 %v881
        %v1389 = vunpack.c.l.b16 %v882
        %v1390 = vunpack.c.l.b16 %v883
        %v1391 = vunpack.c.l.b16 %v884
        %v1392 = vunpack.c.l.b16 %v885
        %v1393 = vunpack.c.l.b16 %v886
        %v1394 = vpack.c.b16 %v1387, %v1386
        %v1395 = vpack.c.b16 %v1389, %v1388
        %v1396 = vpack.c.b16 %v1391, %v1390
        %v1397 = vpack.c.b16 %v1393, %v1392
        %v1399 = vsel %vm710, %v877, 0
        %v1402 = vsel %vm710, %v1394, 0
        %v1405 = vsel %vm710, %v1395, 0
        %v1408 = vsel %vm710, %v1396, 0
        %v1411 = vsel %vm710, %v1397, 0
        %1413 = vmatprep.subr.bf16.mxu0 0
        %1414 = vmatpush1.bf16.xpose.msra.mxu0 0
        %1415 = vmatprep.subr.bf16.mxu0 0
        %1416 = vmatpush1.bf16.xpose.msra.mxu0 0
        %1417 = vmatprep.subr.bf16.mxu0 0
        %1418 = vmatpush1.bf16.xpose.msra.mxu0 0
        %1419 = vmatprep.subr.bf16.mxu0 0
        %1420 = vmatpush1.bf16.xpose.msra.mxu0 0
        %1421 = vmatprep.subr.bf16.mxu0 0
        %1422 = vmatpush1.bf16.xpose.msra.mxu0 %v1411
        %1423 = vmatprep.subr.bf16.mxu0 0
        %1424 = vmatpush1.bf16.xpose.msra.mxu0 %v1408
        %1425 = vmatprep.subr.bf16.mxu0 0
        %1426 = vmatpush1.bf16.xpose.msra.mxu0 %v1405
        %1427 = vmatprep.subr.bf16.mxu0 0
        %1428 = vmatpush1.bf16.xpose.msra.mxu0 %v1402
        %1429 = vmatprep.subr.bf16.mxu0 0
        %1430 = vmatpush2.bf16.xpose.msra.mxu0 0
        %1431 = vmatprep.subr.bf16.mxu0 0
        %1432 = vmatpush2.bf16.xpose.msra.mxu0 0
        %1433 = vmatprep.subr.bf16.mxu0 0
        %1434 = vmatpush2.bf16.xpose.msra.mxu0 0
        %1435 = vmatprep.subr.bf16.mxu0 0
        %1436 = vmatpush2.bf16.xpose.msra.mxu0 0
        %1437 = vmatprep.subr.bf16.mxu0 0
        %1438 = vmatpush2.bf16.xpose.msra.mxu0 0
        %1439 = vmatprep.subr.bf16.mxu0 0
        %1440 = vmatpush2.bf16.xpose.msra.mxu0 0
        %1441 = vmatprep.subr.bf16.mxu0 0
        %1442 = vmatpush2.bf16.xpose.msra.mxu0 0
        %1443 = vmatprep.subr.bf16.mxu0 0
        %1444 = vmatpush2.bf16.xpose.msra.mxu0 0
        %1445 = vmatprep.mubr.bf16.mxu0 0
        %1446 = vmatmul.mubr.bf16.gmra.mxu0 %v1399
        %v1447 = vpop.f32.mrf.mxu0
        %v1448 = vadd.f32 %v1373, %v1447
        %v1449 = vpop.f32.mrf.mxu0
        %v1450 = vpop.f32.mrf.mxu0
        %v1451 = vpop.f32.mrf.mxu0
        %1452 = vdwg.mxu0
        %v1453 = vadd.f32 %v433, %v1448
        %v1454 = vld [vmem:[%s2 + $0xa] sm:$0x1]
        %v1455 = vlaneseq
        %v1456 = vshrl.u32 %v1455, 7
        %v1457 = vsub.s32 0, %v1456
        %v1458 = vrot.slane %v1454, %v1457
        %v1459 = vadd.f32 %v1453, %v1458
        %v1460 = vld [vmem:[%s2 + $0xb] sm:$0x1]
        %v1461 = vld [vmem:[%s2 + $0xc] sm:$0x1]
        %v1462 = vsel %vm440, %v1459, 0.0
        %1463 = vadd.xlane.f32.xlu0 %v1462
        %v1464 = vpop.xlane.xlu0 %1463
        %v1465 = vmul.f32 %v1464, %v444
        %v1466 = vsub.f32 %v1459, %v1465
        %v1467 = vmul.f32 %v1466, %v1466
        %v1468 = vsel %vm440, %v1467, 0.0
        %1469 = vadd.xlane.f32.xlu0 %v1468
        %v1470 = vpop.xlane.xlu0 %1469
        %v1471 = vmul.f32 %v1470, %v444
        %v1472 = vadd.f32 %v1471, 1e-12
        %v1473 = vrsqrt.pop %v1472
        %v1474 = vmul.f32 %v1466, %v1473
        %v1475 = vlaneseq
        %v1476 = vshrl.u32 %v1475, 7
        %v1477 = vsub.s32 0, %v1476
        %v1478 = vrot.slane %v1460, %v1477
        %v1479 = vmul.f32 %v1474, %v1478
        %v1480 = vlaneseq
        %v1481 = vshrl.u32 %v1480, 7
        %v1482 = vsub.s32 0, %v1481
        %v1483 = vrot.slane %v1461, %v1482
        %v1484 = vadd.f32 %v1479, %v1483
        %v1485 = vpack.c.bf16 %v1484, %v1484
        %v1486 = vld [vmem:[%s5] sm:$0xf]
        %v1487 = vld [vmem:[%s5 + $0x4] sm:$0xf]
        %v1488 = vld [vmem:[%s5 + $0x8] sm:$0xf]
        %v1489 = vld [vmem:[%s5 + $0xc] sm:$0xf]
        %v1490 = vld [vmem:[%s5 + $0x10] sm:$0xf]
        %v1491 = vld [vmem:[%s5 + $0x14] sm:$0xf]
        %v1492 = vld [vmem:[%s5 + $0x18] sm:$0xf]
        %v1493 = vld [vmem:[%s5 + $0x1c] sm:$0xf]
        %v1494 = vld [vmem:[%s2 + $0xd] sm:$0x1]
        %v1495 = vlaneseq
        %v1496 = vshrl.u32 %v1495, 7
        %v1497 = vsub.s32 0, %v1496
        %v1498 = vrot.slane %v1494, %v1497
        %v1507 = vunpack.c.l.b16 %v1486
        %v1508 = vunpack.c.l.b16 %v1487
        %v1509 = vunpack.c.l.b16 %v1488
        %v1510 = vunpack.c.l.b16 %v1489
        %v1511 = vunpack.c.l.b16 %v1490
        %v1512 = vunpack.c.l.b16 %v1491
        %v1513 = vunpack.c.l.b16 %v1492
        %v1514 = vunpack.c.l.b16 %v1493
        %v1515 = vpack.c.b16 %v1508, %v1507
        %v1516 = vpack.c.b16 %v1510, %v1509
        %v1517 = vpack.c.b16 %v1512, %v1511
        %v1518 = vpack.c.b16 %v1514, %v1513
        %v1524 = vsel %vm394, %v1485, 0
        %1526 = vmatprep.subr.bf16.mxu0 0
        %1527 = vmatpush1.bf16.msra.mxu0 0
        %1528 = vmatprep.subr.bf16.mxu0 0
        %1529 = vmatpush1.bf16.msra.mxu0 0
        %1530 = vmatprep.subr.bf16.mxu0 0
        %1531 = vmatpush1.bf16.msra.mxu0 0
        %1532 = vmatprep.subr.bf16.mxu0 0
        %1533 = vmatpush1.bf16.msra.mxu0 0
        %1534 = vmatprep.subr.bf16.mxu0 0
        %1535 = vmatpush1.bf16.msra.mxu0 %v1518
        %1536 = vmatprep.subr.bf16.mxu0 0
        %1537 = vmatpush1.bf16.msra.mxu0 %v1517
        %1538 = vmatprep.subr.bf16.mxu0 0
        %1539 = vmatpush1.bf16.msra.mxu0 %v1516
        %1540 = vmatprep.subr.bf16.mxu0 0
        %1541 = vmatpush1.bf16.msra.mxu0 %v1515
        %1542 = vmatprep.subr.bf16.mxu0 0
        %1543 = vmatpush2.bf16.msra.mxu0 0
        %1544 = vmatprep.subr.bf16.mxu0 0
        %1545 = vmatpush2.bf16.msra.mxu0 0
        %1546 = vmatprep.subr.bf16.mxu0 0
        %1547 = vmatpush2.bf16.msra.mxu0 0
        %1548 = vmatprep.subr.bf16.mxu0 0
        %1549 = vmatpush2.bf16.msra.mxu0 0
        %1550 = vmatprep.subr.bf16.mxu0 0
        %1551 = vmatpush2.bf16.msra.mxu0 0
        %1552 = vmatprep.subr.bf16.mxu0 0
        %1553 = vmatpush2.bf16.msra.mxu0 0
        %1554 = vmatprep.subr.bf16.mxu0 0
        %1555 = vmatpush2.bf16.msra.mxu0 0
        %1556 = vmatprep.subr.bf16.mxu0 0
        %1557 = vmatpush2.bf16.msra.mxu0 0
        %1558 = vmatprep.mubr.bf16.mxu0 0
        %1559 = vmatmul.mubr.bf16.gmra.mxu0 %v1524
        %v1560 = vpop.f32.mrf.mxu0
        %v1561 = vadd.f32 %v1498, %v1560
        %v1562 = vpop.f32.mrf.mxu0
        %v1563 = vpop.f32.mrf.mxu0
        %v1564 = vpop.f32.mrf.mxu0
        %1565 = vdwg.mxu0
        %v1566 = vmul.f32 %v1561, 0.5
        %v1567 = vmul.f32 %v1561, 0.70710677
        %v1568 = verf.f32.pop %v1567
        %v1569 = vadd.f32 %v1568, 1.0
        %v1570 = vmul.f32 %v1566, %v1569
        %v1571 = vpack.c.bf16 %v1570, %v1570
        %v1572 = vld [vmem:[%s5 + $0x20] sm:$0xf]
        %v1573 = vld [vmem:[%s5 + $0x24] sm:$0xf]
        %v1574 = vld [vmem:[%s5 + $0x28] sm:$0xf]
        %v1575 = vld [vmem:[%s5 + $0x2c] sm:$0xf]
        %v1576 = vld [vmem:[%s5 + $0x30] sm:$0xf]
        %v1577 = vld [vmem:[%s5 + $0x34] sm:$0xf]
        %v1578 = vld [vmem:[%s5 + $0x38] sm:$0xf]
        %v1579 = vld [vmem:[%s5 + $0x3c] sm:$0xf]
        %v1580 = vld [vmem:[%s5 + $0x40] sm:$0xf]
        %v1581 = vld [vmem:[%s5 + $0x44] sm:$0xf]
        %v1582 = vld [vmem:[%s5 + $0x48] sm:$0xf]
        %v1583 = vld [vmem:[%s5 + $0x4c] sm:$0xf]
        %v1584 = vld [vmem:[%s5 + $0x50] sm:$0xf]
        %v1585 = vld [vmem:[%s5 + $0x54] sm:$0xf]
        %v1586 = vld [vmem:[%s5 + $0x58] sm:$0xf]
        %v1587 = vld [vmem:[%s5 + $0x5c] sm:$0xf]
        %v1604 = vunpack.c.l.b16 %v1572
        %v1605 = vunpack.c.l.b16 %v1573
        %v1606 = vunpack.c.l.b16 %v1574
        %v1607 = vunpack.c.l.b16 %v1575
        %v1608 = vunpack.c.l.b16 %v1576
        %v1609 = vunpack.c.l.b16 %v1577
        %v1610 = vunpack.c.l.b16 %v1578
        %v1611 = vunpack.c.l.b16 %v1579
        %v1612 = vunpack.c.l.b16 %v1580
        %v1613 = vunpack.c.l.b16 %v1581
        %v1614 = vunpack.c.l.b16 %v1582
        %v1615 = vunpack.c.l.b16 %v1583
        %v1616 = vunpack.c.l.b16 %v1584
        %v1617 = vunpack.c.l.b16 %v1585
        %v1618 = vunpack.c.l.b16 %v1586
        %v1619 = vunpack.c.l.b16 %v1587
        %v1620 = vpack.c.b16 %v1605, %v1604
        %v1621 = vpack.c.b16 %v1607, %v1606
        %v1622 = vpack.c.b16 %v1609, %v1608
        %v1623 = vpack.c.b16 %v1611, %v1610
        %v1624 = vpack.c.b16 %v1613, %v1612
        %v1625 = vpack.c.b16 %v1615, %v1614
        %v1626 = vpack.c.b16 %v1617, %v1616
        %v1627 = vpack.c.b16 %v1619, %v1618
        %1636 = vmatprep.subr.bf16.mxu0 0
        %1637 = vmatpush1.bf16.msra.mxu0 %v1627
        %1638 = vmatprep.subr.bf16.mxu0 0
        %1639 = vmatpush1.bf16.msra.mxu0 %v1626
        %1640 = vmatprep.subr.bf16.mxu0 0
        %1641 = vmatpush1.bf16.msra.mxu0 %v1625
        %1642 = vmatprep.subr.bf16.mxu0 0
        %1643 = vmatpush1.bf16.msra.mxu0 %v1624
        %1644 = vmatprep.subr.bf16.mxu0 0
        %1645 = vmatpush1.bf16.msra.mxu0 %v1623
        %1646 = vmatprep.subr.bf16.mxu0 0
        %1647 = vmatpush1.bf16.msra.mxu0 %v1622
        %1648 = vmatprep.subr.bf16.mxu0 0
        %1649 = vmatpush1.bf16.msra.mxu0 %v1621
        %1650 = vmatprep.subr.bf16.mxu0 0
        %1651 = vmatpush1.bf16.msra.mxu0 %v1620
        %1652 = vmatprep.subr.bf16.mxu0 0
        %1653 = vmatpush2.bf16.msra.mxu0 0
        %1654 = vmatprep.subr.bf16.mxu0 0
        %1655 = vmatpush2.bf16.msra.mxu0 0
        %1656 = vmatprep.subr.bf16.mxu0 0
        %1657 = vmatpush2.bf16.msra.mxu0 0
        %1658 = vmatprep.subr.bf16.mxu0 0
        %1659 = vmatpush2.bf16.msra.mxu0 0
        %1660 = vmatprep.subr.bf16.mxu0 0
        %1661 = vmatpush2.bf16.msra.mxu0 0
        %1662 = vmatprep.subr.bf16.mxu0 0
        %1663 = vmatpush2.bf16.msra.mxu0 0
        %1664 = vmatprep.subr.bf16.mxu0 0
        %1665 = vmatpush2.bf16.msra.mxu0 0
        %1666 = vmatprep.subr.bf16.mxu0 0
        %1667 = vmatpush2.bf16.msra.mxu0 0
        %1668 = vmatprep.mubr.bf16.mxu0 0
        %1669 = vmatmul.mubr.bf16.gmra.mxu0 %v1571
        %v1670 = vpop.f32.mrf.mxu0
        %v1671 = vadd.f32 0.0, %v1670
        %v1672 = vpop.f32.mrf.mxu0
        %v1673 = vpop.f32.mrf.mxu0
        %v1674 = vpop.f32.mrf.mxu0
        %1675 = vdwg.mxu0
        %v1676 = vadd.f32 %v1459, %v1671
        %v1677 = vld [vmem:[%s2 + $0xe] sm:$0x1]
        %v1678 = vlaneseq
        %v1679 = vshrl.u32 %v1678, 7
        %v1680 = vsub.s32 0, %v1679
        %v1681 = vrot.slane %v1677, %v1680
        %v1682 = vadd.f32 %v1676, %v1681
        %v1683 = vld [vmem:[%s2 + $0x10] sm:$0x1]
        %v1684 = vld [vmem:[%s2 + $0x11] sm:$0x1]
        %v1685 = vsel %vm440, %v1682, 0.0
        %1686 = vadd.xlane.f32.xlu0 %v1685
        %v1687 = vpop.xlane.xlu0 %1686
        %v1688 = vmul.f32 %v1687, %v444
        %v1689 = vsub.f32 %v1682, %v1688
        %v1690 = vmul.f32 %v1689, %v1689
        %v1691 = vsel %vm440, %v1690, 0.0
        %1692 = vadd.xlane.f32.xlu0 %v1691
        %v1693 = vpop.xlane.xlu0 %1692
        %v1694 = vmul.f32 %v1693, %v444
        %v1695 = vadd.f32 %v1694, 1e-12
        %v1696 = vrsqrt.pop %v1695
        %v1697 = vmul.f32 %v1689, %v1696
        %v1698 = vlaneseq
        %v1699 = vshrl.u32 %v1698, 7
        %v1700 = vsub.s32 0, %v1699
        %v1701 = vrot.slane %v1683, %v1700
        %v1702 = vmul.f32 %v1697, %v1701
        %v1703 = vlaneseq
        %v1704 = vshrl.u32 %v1703, 7
        %v1705 = vsub.s32 0, %v1704
        %v1706 = vrot.slane %v1684, %v1705
        %v1707 = vadd.f32 %v1702, %v1706
        %v1708 = vpack.c.bf16 %v1707, %v1707
        %s1709 = scalar_lea.vmem %s3, 256
        %v1710 = vld [vmem:[%s1709] sm:$0xf]
        %v1711 = vld [vmem:[%s1709 + $0x4] sm:$0xf]
        %v1712 = vld [vmem:[%s1709 + $0x8] sm:$0xf]
        %v1713 = vld [vmem:[%s1709 + $0xc] sm:$0xf]
        %v1714 = vld [vmem:[%s1709 + $0x10] sm:$0xf]
        %v1715 = vld [vmem:[%s1709 + $0x14] sm:$0xf]
        %v1716 = vld [vmem:[%s1709 + $0x18] sm:$0xf]
        %v1717 = vld [vmem:[%s1709 + $0x1c] sm:$0xf]
        %s1718 = scalar_lea.vmem %s4, 6
        %v1719 = vld [vmem:[%s1718] sm:$0x1]
        %v1721 = vlaneseq
        %v1722 = vshrl.u32 %v1721, 7
        %v1723 = vsub.s32 0, %v1722
        %v1724 = vrot.slane %v1719, %v1723
        %v1734 = vunpack.c.l.b16 %v1710
        %v1735 = vunpack.c.l.b16 %v1711
        %v1736 = vunpack.c.l.b16 %v1712
        %v1737 = vunpack.c.l.b16 %v1713
        %v1738 = vunpack.c.l.b16 %v1714
        %v1739 = vunpack.c.l.b16 %v1715
        %v1740 = vunpack.c.l.b16 %v1716
        %v1741 = vunpack.c.l.b16 %v1717
        %v1742 = vpack.c.b16 %v1735, %v1734
        %v1743 = vpack.c.b16 %v1737, %v1736
        %v1744 = vpack.c.b16 %v1739, %v1738
        %v1745 = vpack.c.b16 %v1741, %v1740
        %v1751 = vsel %vm394, %v1708, 0
        %1753 = vmatprep.subr.bf16.mxu0 0
        %1754 = vmatpush1.bf16.msra.mxu0 0
        %1755 = vmatprep.subr.bf16.mxu0 0
        %1756 = vmatpush1.bf16.msra.mxu0 0
        %1757 = vmatprep.subr.bf16.mxu0 0
        %1758 = vmatpush1.bf16.msra.mxu0 0
        %1759 = vmatprep.subr.bf16.mxu0 0
        %1760 = vmatpush1.bf16.msra.mxu0 0
        %1761 = vmatprep.subr.bf16.mxu0 0
        %1762 = vmatpush1.bf16.msra.mxu0 %v1745
        %1763 = vmatprep.subr.bf16.mxu0 0
        %1764 = vmatpush1.bf16.msra.mxu0 %v1744
        %1765 = vmatprep.subr.bf16.mxu0 0
        %1766 = vmatpush1.bf16.msra.mxu0 %v1743
        %1767 = vmatprep.subr.bf16.mxu0 0
        %1768 = vmatpush1.bf16.msra.mxu0 %v1742
        %1769 = vmatprep.subr.bf16.mxu0 0
        %1770 = vmatpush2.bf16.msra.mxu0 0
        %1771 = vmatprep.subr.bf16.mxu0 0
        %1772 = vmatpush2.bf16.msra.mxu0 0
        %1773 = vmatprep.subr.bf16.mxu0 0
        %1774 = vmatpush2.bf16.msra.mxu0 0
        %1775 = vmatprep.subr.bf16.mxu0 0
        %1776 = vmatpush2.bf16.msra.mxu0 0
        %1777 = vmatprep.subr.bf16.mxu0 0
        %1778 = vmatpush2.bf16.msra.mxu0 0
        %1779 = vmatprep.subr.bf16.mxu0 0
        %1780 = vmatpush2.bf16.msra.mxu0 0
        %1781 = vmatprep.subr.bf16.mxu0 0
        %1782 = vmatpush2.bf16.msra.mxu0 0
        %1783 = vmatprep.subr.bf16.mxu0 0
        %1784 = vmatpush2.bf16.msra.mxu0 0
        %1785 = vmatprep.mubr.bf16.mxu0 0
        %1786 = vmatmul.mubr.bf16.gmra.mxu0 %v1751
        %v1787 = vpop.f32.mrf.mxu0
        %v1788 = vadd.f32 %v1724, %v1787
        %v1789 = vpop.f32.mrf.mxu0
        %v1790 = vpop.f32.mrf.mxu0
        %v1791 = vpop.f32.mrf.mxu0
        %1792 = vdwg.mxu0
        %s1793 = scalar_lea.vmem %s3, 288
        %v1794 = vld [vmem:[%s1793] sm:$0xf]
        %v1795 = vld [vmem:[%s1793 + $0x4] sm:$0xf]
        %v1796 = vld [vmem:[%s1793 + $0x8] sm:$0xf]
        %v1797 = vld [vmem:[%s1793 + $0xc] sm:$0xf]
        %v1798 = vld [vmem:[%s1793 + $0x10] sm:$0xf]
        %v1799 = vld [vmem:[%s1793 + $0x14] sm:$0xf]
        %v1800 = vld [vmem:[%s1793 + $0x18] sm:$0xf]
        %v1801 = vld [vmem:[%s1793 + $0x1c] sm:$0xf]
        %s1802 = scalar_lea.vmem %s4, 7
        %v1803 = vld [vmem:[%s1802] sm:$0x1]
        %v1805 = vlaneseq
        %v1806 = vshrl.u32 %v1805, 7
        %v1807 = vsub.s32 0, %v1806
        %v1808 = vrot.slane %v1803, %v1807
        %v1818 = vunpack.c.l.b16 %v1794
        %v1819 = vunpack.c.l.b16 %v1795
        %v1820 = vunpack.c.l.b16 %v1796
        %v1821 = vunpack.c.l.b16 %v1797
        %v1822 = vunpack.c.l.b16 %v1798
        %v1823 = vunpack.c.l.b16 %v1799
        %v1824 = vunpack.c.l.b16 %v1800
        %v1825 = vunpack.c.l.b16 %v1801
        %v1826 = vpack.c.b16 %v1819, %v1818
        %v1827 = vpack.c.b16 %v1821, %v1820
        %v1828 = vpack.c.b16 %v1823, %v1822
        %v1829 = vpack.c.b16 %v1825, %v1824
        %1834 = vmatprep.subr.bf16.mxu0 0
        %1835 = vmatpush1.bf16.msra.mxu0 0
        %1836 = vmatprep.subr.bf16.mxu0 0
        %1837 = vmatpush1.bf16.msra.mxu0 0
        %1838 = vmatprep.subr.bf16.mxu0 0
        %1839 = vmatpush1.bf16.msra.mxu0 0
        %1840 = vmatprep.subr.bf16.mxu0 0
        %1841 = vmatpush1.bf16.msra.mxu0 0
        %1842 = vmatprep.subr.bf16.mxu0 0
        %1843 = vmatpush1.bf16.msra.mxu0 %v1829
        %1844 = vmatprep.subr.bf16.mxu0 0
        %1845 = vmatpush1.bf16.msra.mxu0 %v1828
        %1846 = vmatprep.subr.bf16.mxu0 0
        %1847 = vmatpush1.bf16.msra.mxu0 %v1827
        %1848 = vmatprep.subr.bf16.mxu0 0
        %1849 = vmatpush1.bf16.msra.mxu0 %v1826
        %1850 = vmatprep.subr.bf16.mxu0 0
        %1851 = vmatpush2.bf16.msra.mxu0 0
        %1852 = vmatprep.subr.bf16.mxu0 0
        %1853 = vmatpush2.bf16.msra.mxu0 0
        %1854 = vmatprep.subr.bf16.mxu0 0
        %1855 = vmatpush2.bf16.msra.mxu0 0
        %1856 = vmatprep.subr.bf16.mxu0 0
        %1857 = vmatpush2.bf16.msra.mxu0 0
        %1858 = vmatprep.subr.bf16.mxu0 0
        %1859 = vmatpush2.bf16.msra.mxu0 0
        %1860 = vmatprep.subr.bf16.mxu0 0
        %1861 = vmatpush2.bf16.msra.mxu0 0
        %1862 = vmatprep.subr.bf16.mxu0 0
        %1863 = vmatpush2.bf16.msra.mxu0 0
        %1864 = vmatprep.subr.bf16.mxu0 0
        %1865 = vmatpush2.bf16.msra.mxu0 0
        %1866 = vmatprep.mubr.bf16.mxu0 0
        %1867 = vmatmul.mubr.bf16.gmra.mxu0 %v1751
        %v1868 = vpop.f32.mrf.mxu0
        %v1869 = vadd.f32 %v1808, %v1868
        %v1870 = vpop.f32.mrf.mxu0
        %v1871 = vpop.f32.mrf.mxu0
        %v1872 = vpop.f32.mrf.mxu0
        %1873 = vdwg.mxu0
        %s1874 = scalar_lea.vmem %s3, 320
        %v1875 = vld [vmem:[%s1874] sm:$0xf]
        %v1876 = vld [vmem:[%s1874 + $0x4] sm:$0xf]
        %v1877 = vld [vmem:[%s1874 + $0x8] sm:$0xf]
        %v1878 = vld [vmem:[%s1874 + $0xc] sm:$0xf]
        %v1879 = vld [vmem:[%s1874 + $0x10] sm:$0xf]
        %v1880 = vld [vmem:[%s1874 + $0x14] sm:$0xf]
        %v1881 = vld [vmem:[%s1874 + $0x18] sm:$0xf]
        %v1882 = vld [vmem:[%s1874 + $0x1c] sm:$0xf]
        %s1883 = scalar_lea.vmem %s4, 8
        %v1884 = vld [vmem:[%s1883] sm:$0x1]
        %v1886 = vlaneseq
        %v1887 = vshrl.u32 %v1886, 7
        %v1888 = vsub.s32 0, %v1887
        %v1889 = vrot.slane %v1884, %v1888
        %v1899 = vunpack.c.l.b16 %v1875
        %v1900 = vunpack.c.l.b16 %v1876
        %v1901 = vunpack.c.l.b16 %v1877
        %v1902 = vunpack.c.l.b16 %v1878
        %v1903 = vunpack.c.l.b16 %v1879
        %v1904 = vunpack.c.l.b16 %v1880
        %v1905 = vunpack.c.l.b16 %v1881
        %v1906 = vunpack.c.l.b16 %v1882
        %v1907 = vpack.c.b16 %v1900, %v1899
        %v1908 = vpack.c.b16 %v1902, %v1901
        %v1909 = vpack.c.b16 %v1904, %v1903
        %v1910 = vpack.c.b16 %v1906, %v1905
        %1915 = vmatprep.subr.bf16.mxu0 0
        %1916 = vmatpush1.bf16.msra.mxu0 0
        %1917 = vmatprep.subr.bf16.mxu0 0
        %1918 = vmatpush1.bf16.msra.mxu0 0
        %1919 = vmatprep.subr.bf16.mxu0 0
        %1920 = vmatpush1.bf16.msra.mxu0 0
        %1921 = vmatprep.subr.bf16.mxu0 0
        %1922 = vmatpush1.bf16.msra.mxu0 0
        %1923 = vmatprep.subr.bf16.mxu0 0
        %1924 = vmatpush1.bf16.msra.mxu0 %v1910
        %1925 = vmatprep.subr.bf16.mxu0 0
        %1926 = vmatpush1.bf16.msra.mxu0 %v1909
        %1927 = vmatprep.subr.bf16.mxu0 0
        %1928 = vmatpush1.bf16.msra.mxu0 %v1908
        %1929 = vmatprep.subr.bf16.mxu0 0
        %1930 = vmatpush1.bf16.msra.mxu0 %v1907
        %1931 = vmatprep.subr.bf16.mxu0 0
        %1932 = vmatpush2.bf16.msra.mxu0 0
        %1933 = vmatprep.subr.bf16.mxu0 0
        %1934 = vmatpush2.bf16.msra.mxu0 0
        %1935 = vmatprep.subr.bf16.mxu0 0
        %1936 = vmatpush2.bf16.msra.mxu0 0
        %1937 = vmatprep.subr.bf16.mxu0 0
        %1938 = vmatpush2.bf16.msra.mxu0 0
        %1939 = vmatprep.subr.bf16.mxu0 0
        %1940 = vmatpush2.bf16.msra.mxu0 0
        %1941 = vmatprep.subr.bf16.mxu0 0
        %1942 = vmatpush2.bf16.msra.mxu0 0
        %1943 = vmatprep.subr.bf16.mxu0 0
        %1944 = vmatpush2.bf16.msra.mxu0 0
        %1945 = vmatprep.subr.bf16.mxu0 0
        %1946 = vmatpush2.bf16.msra.mxu0 0
        %1947 = vmatprep.mubr.bf16.mxu0 0
        %1948 = vmatmul.mubr.bf16.gmra.mxu0 %v1751
        %v1949 = vpop.f32.mrf.mxu0
        %v1950 = vadd.f32 %v1889, %v1949
        %v1951 = vpop.f32.mrf.mxu0
        %v1952 = vpop.f32.mrf.mxu0
        %v1953 = vpop.f32.mrf.mxu0
        %1954 = vdwg.mxu0
        %v1956 = vsel %vm710, %v1788, 0
        %v1959 = vsel %vm710, %v1869, 0
        %1961 = vmatprep.subr.mxu0 0.0
        %1962 = vmatpush1.xpose.msra.mxu0 0.0
        %1963 = vmatprep.subr.mxu0 0.0
        %1964 = vmatpush1.xpose.msra.mxu0 0.0
        %1965 = vmatprep.subr.mxu0 0.0
        %1966 = vmatpush1.xpose.msra.mxu0 0.0
        %1967 = vmatprep.subr.mxu0 0.0
        %1968 = vmatpush1.xpose.msra.mxu0 0.0
        %1969 = vmatprep.subr.mxu0 0.0
        %1970 = vmatpush1.xpose.msra.mxu0 0.0
        %1971 = vmatprep.subr.mxu0 0.0
        %1972 = vmatpush1.xpose.msra.mxu0 0.0
        %1973 = vmatprep.subr.mxu0 0.0
        %1974 = vmatpush1.xpose.msra.mxu0 0.0
        %1975 = vmatprep.subr.mxu0 0.0
        %1976 = vmatpush1.xpose.msra.mxu0 0.0
        %1977 = vmatprep.subr.mxu0 0.0
        %1978 = vmatpush1.xpose.msra.mxu0 0.0
        %1979 = vmatprep.subr.mxu0 0.0
        %1980 = vmatpush1.xpose.msra.mxu0 0.0
        %1981 = vmatprep.subr.mxu0 0.0
        %1982 = vmatpush1.xpose.msra.mxu0 0.0
        %1983 = vmatprep.subr.mxu0 0.0
        %1984 = vmatpush1.xpose.msra.mxu0 0.0
        %1985 = vmatprep.subr.mxu0 0.0
        %1986 = vmatpush1.xpose.msra.mxu0 0.0
        %1987 = vmatprep.subr.mxu0 0.0
        %1988 = vmatpush1.xpose.msra.mxu0 0.0
        %1989 = vmatprep.subr.mxu0 0.0
        %1990 = vmatpush1.xpose.msra.mxu0 0.0
        %1991 = vmatprep.subr.mxu0 0.0
        %1992 = vmatpush1.xpose.msra.mxu0 %v1959
        %1993 = vmatprep.subr.mxu0 0.0
        %1994 = vmatpush2.xpose.msra.mxu0 0.0
        %1995 = vmatprep.subr.mxu0 0.0
        %1996 = vmatpush2.xpose.msra.mxu0 0.0
        %1997 = vmatprep.subr.mxu0 0.0
        %1998 = vmatpush2.xpose.msra.mxu0 0.0
        %1999 = vmatprep.subr.mxu0 0.0
        %2000 = vmatpush2.xpose.msra.mxu0 0.0
        %2001 = vmatprep.subr.mxu0 0.0
        %2002 = vmatpush2.xpose.msra.mxu0 0.0
        %2003 = vmatprep.subr.mxu0 0.0
        %2004 = vmatpush2.xpose.msra.mxu0 0.0
        %2005 = vmatprep.subr.mxu0 0.0
        %2006 = vmatpush2.xpose.msra.mxu0 0.0
        %2007 = vmatprep.subr.mxu0 0.0
        %2008 = vmatpush2.xpose.msra.mxu0 0.0
        %2009 = vmatprep.subr.mxu0 0.0
        %2010 = vmatpush2.xpose.msra.mxu0 0.0
        %2011 = vmatprep.subr.mxu0 0.0
        %2012 = vmatpush2.xpose.msra.mxu0 0.0
        %2013 = vmatprep.subr.mxu0 0.0
        %2014 = vmatpush2.xpose.msra.mxu0 0.0
        %2015 = vmatprep.subr.mxu0 0.0
        %2016 = vmatpush2.xpose.msra.mxu0 0.0
        %2017 = vmatprep.subr.mxu0 0.0
        %2018 = vmatpush2.xpose.msra.mxu0 0.0
        %2019 = vmatprep.subr.mxu0 0.0
        %2020 = vmatpush2.xpose.msra.mxu0 0.0
        %2021 = vmatprep.subr.mxu0 0.0
        %2022 = vmatpush2.xpose.msra.mxu0 0.0
        %2023 = vmatprep.subr.mxu0 0.0
        %2024 = vmatpush2.xpose.msra.mxu0 0.0
        %2025 = vmatprep.mubr.f32.mxu0 0.0
        %2026 = vmatmul.mubr.f32.gmra.mxu0 %v1956
        %v2027 = vpop.f32.mrf.mxu0
        %v2028 = vadd.f32 0.0, %v2027
        %v2029 = vpop.f32.mrf.mxu0
        %2030 = vdwg.mxu0
        %v2031 = vsel %vm787, %v2028, -inf
        %2032 = vmax.xlane.f32.xlu0 %v2031
        %v2033 = vpop.xlane.xlu0 %2032
        %v2034 = vsub.f32 %v2028, %v2033
        %v2035 = vmul.f32 %v2034, 1.442695
        %v2036 = vpow.pop %v2035
        %v2037 = vsel %vm787, %v2036, 0.0
        %2038 = vadd.xlane.f32.xlu0 %v2037
        %v2039 = vpop.xlane.xlu0 %2038
        %v2040 = vrcp.pop %v2039
        %v2041 = vmul.f32 %v2036, %v2040
        %v2043 = vsel %vm799, %v2041, 0
        %v2046 = vsel %vm803, %v1950, 0
        %2048 = vmatprep.subr.mxu0 0.0
        %2049 = vmatpush1.msra.mxu0 0.0
        %2050 = vmatprep.subr.mxu0 0.0
        %2051 = vmatpush1.msra.mxu0 0.0
        %2052 = vmatprep.subr.mxu0 0.0
        %2053 = vmatpush1.msra.mxu0 0.0
        %2054 = vmatprep.subr.mxu0 0.0
        %2055 = vmatpush1.msra.mxu0 0.0
        %2056 = vmatprep.subr.mxu0 0.0
        %2057 = vmatpush1.msra.mxu0 0.0
        %2058 = vmatprep.subr.mxu0 0.0
        %2059 = vmatpush1.msra.mxu0 0.0
        %2060 = vmatprep.subr.mxu0 0.0
        %2061 = vmatpush1.msra.mxu0 0.0
        %2062 = vmatprep.subr.mxu0 0.0
        %2063 = vmatpush1.msra.mxu0 0.0
        %2064 = vmatprep.subr.mxu0 0.0
        %2065 = vmatpush1.msra.mxu0 0.0
        %2066 = vmatprep.subr.mxu0 0.0
        %2067 = vmatpush1.msra.mxu0 0.0
        %2068 = vmatprep.subr.mxu0 0.0
        %2069 = vmatpush1.msra.mxu0 0.0
        %2070 = vmatprep.subr.mxu0 0.0
        %2071 = vmatpush1.msra.mxu0 0.0
        %2072 = vmatprep.subr.mxu0 0.0
        %2073 = vmatpush1.msra.mxu0 0.0
        %2074 = vmatprep.subr.mxu0 0.0
        %2075 = vmatpush1.msra.mxu0 0.0
        %2076 = vmatprep.subr.mxu0 0.0
        %2077 = vmatpush1.msra.mxu0 0.0
        %2078 = vmatprep.subr.mxu0 0.0
        %2079 = vmatpush1.msra.mxu0 %v2046
        %2080 = vmatprep.subr.mxu0 0.0
        %2081 = vmatpush2.msra.mxu0 0.0
        %2082 = vmatprep.subr.mxu0 0.0
        %2083 = vmatpush2.msra.mxu0 0.0
        %2084 = vmatprep.subr.mxu0 0.0
        %2085 = vmatpush2.msra.mxu0 0.0
        %2086 = vmatprep.subr.mxu0 0.0
        %2087 = vmatpush2.msra.mxu0 0.0
        %2088 = vmatprep.subr.mxu0 0.0
        %2089 = vmatpush2.msra.mxu0 0.0
        %2090 = vmatprep.subr.mxu0 0.0
        %2091 = vmatpush2.msra.mxu0 0.0
        %2092 = vmatprep.subr.mxu0 0.0
        %2093 = vmatpush2.msra.mxu0 0.0
        %2094 = vmatprep.subr.mxu0 0.0
        %2095 = vmatpush2.msra.mxu0 0.0
        %2096 = vmatprep.subr.mxu0 0.0
        %2097 = vmatpush2.msra.mxu0 0.0
        %2098 = vmatprep.subr.mxu0 0.0
        %2099 = vmatpush2.msra.mxu0 0.0
        %2100 = vmatprep.subr.mxu0 0.0
        %2101 = vmatpush2.msra.mxu0 0.0
        %2102 = vmatprep.subr.mxu0 0.0
        %2103 = vmatpush2.msra.mxu0 0.0
        %2104 = vmatprep.subr.mxu0 0.0
        %2105 = vmatpush2.msra.mxu0 0.0
        %2106 = vmatprep.subr.mxu0 0.0
        %2107 = vmatpush2.msra.mxu0 0.0
        %2108 = vmatprep.subr.mxu0 0.0
        %2109 = vmatpush2.msra.mxu0 0.0
        %2110 = vmatprep.subr.mxu0 0.0
        %2111 = vmatpush2.msra.mxu0 0.0
        %2112 = vmatprep.mubr.f32.mxu0 0.0
        %2113 = vmatmul.mubr.f32.gmra.mxu0 %v2043
        %v2114 = vpop.f32.mrf.mxu0
        %v2115 = vadd.f32 0.0, %v2114
        %v2116 = vpop.f32.mrf.mxu0
        %2117 = vdwg.mxu0
        %v2118 = vpack.c.bf16 %v2115, %v2115
        %s2119 = scalar_lea.vmem %s3, 352
        %v2120 = vld [vmem:[%s2119] sm:$0xf]
        %v2121 = vld [vmem:[%s2119 + $0x4] sm:$0xf]
        %v2122 = vld [vmem:[%s2119 + $0x8] sm:$0xf]
        %v2123 = vld [vmem:[%s2119 + $0xc] sm:$0xf]
        %v2124 = vld [vmem:[%s2119 + $0x10] sm:$0xf]
        %v2125 = vld [vmem:[%s2119 + $0x14] sm:$0xf]
        %v2126 = vld [vmem:[%s2119 + $0x18] sm:$0xf]
        %v2127 = vld [vmem:[%s2119 + $0x1c] sm:$0xf]
        %s2128 = scalar_lea.vmem %s3, 384
        %v2129 = vld [vmem:[%s2128] sm:$0xf]
        %v2130 = vld [vmem:[%s2128 + $0x4] sm:$0xf]
        %v2131 = vld [vmem:[%s2128 + $0x8] sm:$0xf]
        %v2132 = vld [vmem:[%s2128 + $0xc] sm:$0xf]
        %v2133 = vld [vmem:[%s2128 + $0x10] sm:$0xf]
        %v2134 = vld [vmem:[%s2128 + $0x14] sm:$0xf]
        %v2135 = vld [vmem:[%s2128 + $0x18] sm:$0xf]
        %v2136 = vld [vmem:[%s2128 + $0x1c] sm:$0xf]
        %s2137 = scalar_lea.vmem %s4, 9
        %v2138 = vld [vmem:[%s2137] sm:$0x1]
        %v2140 = vlaneseq
        %v2141 = vshrl.u32 %v2140, 7
        %v2142 = vsub.s32 0, %v2141
        %v2143 = vrot.slane %v2138, %v2142
        %v2153 = vunpack.c.l.b16 %v2129
        %v2154 = vunpack.c.l.b16 %v2130
        %v2155 = vunpack.c.l.b16 %v2131
        %v2156 = vunpack.c.l.b16 %v2132
        %v2157 = vunpack.c.l.b16 %v2133
        %v2158 = vunpack.c.l.b16 %v2134
        %v2159 = vunpack.c.l.b16 %v2135
        %v2160 = vunpack.c.l.b16 %v2136
        %v2161 = vpack.c.b16 %v2154, %v2153
        %v2162 = vpack.c.b16 %v2156, %v2155
        %v2163 = vpack.c.b16 %v2158, %v2157
        %v2164 = vpack.c.b16 %v2160, %v2159
        %2169 = vmatprep.subr.bf16.mxu0 0
        %2170 = vmatpush1.bf16.msra.mxu0 0
        %2171 = vmatprep.subr.bf16.mxu0 0
        %2172 = vmatpush1.bf16.msra.mxu0 0
        %2173 = vmatprep.subr.bf16.mxu0 0
        %2174 = vmatpush1.bf16.msra.mxu0 0
        %2175 = vmatprep.subr.bf16.mxu0 0
        %2176 = vmatpush1.bf16.msra.mxu0 0
        %2177 = vmatprep.subr.bf16.mxu0 0
        %2178 = vmatpush1.bf16.msra.mxu0 %v2164
        %2179 = vmatprep.subr.bf16.mxu0 0
        %2180 = vmatpush1.bf16.msra.mxu0 %v2163
        %2181 = vmatprep.subr.bf16.mxu0 0
        %2182 = vmatpush1.bf16.msra.mxu0 %v2162
        %2183 = vmatprep.subr.bf16.mxu0 0
        %2184 = vmatpush1.bf16.msra.mxu0 %v2161
        %2185 = vmatprep.subr.bf16.mxu0 0
        %2186 = vmatpush2.bf16.msra.mxu0 0
        %2187 = vmatprep.subr.bf16.mxu0 0
        %2188 = vmatpush2.bf16.msra.mxu0 0
        %2189 = vmatprep.subr.bf16.mxu0 0
        %2190 = vmatpush2.bf16.msra.mxu0 0
        %2191 = vmatprep.subr.bf16.mxu0 0
        %2192 = vmatpush2.bf16.msra.mxu0 0
        %2193 = vmatprep.subr.bf16.mxu0 0
        %2194 = vmatpush2.bf16.msra.mxu0 0
        %2195 = vmatprep.subr.bf16.mxu0 0
        %2196 = vmatpush2.bf16.msra.mxu0 0
        %2197 = vmatprep.subr.bf16.mxu0 0
        %2198 = vmatpush2.bf16.msra.mxu0 0
        %2199 = vmatprep.subr.bf16.mxu0 0
        %2200 = vmatpush2.bf16.msra.mxu0 0
        %2201 = vmatprep.mubr.bf16.mxu0 0
        %2202 = vmatmul.mubr.bf16.gmra.mxu0 %v1751
        %v2203 = vpop.f32.mrf.mxu0
        %v2204 = vadd.f32 %v2143, %v2203
        %v2205 = vpop.f32.mrf.mxu0
        %v2206 = vpop.f32.mrf.mxu0
        %v2207 = vpop.f32.mrf.mxu0
        %2208 = vdwg.mxu0
        %s2209 = scalar_lea.vmem %s3, 416
        %v2210 = vld [vmem:[%s2209] sm:$0xf]
        %v2211 = vld [vmem:[%s2209 + $0x4] sm:$0xf]
        %v2212 = vld [vmem:[%s2209 + $0x8] sm:$0xf]
        %v2213 = vld [vmem:[%s2209 + $0xc] sm:$0xf]
        %v2214 = vld [vmem:[%s2209 + $0x10] sm:$0xf]
        %v2215 = vld [vmem:[%s2209 + $0x14] sm:$0xf]
        %v2216 = vld [vmem:[%s2209 + $0x18] sm:$0xf]
        %v2217 = vld [vmem:[%s2209 + $0x1c] sm:$0xf]
        %s2218 = scalar_lea.vmem %s4, 10
        %v2219 = vld [vmem:[%s2218] sm:$0x1]
        %v2221 = vlaneseq
        %v2222 = vshrl.u32 %v2221, 7
        %v2223 = vsub.s32 0, %v2222
        %v2224 = vrot.slane %v2219, %v2223
        %v2234 = vunpack.c.l.b16 %v2210
        %v2235 = vunpack.c.l.b16 %v2211
        %v2236 = vunpack.c.l.b16 %v2212
        %v2237 = vunpack.c.l.b16 %v2213
        %v2238 = vunpack.c.l.b16 %v2214
        %v2239 = vunpack.c.l.b16 %v2215
        %v2240 = vunpack.c.l.b16 %v2216
        %v2241 = vunpack.c.l.b16 %v2217
        %v2242 = vpack.c.b16 %v2235, %v2234
        %v2243 = vpack.c.b16 %v2237, %v2236
        %v2244 = vpack.c.b16 %v2239, %v2238
        %v2245 = vpack.c.b16 %v2241, %v2240
        %2250 = vmatprep.subr.bf16.mxu0 0
        %2251 = vmatpush1.bf16.msra.mxu0 0
        %2252 = vmatprep.subr.bf16.mxu0 0
        %2253 = vmatpush1.bf16.msra.mxu0 0
        %2254 = vmatprep.subr.bf16.mxu0 0
        %2255 = vmatpush1.bf16.msra.mxu0 0
        %2256 = vmatprep.subr.bf16.mxu0 0
        %2257 = vmatpush1.bf16.msra.mxu0 0
        %2258 = vmatprep.subr.bf16.mxu0 0
        %2259 = vmatpush1.bf16.msra.mxu0 %v2245
        %2260 = vmatprep.subr.bf16.mxu0 0
        %2261 = vmatpush1.bf16.msra.mxu0 %v2244
        %2262 = vmatprep.subr.bf16.mxu0 0
        %2263 = vmatpush1.bf16.msra.mxu0 %v2243
        %2264 = vmatprep.subr.bf16.mxu0 0
        %2265 = vmatpush1.bf16.msra.mxu0 %v2242
        %2266 = vmatprep.subr.bf16.mxu0 0
        %2267 = vmatpush2.bf16.msra.mxu0 0
        %2268 = vmatprep.subr.bf16.mxu0 0
        %2269 = vmatpush2.bf16.msra.mxu0 0
        %2270 = vmatprep.subr.bf16.mxu0 0
        %2271 = vmatpush2.bf16.msra.mxu0 0
        %2272 = vmatprep.subr.bf16.mxu0 0
        %2273 = vmatpush2.bf16.msra.mxu0 0
        %2274 = vmatprep.subr.bf16.mxu0 0
        %2275 = vmatpush2.bf16.msra.mxu0 0
        %2276 = vmatprep.subr.bf16.mxu0 0
        %2277 = vmatpush2.bf16.msra.mxu0 0
        %2278 = vmatprep.subr.bf16.mxu0 0
        %2279 = vmatpush2.bf16.msra.mxu0 0
        %2280 = vmatprep.subr.bf16.mxu0 0
        %2281 = vmatpush2.bf16.msra.mxu0 0
        %2282 = vmatprep.mubr.bf16.mxu0 0
        %2283 = vmatmul.mubr.bf16.gmra.mxu0 %v1751
        %v2284 = vpop.f32.mrf.mxu0
        %v2285 = vadd.f32 %v2224, %v2284
        %v2286 = vpop.f32.mrf.mxu0
        %v2287 = vpop.f32.mrf.mxu0
        %v2288 = vpop.f32.mrf.mxu0
        %2289 = vdwg.mxu0
        %s2290 = scalar_lea.vmem %s3, 448
        %v2291 = vld [vmem:[%s2290] sm:$0xf]
        %v2292 = vld [vmem:[%s2290 + $0x4] sm:$0xf]
        %v2293 = vld [vmem:[%s2290 + $0x8] sm:$0xf]
        %v2294 = vld [vmem:[%s2290 + $0xc] sm:$0xf]
        %v2295 = vld [vmem:[%s2290 + $0x10] sm:$0xf]
        %v2296 = vld [vmem:[%s2290 + $0x14] sm:$0xf]
        %v2297 = vld [vmem:[%s2290 + $0x18] sm:$0xf]
        %v2298 = vld [vmem:[%s2290 + $0x1c] sm:$0xf]
        %s2299 = scalar_lea.vmem %s4, 11
        %v2300 = vld [vmem:[%s2299] sm:$0x1]
        %v2302 = vlaneseq
        %v2303 = vshrl.u32 %v2302, 7
        %v2304 = vsub.s32 0, %v2303
        %v2305 = vrot.slane %v2300, %v2304
        %v2315 = vunpack.c.l.b16 %v2291
        %v2316 = vunpack.c.l.b16 %v2292
        %v2317 = vunpack.c.l.b16 %v2293
        %v2318 = vunpack.c.l.b16 %v2294
        %v2319 = vunpack.c.l.b16 %v2295
        %v2320 = vunpack.c.l.b16 %v2296
        %v2321 = vunpack.c.l.b16 %v2297
        %v2322 = vunpack.c.l.b16 %v2298
        %v2323 = vpack.c.b16 %v2316, %v2315
        %v2324 = vpack.c.b16 %v2318, %v2317
        %v2325 = vpack.c.b16 %v2320, %v2319
        %v2326 = vpack.c.b16 %v2322, %v2321
        %2331 = vmatprep.subr.bf16.mxu0 0
        %2332 = vmatpush1.bf16.msra.mxu0 0
        %2333 = vmatprep.subr.bf16.mxu0 0
        %2334 = vmatpush1.bf16.msra.mxu0 0
        %2335 = vmatprep.subr.bf16.mxu0 0
        %2336 = vmatpush1.bf16.msra.mxu0 0
        %2337 = vmatprep.subr.bf16.mxu0 0
        %2338 = vmatpush1.bf16.msra.mxu0 0
        %2339 = vmatprep.subr.bf16.mxu0 0
        %2340 = vmatpush1.bf16.msra.mxu0 %v2326
        %2341 = vmatprep.subr.bf16.mxu0 0
        %2342 = vmatpush1.bf16.msra.mxu0 %v2325
        %2343 = vmatprep.subr.bf16.mxu0 0
        %2344 = vmatpush1.bf16.msra.mxu0 %v2324
        %2345 = vmatprep.subr.bf16.mxu0 0
        %2346 = vmatpush1.bf16.msra.mxu0 %v2323
        %2347 = vmatprep.subr.bf16.mxu0 0
        %2348 = vmatpush2.bf16.msra.mxu0 0
        %2349 = vmatprep.subr.bf16.mxu0 0
        %2350 = vmatpush2.bf16.msra.mxu0 0
        %2351 = vmatprep.subr.bf16.mxu0 0
        %2352 = vmatpush2.bf16.msra.mxu0 0
        %2353 = vmatprep.subr.bf16.mxu0 0
        %2354 = vmatpush2.bf16.msra.mxu0 0
        %2355 = vmatprep.subr.bf16.mxu0 0
        %2356 = vmatpush2.bf16.msra.mxu0 0
        %2357 = vmatprep.subr.bf16.mxu0 0
        %2358 = vmatpush2.bf16.msra.mxu0 0
        %2359 = vmatprep.subr.bf16.mxu0 0
        %2360 = vmatpush2.bf16.msra.mxu0 0
        %2361 = vmatprep.subr.bf16.mxu0 0
        %2362 = vmatpush2.bf16.msra.mxu0 0
        %2363 = vmatprep.mubr.bf16.mxu0 0
        %2364 = vmatmul.mubr.bf16.gmra.mxu0 %v1751
        %v2365 = vpop.f32.mrf.mxu0
        %v2366 = vadd.f32 %v2305, %v2365
        %v2367 = vpop.f32.mrf.mxu0
        %v2368 = vpop.f32.mrf.mxu0
        %v2369 = vpop.f32.mrf.mxu0
        %2370 = vdwg.mxu0
        %v2372 = vsel %vm710, %v2204, 0
        %v2375 = vsel %vm710, %v2285, 0
        %2377 = vmatprep.subr.mxu0 0.0
        %2378 = vmatpush1.xpose.msra.mxu0 0.0
        %2379 = vmatprep.subr.mxu0 0.0
        %2380 = vmatpush1.xpose.msra.mxu0 0.0
        %2381 = vmatprep.subr.mxu0 0.0
        %2382 = vmatpush1.xpose.msra.mxu0 0.0
        %2383 = vmatprep.subr.mxu0 0.0
        %2384 = vmatpush1.xpose.msra.mxu0 0.0
        %2385 = vmatprep.subr.mxu0 0.0
        %2386 = vmatpush1.xpose.msra.mxu0 0.0
        %2387 = vmatprep.subr.mxu0 0.0
        %2388 = vmatpush1.xpose.msra.mxu0 0.0
        %2389 = vmatprep.subr.mxu0 0.0
        %2390 = vmatpush1.xpose.msra.mxu0 0.0
        %2391 = vmatprep.subr.mxu0 0.0
        %2392 = vmatpush1.xpose.msra.mxu0 0.0
        %2393 = vmatprep.subr.mxu0 0.0
        %2394 = vmatpush1.xpose.msra.mxu0 0.0
        %2395 = vmatprep.subr.mxu0 0.0
        %2396 = vmatpush1.xpose.msra.mxu0 0.0
        %2397 = vmatprep.subr.mxu0 0.0
        %2398 = vmatpush1.xpose.msra.mxu0 0.0
        %2399 = vmatprep.subr.mxu0 0.0
        %2400 = vmatpush1.xpose.msra.mxu0 0.0
        %2401 = vmatprep.subr.mxu0 0.0
        %2402 = vmatpush1.xpose.msra.mxu0 0.0
        %2403 = vmatprep.subr.mxu0 0.0
        %2404 = vmatpush1.xpose.msra.mxu0 0.0
        %2405 = vmatprep.subr.mxu0 0.0
        %2406 = vmatpush1.xpose.msra.mxu0 0.0
        %2407 = vmatprep.subr.mxu0 0.0
        %2408 = vmatpush1.xpose.msra.mxu0 %v2375
        %2409 = vmatprep.subr.mxu0 0.0
        %2410 = vmatpush2.xpose.msra.mxu0 0.0
        %2411 = vmatprep.subr.mxu0 0.0
        %2412 = vmatpush2.xpose.msra.mxu0 0.0
        %2413 = vmatprep.subr.mxu0 0.0
        %2414 = vmatpush2.xpose.msra.mxu0 0.0
        %2415 = vmatprep.subr.mxu0 0.0
        %2416 = vmatpush2.xpose.msra.mxu0 0.0
        %2417 = vmatprep.subr.mxu0 0.0
        %2418 = vmatpush2.xpose.msra.mxu0 0.0
        %2419 = vmatprep.subr.mxu0 0.0
        %2420 = vmatpush2.xpose.msra.mxu0 0.0
        %2421 = vmatprep.subr.mxu0 0.0
        %2422 = vmatpush2.xpose.msra.mxu0 0.0
        %2423 = vmatprep.subr.mxu0 0.0
        %2424 = vmatpush2.xpose.msra.mxu0 0.0
        %2425 = vmatprep.subr.mxu0 0.0
        %2426 = vmatpush2.xpose.msra.mxu0 0.0
        %2427 = vmatprep.subr.mxu0 0.0
        %2428 = vmatpush2.xpose.msra.mxu0 0.0
        %2429 = vmatprep.subr.mxu0 0.0
        %2430 = vmatpush2.xpose.msra.mxu0 0.0
        %2431 = vmatprep.subr.mxu0 0.0
        %2432 = vmatpush2.xpose.msra.mxu0 0.0
        %2433 = vmatprep.subr.mxu0 0.0
        %2434 = vmatpush2.xpose.msra.mxu0 0.0
        %2435 = vmatprep.subr.mxu0 0.0
        %2436 = vmatpush2.xpose.msra.mxu0 0.0
        %2437 = vmatprep.subr.mxu0 0.0
        %2438 = vmatpush2.xpose.msra.mxu0 0.0
        %2439 = vmatprep.subr.mxu0 0.0
        %2440 = vmatpush2.xpose.msra.mxu0 0.0
        %2441 = vmatprep.mubr.f32.mxu0 0.0
        %2442 = vmatmul.mubr.f32.gmra.mxu0 %v2372
        %v2443 = vpop.f32.mrf.mxu0
        %v2444 = vadd.f32 0.0, %v2443
        %v2445 = vpop.f32.mrf.mxu0
        %2446 = vdwg.mxu0
        %v2447 = vsel %vm787, %v2444, -inf
        %2448 = vmax.xlane.f32.xlu0 %v2447
        %v2449 = vpop.xlane.xlu0 %2448
        %v2450 = vsub.f32 %v2444, %v2449
        %v2451 = vmul.f32 %v2450, 1.442695
        %v2452 = vpow.pop %v2451
        %v2453 = vsel %vm787, %v2452, 0.0
        %2454 = vadd.xlane.f32.xlu0 %v2453
        %v2455 = vpop.xlane.xlu0 %2454
        %v2456 = vrcp.pop %v2455
        %v2457 = vmul.f32 %v2452, %v2456
        %v2459 = vsel %vm799, %v2457, 0
        %v2462 = vsel %vm803, %v2366, 0
        %2464 = vmatprep.subr.mxu0 0.0
        %2465 = vmatpush1.msra.mxu0 0.0
        %2466 = vmatprep.subr.mxu0 0.0
        %2467 = vmatpush1.msra.mxu0 0.0
        %2468 = vmatprep.subr.mxu0 0.0
        %2469 = vmatpush1.msra.mxu0 0.0
        %2470 = vmatprep.subr.mxu0 0.0
        %2471 = vmatpush1.msra.mxu0 0.0
        %2472 = vmatprep.subr.mxu0 0.0
        %2473 = vmatpush1.msra.mxu0 0.0
        %2474 = vmatprep.subr.mxu0 0.0
        %2475 = vmatpush1.msra.mxu0 0.0
        %2476 = vmatprep.subr.mxu0 0.0
        %2477 = vmatpush1.msra.mxu0 0.0
        %2478 = vmatprep.subr.mxu0 0.0
        %2479 = vmatpush1.msra.mxu0 0.0
        %2480 = vmatprep.subr.mxu0 0.0
        %2481 = vmatpush1.msra.mxu0 0.0
        %2482 = vmatprep.subr.mxu0 0.0
        %2483 = vmatpush1.msra.mxu0 0.0
        %2484 = vmatprep.subr.mxu0 0.0
        %2485 = vmatpush1.msra.mxu0 0.0
        %2486 = vmatprep.subr.mxu0 0.0
        %2487 = vmatpush1.msra.mxu0 0.0
        %2488 = vmatprep.subr.mxu0 0.0
        %2489 = vmatpush1.msra.mxu0 0.0
        %2490 = vmatprep.subr.mxu0 0.0
        %2491 = vmatpush1.msra.mxu0 0.0
        %2492 = vmatprep.subr.mxu0 0.0
        %2493 = vmatpush1.msra.mxu0 0.0
        %2494 = vmatprep.subr.mxu0 0.0
        %2495 = vmatpush1.msra.mxu0 %v2462
        %2496 = vmatprep.subr.mxu0 0.0
        %2497 = vmatpush2.msra.mxu0 0.0
        %2498 = vmatprep.subr.mxu0 0.0
        %2499 = vmatpush2.msra.mxu0 0.0
        %2500 = vmatprep.subr.mxu0 0.0
        %2501 = vmatpush2.msra.mxu0 0.0
        %2502 = vmatprep.subr.mxu0 0.0
        %2503 = vmatpush2.msra.mxu0 0.0
        %2504 = vmatprep.subr.mxu0 0.0
        %2505 = vmatpush2.msra.mxu0 0.0
        %2506 = vmatprep.subr.mxu0 0.0
        %2507 = vmatpush2.msra.mxu0 0.0
        %2508 = vmatprep.subr.mxu0 0.0
        %2509 = vmatpush2.msra.mxu0 0.0
        %2510 = vmatprep.subr.mxu0 0.0
        %2511 = vmatpush2.msra.mxu0 0.0
        %2512 = vmatprep.subr.mxu0 0.0
        %2513 = vmatpush2.msra.mxu0 0.0
        %2514 = vmatprep.subr.mxu0 0.0
        %2515 = vmatpush2.msra.mxu0 0.0
        %2516 = vmatprep.subr.mxu0 0.0
        %2517 = vmatpush2.msra.mxu0 0.0
        %2518 = vmatprep.subr.mxu0 0.0
        %2519 = vmatpush2.msra.mxu0 0.0
        %2520 = vmatprep.subr.mxu0 0.0
        %2521 = vmatpush2.msra.mxu0 0.0
        %2522 = vmatprep.subr.mxu0 0.0
        %2523 = vmatpush2.msra.mxu0 0.0
        %2524 = vmatprep.subr.mxu0 0.0
        %2525 = vmatpush2.msra.mxu0 0.0
        %2526 = vmatprep.subr.mxu0 0.0
        %2527 = vmatpush2.msra.mxu0 0.0
        %2528 = vmatprep.mubr.f32.mxu0 0.0
        %2529 = vmatmul.mubr.f32.gmra.mxu0 %v2459
        %v2530 = vpop.f32.mrf.mxu0
        %v2531 = vadd.f32 0.0, %v2530
        %v2532 = vpop.f32.mrf.mxu0
        %2533 = vdwg.mxu0
        %v2534 = vpack.c.bf16 %v2531, %v2531
        %s2535 = scalar_lea.vmem %s3, 480
        %v2536 = vld [vmem:[%s2535] sm:$0xf]
        %v2537 = vld [vmem:[%s2535 + $0x4] sm:$0xf]
        %v2538 = vld [vmem:[%s2535 + $0x8] sm:$0xf]
        %v2539 = vld [vmem:[%s2535 + $0xc] sm:$0xf]
        %v2540 = vld [vmem:[%s2535 + $0x10] sm:$0xf]
        %v2541 = vld [vmem:[%s2535 + $0x14] sm:$0xf]
        %v2542 = vld [vmem:[%s2535 + $0x18] sm:$0xf]
        %v2543 = vld [vmem:[%s2535 + $0x1c] sm:$0xf]
        %v2552 = vunpack.c.l.b16 %v2536
        %v2553 = vunpack.c.l.b16 %v2537
        %v2554 = vunpack.c.l.b16 %v2538
        %v2555 = vunpack.c.l.b16 %v2539
        %v2556 = vunpack.c.l.b16 %v2540
        %v2557 = vunpack.c.l.b16 %v2541
        %v2558 = vunpack.c.l.b16 %v2542
        %v2559 = vunpack.c.l.b16 %v2543
        %v2560 = vpack.c.b16 %v2553, %v2552
        %v2561 = vpack.c.b16 %v2555, %v2554
        %v2562 = vpack.c.b16 %v2557, %v2556
        %v2563 = vpack.c.b16 %v2559, %v2558
        %v2565 = vsel %vm710, %v2534, 0
        %v2568 = vsel %vm710, %v2560, 0
        %v2571 = vsel %vm710, %v2561, 0
        %v2574 = vsel %vm710, %v2562, 0
        %v2577 = vsel %vm710, %v2563, 0
        %2579 = vmatprep.subr.bf16.mxu0 0
        %2580 = vmatpush1.bf16.xpose.msra.mxu0 0
        %2581 = vmatprep.subr.bf16.mxu0 0
        %2582 = vmatpush1.bf16.xpose.msra.mxu0 0
        %2583 = vmatprep.subr.bf16.mxu0 0
        %2584 = vmatpush1.bf16.xpose.msra.mxu0 0
        %2585 = vmatprep.subr.bf16.mxu0 0
        %2586 = vmatpush1.bf16.xpose.msra.mxu0 0
        %2587 = vmatprep.subr.bf16.mxu0 0
        %2588 = vmatpush1.bf16.xpose.msra.mxu0 %v2577
        %2589 = vmatprep.subr.bf16.mxu0 0
        %2590 = vmatpush1.bf16.xpose.msra.mxu0 %v2574
        %2591 = vmatprep.subr.bf16.mxu0 0
        %2592 = vmatpush1.bf16.xpose.msra.mxu0 %v2571
        %2593 = vmatprep.subr.bf16.mxu0 0
        %2594 = vmatpush1.bf16.xpose.msra.mxu0 %v2568
        %2595 = vmatprep.subr.bf16.mxu0 0
        %2596 = vmatpush2.bf16.xpose.msra.mxu0 0
        %2597 = vmatprep.subr.bf16.mxu0 0
        %2598 = vmatpush2.bf16.xpose.msra.mxu0 0
        %2599 = vmatprep.subr.bf16.mxu0 0
        %2600 = vmatpush2.bf16.xpose.msra.mxu0 0
        %2601 = vmatprep.subr.bf16.mxu0 0
        %2602 = vmatpush2.bf16.xpose.msra.mxu0 0
        %2603 = vmatprep.subr.bf16.mxu0 0
        %2604 = vmatpush2.bf16.xpose.msra.mxu0 0
        %2605 = vmatprep.subr.bf16.mxu0 0
        %2606 = vmatpush2.bf16.xpose.msra.mxu0 0
        %2607 = vmatprep.subr.bf16.mxu0 0
        %2608 = vmatpush2.bf16.xpose.msra.mxu0 0
        %2609 = vmatprep.subr.bf16.mxu0 0
        %2610 = vmatpush2.bf16.xpose.msra.mxu0 0
        %2611 = vmatprep.mubr.bf16.mxu0 0
        %2612 = vmatmul.mubr.bf16.gmra.mxu0 %v2565
        %v2613 = vpop.f32.mrf.mxu0
        %v2614 = vadd.f32 0.0, %v2613
        %v2615 = vpop.f32.mrf.mxu0
        %v2616 = vpop.f32.mrf.mxu0
        %v2617 = vpop.f32.mrf.mxu0
        %2618 = vdwg.mxu0
        %v2627 = vunpack.c.l.b16 %v2120
        %v2628 = vunpack.c.l.b16 %v2121
        %v2629 = vunpack.c.l.b16 %v2122
        %v2630 = vunpack.c.l.b16 %v2123
        %v2631 = vunpack.c.l.b16 %v2124
        %v2632 = vunpack.c.l.b16 %v2125
        %v2633 = vunpack.c.l.b16 %v2126
        %v2634 = vunpack.c.l.b16 %v2127
        %v2635 = vpack.c.b16 %v2628, %v2627
        %v2636 = vpack.c.b16 %v2630, %v2629
        %v2637 = vpack.c.b16 %v2632, %v2631
        %v2638 = vpack.c.b16 %v2634, %v2633
        %v2640 = vsel %vm710, %v2118, 0
        %v2643 = vsel %vm710, %v2635, 0
        %v2646 = vsel %vm710, %v2636, 0
        %v2649 = vsel %vm710, %v2637, 0
        %v2652 = vsel %vm710, %v2638, 0
        %2654 = vmatprep.subr.bf16.mxu0 0
        %2655 = vmatpush1.bf16.xpose.msra.mxu0 0
        %2656 = vmatprep.subr.bf16.mxu0 0
        %2657 = vmatpush1.bf16.xpose.msra.mxu0 0
        %2658 = vmatprep.subr.bf16.mxu0 0
        %2659 = vmatpush1.bf16.xpose.msra.mxu0 0
        %2660 = vmatprep.subr.bf16.mxu0 0
        %2661 = vmatpush1.bf16.xpose.msra.mxu0 0
        %2662 = vmatprep.subr.bf16.mxu0 0
        %2663 = vmatpush1.bf16.xpose.msra.mxu0 %v2652
        %2664 = vmatprep.subr.bf16.mxu0 0
        %2665 = vmatpush1.bf16.xpose.msra.mxu0 %v2649
        %2666 = vmatprep.subr.bf16.mxu0 0
        %2667 = vmatpush1.bf16.xpose.msra.mxu0 %v2646
        %2668 = vmatprep.subr.bf16.mxu0 0
        %2669 = vmatpush1.bf16.xpose.msra.mxu0 %v2643
        %2670 = vmatprep.subr.bf16.mxu0 0
        %2671 = vmatpush2.bf16.xpose.msra.mxu0 0
        %2672 = vmatprep.subr.bf16.mxu0 0
        %2673 = vmatpush2.bf16.xpose.msra.mxu0 0
        %2674 = vmatprep.subr.bf16.mxu0 0
        %2675 = vmatpush2.bf16.xpose.msra.mxu0 0
        %2676 = vmatprep.subr.bf16.mxu0 0
        %2677 = vmatpush2.bf16.xpose.msra.mxu0 0
        %2678 = vmatprep.subr.bf16.mxu0 0
        %2679 = vmatpush2.bf16.xpose.msra.mxu0 0
        %2680 = vmatprep.subr.bf16.mxu0 0
        %2681 = vmatpush2.bf16.xpose.msra.mxu0 0
        %2682 = vmatprep.subr.bf16.mxu0 0
        %2683 = vmatpush2.bf16.xpose.msra.mxu0 0
        %2684 = vmatprep.subr.bf16.mxu0 0
        %2685 = vmatpush2.bf16.xpose.msra.mxu0 0
        %2686 = vmatprep.mubr.bf16.mxu0 0
        %2687 = vmatmul.mubr.bf16.gmra.mxu0 %v2640
        %v2688 = vpop.f32.mrf.mxu0
        %v2689 = vadd.f32 %v2614, %v2688
        %v2690 = vpop.f32.mrf.mxu0
        %v2691 = vpop.f32.mrf.mxu0
        %v2692 = vpop.f32.mrf.mxu0
        %2693 = vdwg.mxu0
        %v2694 = vadd.f32 %v1682, %v2689
        %v2695 = vld [vmem:[%s2 + $0x12] sm:$0x1]
        %v2696 = vlaneseq
        %v2697 = vshrl.u32 %v2696, 7
        %v2698 = vsub.s32 0, %v2697
        %v2699 = vrot.slane %v2695, %v2698
        %v2700 = vadd.f32 %v2694, %v2699
        %v2701 = vld [vmem:[%s2 + $0x13] sm:$0x1]
        %v2702 = vld [vmem:[%s2 + $0x14] sm:$0x1]
        %v2703 = vsel %vm440, %v2700, 0.0
        %2704 = vadd.xlane.f32.xlu0 %v2703
        %v2705 = vpop.xlane.xlu0 %2704
        %v2706 = vmul.f32 %v2705, %v444
        %v2707 = vsub.f32 %v2700, %v2706
        %v2708 = vmul.f32 %v2707, %v2707
        %v2709 = vsel %vm440, %v2708, 0.0
        %2710 = vadd.xlane.f32.xlu0 %v2709
        %v2711 = vpop.xlane.xlu0 %2710
        %v2712 = vmul.f32 %v2711, %v444
        %v2713 = vadd.f32 %v2712, 1e-12
        %v2714 = vrsqrt.pop %v2713
        %v2715 = vmul.f32 %v2707, %v2714
        %v2716 = vlaneseq
        %v2717 = vshrl.u32 %v2716, 7
        %v2718 = vsub.s32 0, %v2717
        %v2719 = vrot.slane %v2701, %v2718
        %v2720 = vmul.f32 %v2715, %v2719
        %v2721 = vlaneseq
        %v2722 = vshrl.u32 %v2721, 7
        %v2723 = vsub.s32 0, %v2722
        %v2724 = vrot.slane %v2702, %v2723
        %v2725 = vadd.f32 %v2720, %v2724
        %v2726 = vpack.c.bf16 %v2725, %v2725
        %s2727 = scalar_lea.vmem %s5, 96
        %v2728 = vld [vmem:[%s2727] sm:$0xf]
        %v2729 = vld [vmem:[%s2727 + $0x4] sm:$0xf]
        %v2730 = vld [vmem:[%s2727 + $0x8] sm:$0xf]
        %v2731 = vld [vmem:[%s2727 + $0xc] sm:$0xf]
        %v2732 = vld [vmem:[%s2727 + $0x10] sm:$0xf]
        %v2733 = vld [vmem:[%s2727 + $0x14] sm:$0xf]
        %v2734 = vld [vmem:[%s2727 + $0x18] sm:$0xf]
        %v2735 = vld [vmem:[%s2727 + $0x1c] sm:$0xf]
        %v2736 = vld [vmem:[%s2 + $0x15] sm:$0x1]
        %v2737 = vlaneseq
        %v2738 = vshrl.u32 %v2737, 7
        %v2739 = vsub.s32 0, %v2738
        %v2740 = vrot.slane %v2736, %v2739
        %v2749 = vunpack.c.l.b16 %v2728
        %v2750 = vunpack.c.l.b16 %v2729
        %v2751 = vunpack.c.l.b16 %v2730
        %v2752 = vunpack.c.l.b16 %v2731
        %v2753 = vunpack.c.l.b16 %v2732
        %v2754 = vunpack.c.l.b16 %v2733
        %v2755 = vunpack.c.l.b16 %v2734
        %v2756 = vunpack.c.l.b16 %v2735
        %v2757 = vpack.c.b16 %v2750, %v2749
        %v2758 = vpack.c.b16 %v2752, %v2751
        %v2759 = vpack.c.b16 %v2754, %v2753
        %v2760 = vpack.c.b16 %v2756, %v2755
        %v2766 = vsel %vm394, %v2726, 0
        %2768 = vmatprep.subr.bf16.mxu0 0
        %2769 = vmatpush1.bf16.msra.mxu0 0
        %2770 = vmatprep.subr.bf16.mxu0 0
        %2771 = vmatpush1.bf16.msra.mxu0 0
        %2772 = vmatprep.subr.bf16.mxu0 0
        %2773 = vmatpush1.bf16.msra.mxu0 0
        %2774 = vmatprep.subr.bf16.mxu0 0
        %2775 = vmatpush1.bf16.msra.mxu0 0
        %2776 = vmatprep.subr.bf16.mxu0 0
        %2777 = vmatpush1.bf16.msra.mxu0 %v2760
        %2778 = vmatprep.subr.bf16.mxu0 0
        %2779 = vmatpush1.bf16.msra.mxu0 %v2759
        %2780 = vmatprep.subr.bf16.mxu0 0
        %2781 = vmatpush1.bf16.msra.mxu0 %v2758
        %2782 = vmatprep.subr.bf16.mxu0 0
        %2783 = vmatpush1.bf16.msra.mxu0 %v2757
        %2784 = vmatprep.subr.bf16.mxu0 0
        %2785 = vmatpush2.bf16.msra.mxu0 0
        %2786 = vmatprep.subr.bf16.mxu0 0
        %2787 = vmatpush2.bf16.msra.mxu0 0
        %2788 = vmatprep.subr.bf16.mxu0 0
        %2789 = vmatpush2.bf16.msra.mxu0 0
        %2790 = vmatprep.subr.bf16.mxu0 0
        %2791 = vmatpush2.bf16.msra.mxu0 0
        %2792 = vmatprep.subr.bf16.mxu0 0
        %2793 = vmatpush2.bf16.msra.mxu0 0
        %2794 = vmatprep.subr.bf16.mxu0 0
        %2795 = vmatpush2.bf16.msra.mxu0 0
        %2796 = vmatprep.subr.bf16.mxu0 0
        %2797 = vmatpush2.bf16.msra.mxu0 0
        %2798 = vmatprep.subr.bf16.mxu0 0
        %2799 = vmatpush2.bf16.msra.mxu0 0
        %2800 = vmatprep.mubr.bf16.mxu0 0
        %2801 = vmatmul.mubr.bf16.gmra.mxu0 %v2766
        %v2802 = vpop.f32.mrf.mxu0
        %v2803 = vadd.f32 %v2740, %v2802
        %v2804 = vpop.f32.mrf.mxu0
        %v2805 = vpop.f32.mrf.mxu0
        %v2806 = vpop.f32.mrf.mxu0
        %2807 = vdwg.mxu0
        %v2808 = vmul.f32 %v2803, 0.5
        %v2809 = vmul.f32 %v2803, 0.70710677
        %v2810 = verf.f32.pop %v2809
        %v2811 = vadd.f32 %v2810, 1.0
        %v2812 = vmul.f32 %v2808, %v2811
        %v2813 = vpack.c.bf16 %v2812, %v2812
        %v2814 = vld [vmem:[%s2727 + $0x20] sm:$0xf]
        %v2815 = vld [vmem:[%s2727 + $0x24] sm:$0xf]
        %v2816 = vld [vmem:[%s2727 + $0x28] sm:$0xf]
        %v2817 = vld [vmem:[%s2727 + $0x2c] sm:$0xf]
        %v2818 = vld [vmem:[%s2727 + $0x30] sm:$0xf]
        %v2819 = vld [vmem:[%s2727 + $0x34] sm:$0xf]
        %v2820 = vld [vmem:[%s2727 + $0x38] sm:$0xf]
        %v2821 = vld [vmem:[%s2727 + $0x3c] sm:$0xf]
        %v2822 = vld [vmem:[%s2727 + $0x40] sm:$0xf]
        %v2823 = vld [vmem:[%s2727 + $0x44] sm:$0xf]
        %v2824 = vld [vmem:[%s2727 + $0x48] sm:$0xf]
        %v2825 = vld [vmem:[%s2727 + $0x4c] sm:$0xf]
        %v2826 = vld [vmem:[%s2727 + $0x50] sm:$0xf]
        %v2827 = vld [vmem:[%s2727 + $0x54] sm:$0xf]
        %v2828 = vld [vmem:[%s2727 + $0x58] sm:$0xf]
        %v2829 = vld [vmem:[%s2727 + $0x5c] sm:$0xf]
        %v2846 = vunpack.c.l.b16 %v2814
        %v2847 = vunpack.c.l.b16 %v2815
        %v2848 = vunpack.c.l.b16 %v2816
        %v2849 = vunpack.c.l.b16 %v2817
        %v2850 = vunpack.c.l.b16 %v2818
        %v2851 = vunpack.c.l.b16 %v2819
        %v2852 = vunpack.c.l.b16 %v2820
        %v2853 = vunpack.c.l.b16 %v2821
        %v2854 = vunpack.c.l.b16 %v2822
        %v2855 = vunpack.c.l.b16 %v2823
        %v2856 = vunpack.c.l.b16 %v2824
        %v2857 = vunpack.c.l.b16 %v2825
        %v2858 = vunpack.c.l.b16 %v2826
        %v2859 = vunpack.c.l.b16 %v2827
        %v2860 = vunpack.c.l.b16 %v2828
        %v2861 = vunpack.c.l.b16 %v2829
        %v2862 = vpack.c.b16 %v2847, %v2846
        %v2863 = vpack.c.b16 %v2849, %v2848
        %v2864 = vpack.c.b16 %v2851, %v2850
        %v2865 = vpack.c.b16 %v2853, %v2852
        %v2866 = vpack.c.b16 %v2855, %v2854
        %v2867 = vpack.c.b16 %v2857, %v2856
        %v2868 = vpack.c.b16 %v2859, %v2858
        %v2869 = vpack.c.b16 %v2861, %v2860
        %2878 = vmatprep.subr.bf16.mxu0 0
        %2879 = vmatpush1.bf16.msra.mxu0 %v2869
        %2880 = vmatprep.subr.bf16.mxu0 0
        %2881 = vmatpush1.bf16.msra.mxu0 %v2868
        %2882 = vmatprep.subr.bf16.mxu0 0
        %2883 = vmatpush1.bf16.msra.mxu0 %v2867
        %2884 = vmatprep.subr.bf16.mxu0 0
        %2885 = vmatpush1.bf16.msra.mxu0 %v2866
        %2886 = vmatprep.subr.bf16.mxu0 0
        %2887 = vmatpush1.bf16.msra.mxu0 %v2865
        %2888 = vmatprep.subr.bf16.mxu0 0
        %2889 = vmatpush1.bf16.msra.mxu0 %v2864
        %2890 = vmatprep.subr.bf16.mxu0 0
        %2891 = vmatpush1.bf16.msra.mxu0 %v2863
        %2892 = vmatprep.subr.bf16.mxu0 0
        %2893 = vmatpush1.bf16.msra.mxu0 %v2862
        %2894 = vmatprep.subr.bf16.mxu0 0
        %2895 = vmatpush2.bf16.msra.mxu0 0
        %2896 = vmatprep.subr.bf16.mxu0 0
        %2897 = vmatpush2.bf16.msra.mxu0 0
        %2898 = vmatprep.subr.bf16.mxu0 0
        %2899 = vmatpush2.bf16.msra.mxu0 0
        %2900 = vmatprep.subr.bf16.mxu0 0
        %2901 = vmatpush2.bf16.msra.mxu0 0
        %2902 = vmatprep.subr.bf16.mxu0 0
        %2903 = vmatpush2.bf16.msra.mxu0 0
        %2904 = vmatprep.subr.bf16.mxu0 0
        %2905 = vmatpush2.bf16.msra.mxu0 0
        %2906 = vmatprep.subr.bf16.mxu0 0
        %2907 = vmatpush2.bf16.msra.mxu0 0
        %2908 = vmatprep.subr.bf16.mxu0 0
        %2909 = vmatpush2.bf16.msra.mxu0 0
        %2910 = vmatprep.mubr.bf16.mxu0 0
        %2911 = vmatmul.mubr.bf16.gmra.mxu0 %v2813
        %v2912 = vpop.f32.mrf.mxu0
        %v2913 = vadd.f32 0.0, %v2912
        %v2914 = vpop.f32.mrf.mxu0
        %v2915 = vpop.f32.mrf.mxu0
        %v2916 = vpop.f32.mrf.mxu0
        %2917 = vdwg.mxu0
        %v2918 = vadd.f32 %v2700, %v2913
        %v2919 = vld [vmem:[%s2 + $0x16] sm:$0x1]
        %v2920 = vlaneseq
        %v2921 = vshrl.u32 %v2920, 7
        %v2922 = vsub.s32 0, %v2921
        %v2923 = vrot.slane %v2919, %v2922
        %v2924 = vadd.f32 %v2918, %v2923
        %v2925 = vld [vmem:[%s2 + $0x18] sm:$0x1]
        %v2926 = vld [vmem:[%s2 + $0x19] sm:$0x1]
        %vm2927 = vcmask 516096
        %v2928 = vsel %vm2927, %v2924, 0.0
        %2929 = vadd.xlane.f32.xlu0 %v2928
        %v2930 = vpop.xlane.xlu0 %2929
        %v2931 = vmul.f32 %v2930, %v444
        %v2932 = vsub.f32 %v2924, %v2931
        %v2933 = vmul.f32 %v2932, %v2932
        %v2934 = vsel %vm2927, %v2933, 0.0
        %2935 = vadd.xlane.f32.xlu0 %v2934
        %v2936 = vpop.xlane.xlu0 %2935
        %v2937 = vmul.f32 %v2936, %v444
        %v2938 = vadd.f32 %v2937, 1e-12
        %v2939 = vrsqrt.pop %v2938
        %v2940 = vmul.f32 %v2932, %v2939
        %v2941 = vmul.f32 %v2940, %v2925
        %v2942 = vadd.f32 %v2941, %v2926
        %v2943 = vld [vmem:[%s6 + $0x60] sm:$0xf]
        %v2944 = vld [vmem:[%s6 + $0x64] sm:$0xf]
        %v2945 = vld [vmem:[%s6 + $0x68] sm:$0xf]
        %v2946 = vld [vmem:[%s6 + $0x6c] sm:$0xf]
        %v2947 = vld [vmem:[%s6 + $0x70] sm:$0xf]
        %v2948 = vld [vmem:[%s6 + $0x74] sm:$0xf]
        %v2949 = vld [vmem:[%s6 + $0x78] sm:$0xf]
        %v2950 = vld [vmem:[%s6 + $0x7c] sm:$0xf]
        %v2951 = vpack.c.bf16 %v2942, %v2942
        %v2952 = vld [vmem:[%s2 + $0x1a] sm:$0x1]
        %v2961 = vunpack.c.l.b16 %v2943
        %v2962 = vunpack.c.l.b16 %v2944
        %v2963 = vunpack.c.l.b16 %v2945
        %v2964 = vunpack.c.l.b16 %v2946
        %v2965 = vunpack.c.l.b16 %v2947
        %v2966 = vunpack.c.l.b16 %v2948
        %v2967 = vunpack.c.l.b16 %v2949
        %v2968 = vunpack.c.l.b16 %v2950
        %v2969 = vpack.c.b16 %v2962, %v2961
        %v2970 = vpack.c.b16 %v2964, %v2963
        %v2971 = vpack.c.b16 %v2966, %v2965
        %v2972 = vpack.c.b16 %v2968, %v2967
        %v2978 = vsel %vm394, %v2951, 0
        %2980 = vmatprep.subr.bf16.mxu0 0
        %2981 = vmatpush1.bf16.msra.mxu0 0
        %2982 = vmatprep.subr.bf16.mxu0 0
        %2983 = vmatpush1.bf16.msra.mxu0 0
        %2984 = vmatprep.subr.bf16.mxu0 0
        %2985 = vmatpush1.bf16.msra.mxu0 0
        %2986 = vmatprep.subr.bf16.mxu0 0
        %2987 = vmatpush1.bf16.msra.mxu0 0
        %2988 = vmatprep.subr.bf16.mxu0 0
        %2989 = vmatpush1.bf16.msra.mxu0 %v2972
        %2990 = vmatprep.subr.bf16.mxu0 0
        %2991 = vmatpush1.bf16.msra.mxu0 %v2971
        %2992 = vmatprep.subr.bf16.mxu0 0
        %2993 = vmatpush1.bf16.msra.mxu0 %v2970
        %2994 = vmatprep.subr.bf16.mxu0 0
        %2995 = vmatpush1.bf16.msra.mxu0 %v2969
        %2996 = vmatprep.subr.bf16.mxu0 0
        %2997 = vmatpush2.bf16.msra.mxu0 0
        %2998 = vmatprep.subr.bf16.mxu0 0
        %2999 = vmatpush2.bf16.msra.mxu0 0
        %3000 = vmatprep.subr.bf16.mxu0 0
        %3001 = vmatpush2.bf16.msra.mxu0 0
        %3002 = vmatprep.subr.bf16.mxu0 0
        %3003 = vmatpush2.bf16.msra.mxu0 0
        %3004 = vmatprep.subr.bf16.mxu0 0
        %3005 = vmatpush2.bf16.msra.mxu0 0
        %3006 = vmatprep.subr.bf16.mxu0 0
        %3007 = vmatpush2.bf16.msra.mxu0 0
        %3008 = vmatprep.subr.bf16.mxu0 0
        %3009 = vmatpush2.bf16.msra.mxu0 0
        %3010 = vmatprep.subr.bf16.mxu0 0
        %3011 = vmatpush2.bf16.msra.mxu0 0
        %3012 = vmatprep.mubr.bf16.mxu0 0
        %3013 = vmatmul.mubr.bf16.gmra.mxu0 %v2978
        %v3014 = vpop.f32.mrf.mxu0
        %v3015 = vadd.f32 %v2952, %v3014
        %v3016 = vpop.f32.mrf.mxu0
        %v3017 = vpop.f32.mrf.mxu0
        %v3018 = vpop.f32.mrf.mxu0
        %3019 = vdwg.mxu0
        %vm3020 = vcmask 73728
        %3021 = vst.msk [vmem:[%s278] sm:$0x1] %vm3020, %v3015
        %v3022 = vsel %vm3020, %v3015, -inf
        %3023 = vmax.xlane.f32.xlu0 %v3022
        %v3024 = vpop.xlane.xlu0 %3023
        %v3025 = vsub.f32 %v3015, %v3024
        %v3026 = vmul.f32 %v3025, 1.442695
        %v3027 = vpow.pop %v3026
        %v3028 = vsel %vm3020, %v3027, 0.0
        %3029 = vadd.xlane.f32.xlu0 %v3028
        %v3030 = vpop.xlane.xlu0 %3029
        %v3031 = vlog2.pop %v3030
        %v3032 = vmul.f32 %v3031, 0.6931472
        %s3033 = sld [smem:[#allocation3 + %s29]]
        %v3034 = vlaneseq
        %v3035 = vand.u32 %v3034, 127
        %v3036 = vstv %s3033
        %vm3037 = vcmp.eq.s32.totalorder %v3035, %v3036
        %v3038 = vsel %vm3037, 1, 0
        %v3039 = vcvt.s32.f32 %v3038
        %v3040 = vmul.f32 %v3039, %v3025
        %v3041 = vsel %vm3020, %v3040, 0.0
        %3042 = vadd.xlane.f32.xlu0 %v3041
        %v3043 = vpop.xlane.xlu0 %3042
        %v3044 = vsub.f32 %v3032, %v3043
        %vm3045 = vcmask 0
        %3046 = vst.msk [vmem:[%s291] sm:$0x1] %vm3045, %v3044
        %s3047 = sand.u32 %s168, 1
        %s3048 = scalar_lea.sflag [#allocation5], %s3047
        %s3049 = sand.u32 %s168, 1
        %s3050 = scalar_lea.vmem [#allocation4], %s3049
        %p3051 = scmp.lt.s32.totalorder %s29, 1
        %s3052 = scalar_select %p3051, %s29, 1
        %s3053 = scalar_lea.vmem %s8, %s3052
        // Predicated region
        $region45: #{vit_forward.1} parent=43 // pred_check
          %p3054 = pneg %p178
        $region46: #{vit_forward.1} parent=43 // pred_check_branch
          %3056 = sbr.rel (%p3054) target = $region48
        $region47: #{vit_forward.1} parent=43 // pred_region
          %s3058 = ssub.s32 16, 16
          %3059 = vsyncadd %s3048, %s3058
          %s3060 = smul.addr %s29, 16
          %s3061 = scalar_lea.hbm %s7, %s3060
          %s3063 = sshll.u32 %s3050, 4
          %s3064 = int_to_ptr.vmem [resolvable:$true] %s3063
          %3066 = dma.vmem_to_hbm [thread:$0]  %s3064, 16, %s3061, %s3048
        $region48: #{vit_forward.1} parent=43 // pred_fallthru
          _
        // Predicated region
        $region49: #{vit_forward.1} parent=43 // pred_check
          %p3067 = pneg %p204
        $region50: #{vit_forward.1} parent=43 // pred_check_branch
          %3069 = sbr.rel (%p3067) target = $region52
        $region51: #{vit_forward.1} parent=43 // pred_region
          _
        $region52: #{vit_forward.1} parent=43 // pred_fallthru
          _
      $region44: #{vit_forward.1} parent=5 // pred_fallthru
        _
      %p3070 = scmp.le.s32.totalorder 2, %s24
      // Predicated region
      $region53: #{vit_forward.1} parent=5 // pred_check
        %p3071 = pneg %p3070
      $region54: #{vit_forward.1} parent=5 // pred_check_branch
        %3073 = sbr.rel (%p3071) target = $region56
      $region55: #{vit_forward.1} parent=5 // pred_region
        %s3074 = ssub.s32 %s24, 2
        // Predicated region
        $region57: #{vit_forward.1} parent=55 // pred_check
          %p3075 = pneg %p184
        $region58: #{vit_forward.1} parent=55 // pred_check_branch
          %3077 = sbr.rel (%p3075) target = $region60
        $region59: #{vit_forward.1} parent=55 // pred_region
          %s3078 = sand.u32 %s169, 1
          %s3079 = scalar_lea.sflag [#allocation5], %s3078
          %s3080 = sand.u32 %s169, 1
          %s3081 = scalar_lea.vmem [#allocation4], %s3080
          %3082 = dma.done %s3079, 16
        $region60: #{vit_forward.1} parent=55 // pred_fallthru
          _
        // Predicated region
        $region61: #{vit_forward.1} parent=55 // pred_check
          %p3083 = pneg %p210
        $region62: #{vit_forward.1} parent=55 // pred_check_branch
          %3085 = sbr.rel (%p3083) target = $region64
        $region63: #{vit_forward.1} parent=55 // pred_region
          %p3086 = scmp.lt.s32.totalorder %s30, 1
          %s3087 = scalar_select %p3086, %s30, 1
          %s3088 = scalar_lea.vmem %s8, %s3087
        $region64: #{vit_forward.1} parent=55 // pred_fallthru
          _
      $region56: #{vit_forward.1} parent=5 // pred_fallthru
        _
    $region6: #{vit_forward.1} parent=1 // loop_footer
      %s28 = sadd.s32 1, %s24
    $region7: #{vit_forward.1} parent=1 // loop_footer_branch
      %23 = sbr.rel target = $region3
    $region8: #{vit_forward.1} parent=1 // loop_exit
      _
    %3089 = vsyncpa [#allocation5], 1
    %s3090 = scalar_lea.sflag [#allocation5], 1
    %3091 = vsyncpa %s3090, 1

</llo_original>
